<compile_context>
chip_gen: v7x
topology: tpu7x:2x2x1
jax: 0.10.0
libtpu: 0.0.40
codegen_flags: <defaults>
</compile_context>

<pallas_src>
import functools

import jax
import jax.numpy as jnp
import numpy as np
from jax.experimental import pallas as pl
from jax.experimental.pallas import tpu as pltpu


# -----------------------------------------------------------------------------
# Kernel
# -----------------------------------------------------------------------------
def textconvnet_kernel(tok_ref, emb_ref, cw_ref, cb_ref,
                       lw1_ref, lb1_ref, lw2_ref, lb2_ref,
                       out_ref, pool_ref, *,
                       seq_len, groups, emb_dim, vocab_pad):
    """Forward pass for one batch tile, fully VMEM-resident, batch lane-packed.

    Activations: rows = (packed group, position), lanes = (slot in group, chan),
    width = groups*emb_dim (=128 for E=16).  All weights were expanded host-side
    into per-slot block-diagonal slabs, so everything is full-width matmuls.

    tok_ref : (TBG*L, G) int32    tok[g*L + l, s] = token of sequence g*G+s at l
    emb_ref : (G*Vpad, G*E) f32   per-slot zero-padded embedding tables
    cw_ref  : (5*3*G*E, G*E) f32  per-layer im2col block-diag conv weights
    cb_ref  : (8, G*E) f32        rows 0..4 = packed conv biases
    lw1_ref : (L/32*G*E, G*H1)    block-diag Lin1 (PyTorch NCL flatten baked in)
    lb1_ref : (1, G*H1) f32
    lw2_ref : (G*H1, G*2) f32     block-diag Lin2
    lb2_ref : (1, G*2) f32
    out_ref : (TBG, G*2) f32      batch-packed logits
    pool_ref: (TBG*L, G*E) f32    scratch for the strided max-pool reads
    """
    ge = groups * emb_dim
    n0 = tok_ref.shape[0]

    # ---- fused embedding lookup: per-slot exact one-hot matmuls -------------
    # Temporaries are bounded to one (n0, Vpad) one-hot at a time regardless of
    # tile size (keeps VMEM use flat on v7x / v5e).
    tok = tok_ref[...]                                               # (n0, G)
    lane_iota = jax.lax.broadcasted_iota(jnp.int32, (n0, vocab_pad), 1)
    x = jnp.zeros((n0, ge), jnp.float32)
    for s in range(groups):
        oh = (lane_iota == tok[:, s:s + 1]).astype(jnp.float32)     # (n0, Vpad)
        x = x + jnp.dot(oh, emb_ref[s * vocab_pad:(s + 1) * vocab_pad, :],
                        preferred_element_type=jnp.float32)

    # ---- 5 x (Conv1d(3, 'same') -> MaxPool1d(2) -> ReLU) --------------------
    cur = seq_len
    for layer in range(5):
        n = x.shape[0]                                               # groups*cur rows
        w = cw_ref[layer * 3 * ge:(layer + 1) * 3 * ge, :]           # (3*GE, GE)
        b = cb_ref[layer:layer + 1, :]                               # (1, GE)
        pos = jax.lax.broadcasted_iota(jnp.int32, (n, 1), 0) % cur
        # x[l-1] / x[l+1] via XLU sublane rolls + one-column 'same'-padding mask
        xm1 = jnp.where(pos == 0, 0.0, pltpu.roll(x, 1, axis=0))
        xp1 = jnp.where(pos == cur - 1, 0.0, pltpu.roll(x, n - 1, axis=0))
        cols = jnp.concatenate([xm1, x, xp1], axis=1)                # (n, 3*GE)
        y = jnp.dot(cols, w, preferred_element_type=jnp.float32) + b
        # MaxPool1d(2) over the sequence (sublane) axis: stage rows in VMEM and
        # read even/odd rows back with stride-2 sublane loads (no lane-merge
        # reshape relayout), then one maximum + ReLU.
        pool_ref[0:n, :] = y
        even = pool_ref[pl.ds(0, n // 2, stride=2), :]
        odd = pool_ref[pl.ds(1, n // 2, stride=2), :]
        x = jnp.maximum(jnp.maximum(even, odd), 0.0)
        cur //= 2

    # ---- Flatten -> Lin1 -> ReLU -> Lin2 (still batch lane-packed) ----------
    tbg = x.shape[0] // cur
    flat = x.reshape(tbg, cur * ge)          # tiny: L/32 rows merged into lanes
    h = jnp.dot(flat, lw1_ref[...], preferred_element_type=jnp.float32) + lb1_ref[...]
    h = jnp.maximum(h, 0.0)
    out_ref[...] = (jnp.dot(h, lw2_ref[...], preferred_element_type=jnp.float32)
                    + lb2_ref[...])


# -----------------------------------------------------------------------------
# Parameters (PyTorch-convention shapes) + one-time packed re-layout
# -----------------------------------------------------------------------------
def init_params(key, input_len, embedding_dim, dict_size):
    keys = jax.random.split(key, 16)
    p = {"embedding": jax.random.normal(keys[0], (dict_size, embedding_dim),
                                        jnp.float32)}
    for i in range(5):
        p[f"conv{i+1}_w"] = 0.1 * jax.random.normal(
            keys[1 + 2 * i], (embedding_dim, embedding_dim, 3), jnp.float32)
        p[f"conv{i+1}_b"] = 0.1 * jax.random.normal(
            keys[2 + 2 * i], (embedding_dim,), jnp.float32)
    h1 = input_len // 8
    in1 = embedding_dim * input_len // 32
    p["lin1_w"] = 0.1 * jax.random.normal(keys[11], (h1, in1), jnp.float32)
    p["lin1_b"] = 0.1 * jax.random.normal(keys[12], (h1,), jnp.float32)
    p["lin2_w"] = 0.1 * jax.random.normal(keys[13], (2, h1), jnp.float32)
    p["lin2_b"] = 0.1 * jax.random.normal(keys[14], (2,), jnp.float32)
    return p


def prepare_params(params, input_len):
    """One-time model-load re-layout into batch-lane-packed block-diag slabs."""
    dict_size, emb_dim = params["embedding"].shape
    groups = max(1, 128 // emb_dim)            # sequences packed on the 128 lanes
    ge = groups * emb_dim
    vocab_pad = ((dict_size + 127) // 128) * 128          # lane-aligned vocab pad
    eye_g = jnp.eye(groups, dtype=jnp.float32)

    emb = jnp.zeros((vocab_pad, emb_dim), jnp.float32)
    emb = emb.at[:dict_size].set(params["embedding"].astype(jnp.float32))
    # per-slot (block-diag over lane groups) embedding slab: (G*Vpad, G*E)
    emb_slab = jnp.einsum("gh,ve->gvhe", eye_g, emb).reshape(groups * vocab_pad, ge)

    cw, cb = [], []
    for i in range(1, 6):
        w = params[f"conv{i}_w"].astype(jnp.float32)       # (C_out, C_in, 3)
        tap = jnp.transpose(w, (2, 1, 0))                  # (3, C_in, C_out); tap0 <-> x[l-1]
        cw.append(jnp.einsum("gh,kio->kgiho", eye_g, tap).reshape(3 * ge, ge))
        cb.append(jnp.tile(params[f"conv{i}_b"].astype(jnp.float32), (groups,)))
    cw_slab = jnp.concatenate(cw, axis=0)                  # (5*3*GE, GE)
    cb_slab = jnp.concatenate(
        [jnp.stack(cb, axis=0), jnp.zeros((3, ge), jnp.float32)], axis=0)  # (8, GE)

    l5 = input_len // 32
    h1 = params["lin1_w"].shape[0]
    # PyTorch flattens NCL (feature = c*L5 + l5); the kernel flattens
    # (l5, slot, c) into lanes -> bake both into the block-diag Lin1 slab.
    w1 = params["lin1_w"].astype(jnp.float32).reshape(h1, emb_dim, l5)  # [j, c, l5]
    lw1 = jnp.einsum("st,jcl->lsctj", eye_g, w1).reshape(l5 * ge, groups * h1)
    lb1 = jnp.tile(params["lin1_b"].astype(jnp.float32), (groups,)).reshape(1, groups * h1)
    w2 = params["lin2_w"].astype(jnp.float32)              # (2, H1)
    lw2 = jnp.einsum("st,kj->sjtk", eye_g, w2).reshape(groups * h1, groups * 2)
    lb2 = jnp.tile(params["lin2_b"].astype(jnp.float32), (groups,)).reshape(1, groups * 2)

    return {"emb_slab": emb_slab, "cw_slab": cw_slab, "cb_slab": cb_slab,
            "lw1": lw1, "lb1": lb1, "lw2": lw2, "lb2": lb2,
            "meta": {"groups": groups, "emb_dim": emb_dim,
                     "vocab_pad": vocab_pad, "input_len": input_len}}


# -----------------------------------------------------------------------------
# Wrapper
# -----------------------------------------------------------------------------
def _pick_grid(batch_groups, seq_len):
    """Pick (#programs, packed groups per program).

    One program by default (v5e/v6e single TensorCore).  Split into >= 2 equal
    programs when the batch allows every program >= 8 packed groups (keeps the
    output block sublane-aligned and gives v7x's two TensorCores work), and keep
    splitting while per-program row counts exceed ~4K (bounds VMEM temporaries).
    """
    nprog = 1
    if batch_groups % 2 == 0 and batch_groups >= 16:
        nprog = 2
    while (batch_groups % (nprog * 2) == 0
           and batch_groups // (nprog * 2) >= 8
           and (batch_groups // nprog) * seq_len > 4096):
        nprog *= 2
    return nprog, batch_groups // nprog


def textconvnet_forward(tokens, prepped):
    meta = prepped["meta"]
    groups, emb_dim, vocab_pad = meta["groups"], meta["emb_dim"], meta["vocab_pad"]
    ge = groups * emb_dim
    b, seq_len = tokens.shape
    assert seq_len % 32 == 0, "input_len must be divisible by 32 (5 pooling stages)"
    assert seq_len == meta["input_len"]

    # pad the batch to a multiple of the lane-packing factor (padding sliced off)
    bp = ((b + groups - 1) // groups) * groups
    if bp != b:
        tokens = jnp.concatenate(
            [tokens, jnp.zeros((bp - b, seq_len), tokens.dtype)], axis=0)
    bg = bp // groups
    nprog, tbg = _pick_grid(bg, seq_len)
    n0 = tbg * seq_len                         # activation rows per program

    # host-side token re-layout (tiny int32 transpose): rows = (group, position),
    # lanes = slot-in-group, matching the kernel's packed activation layout.
    tok2d = (tokens.astype(jnp.int32).reshape(bg, groups, seq_len)
             .transpose(0, 2, 1).reshape(bg * seq_len, groups))

    gh1 = prepped["lw1"].shape[1]
    weights = (prepped["emb_slab"], prepped["cw_slab"], prepped["cb_slab"],
               prepped["lw1"], prepped["lb1"], prepped["lw2"], prepped["lb2"])

    def const_spec(arr):
        nd = arr.ndim
        return pl.BlockSpec(arr.shape, lambda *_: (0,) * nd)   # VMEM-resident

    # advisory cost estimate so XLA can schedule around the custom call
    flops = 2 * bg * seq_len * vocab_pad * ge * groups          # embedding
    rows = bg * seq_len
    for _ in range(5):
        flops += 2 * rows * (3 * ge) * ge                       # conv blocks
        rows //= 2
    flops += 2 * bg * ((seq_len // 32) * ge) * gh1 + 2 * bg * gh1 * (groups * 2)
    bytes_accessed = 4 * (int(tok2d.size) + sum(int(w.size) for w in weights)
                          + bg * groups * 2)
    cost = pl.CostEstimate(flops=int(flops), transcendentals=0,
                           bytes_accessed=int(bytes_accessed))

    kernel = functools.partial(textconvnet_kernel, seq_len=seq_len,
                               groups=groups, emb_dim=emb_dim,
                               vocab_pad=vocab_pad)
    out_packed = pl.pallas_call(
        kernel,
        out_shape=jax.ShapeDtypeStruct((bg, groups * 2), jnp.float32),
        grid=(nprog,),
        in_specs=[pl.BlockSpec((n0, groups), lambda i: (i, 0))]
                 + [const_spec(w) for w in weights],
        out_specs=pl.BlockSpec((tbg, groups * 2), lambda i: (i, 0)),
        scratch_shapes=[pltpu.VMEM((n0, ge), jnp.float32)],
        compiler_params=pltpu.CompilerParams(
            dimension_semantics=("parallel",),
            vmem_limit_bytes=32 * 1024 * 1024),
        cost_estimate=cost,
    )(tok2d, *weights)

    # trivial unpack: (B/G, G*2) row-major flatten is exactly (B, 2)
    return out_packed.reshape(bp, 2)[:b]


# -----------------------------------------------------------------------------
# Pure-JAX reference (mirrors the PyTorch module) for a numeric sanity check
# -----------------------------------------------------------------------------
def reference_forward(tokens, params):
    hp = jax.lax.Precision.HIGHEST
    x = params["embedding"][tokens]                      # (B, L, E)
    x = jnp.transpose(x, (0, 2, 1))                      # (B, E, L)
    for i in range(1, 6):
        w, bias = params[f"conv{i}_w"], params[f"conv{i}_b"]
        xp = jnp.pad(x, ((0, 0), (0, 0), (1, 1)))
        y = (jnp.einsum("oi,bil->bol", w[:, :, 0], xp[:, :, :-2], precision=hp)
             + jnp.einsum("oi,bil->bol", w[:, :, 1], xp[:, :, 1:-1], precision=hp)
             + jnp.einsum("oi,bil->bol", w[:, :, 2], xp[:, :, 2:], precision=hp)
             + bias[None, :, None])
        bb, cc, ll = y.shape
        y = jnp.max(y.reshape(bb, cc, ll // 2, 2), axis=-1)      # MaxPool1d(2)
        x = jnp.maximum(y, 0.0)                                  # ReLU
    flat = x.reshape(x.shape[0], -1)                             # NCL flatten
    h = jnp.maximum(jnp.dot(flat, params["lin1_w"].T, precision=hp)
                    + params["lin1_b"], 0.0)
    return jnp.dot(h, params["lin2_w"].T, precision=hp) + params["lin2_b"]


if __name__ == "__main__":
    INPUT_LEN = 64        # divisible by 32
    EMBEDDING_DIM = 16    # 8 sequences packed per 128-lane vreg
    DICT_SIZE = 50
    BATCH = 16

    key = jax.random.PRNGKey(0)
    kp, kt = jax.random.split(key)
    params = init_params(kp, INPUT_LEN, EMBEDDING_DIM, DICT_SIZE)
    prepped = prepare_params(params, INPUT_LEN)   # one-time weight re-layout
    tokens = jax.random.randint(kt, (BATCH, INPUT_LEN), 0, DICT_SIZE,
                                dtype=jnp.int32)

    out = textconvnet_forward(tokens, prepped)
    out = jax.block_until_ready(out)
    assert out.shape == (BATCH, 2) and out.dtype == jnp.float32

    ref = jax.block_until_ready(reference_forward(tokens, params))
    np.testing.assert_allclose(np.asarray(out), np.asarray(ref),
                               rtol=2e-2, atol=2e-2)
    print("KERNEL_OK")
</pallas_src>

<mosaic_0001>
module attributes {stable_mosaic.version = 11 : i64} {
  func.func @textconvnet_kernel(%arg0: i32, %arg1: memref<128x8xi32, #tpu.memory_space<vmem>>, %arg2: memref<1024x128xf32, #tpu.memory_space<vmem>>, %arg3: memref<1920x128xf32, #tpu.memory_space<vmem>>, %arg4: memref<8x128xf32, #tpu.memory_space<vmem>>, %arg5: memref<256x64xf32, #tpu.memory_space<vmem>>, %arg6: memref<1x64xf32, #tpu.memory_space<vmem>>, %arg7: memref<64x16xf32, #tpu.memory_space<vmem>>, %arg8: memref<1x16xf32, #tpu.memory_space<vmem>>, %arg9: memref<2x16xf32, #tpu.memory_space<vmem>>, %arg10: memref<128x128xf32, #tpu.memory_space<vmem>>) attributes {dimension_semantics = [#tpu.dimension_semantics<parallel>], iteration_bounds = array<i64: 1>, scalar_prefetch = 0 : i64, scratch_operands = 1 : i64, tpu.core_type = #tpu.core_type<tc>, window_params = [{transform_indices = @transform_0, window_bounds = array<i64: 128, 8>}, {pipeline_mode = #tpu.pipeline_mode<synchronous>, transform_indices = @transform_1, window_bounds = array<i64: 1024, 128>}, {pipeline_mode = #tpu.pipeline_mode<synchronous>, transform_indices = @transform_2, window_bounds = array<i64: 1920, 128>}, {pipeline_mode = #tpu.pipeline_mode<synchronous>, transform_indices = @transform_3, window_bounds = array<i64: 8, 128>}, {pipeline_mode = #tpu.pipeline_mode<synchronous>, transform_indices = @transform_4, window_bounds = array<i64: 256, 64>}, {pipeline_mode = #tpu.pipeline_mode<synchronous>, transform_indices = @transform_5, window_bounds = array<i64: 1, 64>}, {pipeline_mode = #tpu.pipeline_mode<synchronous>, transform_indices = @transform_6, window_bounds = array<i64: 64, 16>}, {pipeline_mode = #tpu.pipeline_mode<synchronous>, transform_indices = @transform_7, window_bounds = array<i64: 1, 16>}, {transform_indices = @transform_8, window_bounds = array<i64: 2, 16>}]} {
    %c0 = arith.constant 0 : index
    %c0_0 = arith.constant 0 : index
    %0 = vector.load %arg1[%c0, %c0_0] : memref<128x8xi32, #tpu.memory_space<vmem>>, vector<128x8xi32>
    %1 = tpu.iota {dimensions = array<i32: 1>} : vector<128x128xi32>
    %cst = arith.constant 0.000000e+00 : f32
    %2 = vector.broadcast %cst : f32 to vector<128x128xf32>
    %3 = vector.extract_strided_slice %0 {offsets = [0, 0], sizes = [128, 1], strides = [1, 1]} : vector<128x8xi32> to vector<128x1xi32>
    %4 = vector.broadcast %3 : vector<128x1xi32> to vector<128x128xi32>
    %5 = arith.cmpi eq, %1, %4 : vector<128x128xi32>
    %6 = arith.extui %5 : vector<128x128xi1> to vector<128x128xi32>
    %7 = arith.sitofp %6 : vector<128x128xi32> to vector<128x128xf32>
    %c0_1 = arith.constant 0 : index
    %c0_2 = arith.constant 0 : index
    %8 = vector.load %arg2[%c0_1, %c0_2] : memref<1024x128xf32, #tpu.memory_space<vmem>>, vector<128x128xf32>
    %cst_3 = arith.constant dense<0.000000e+00> : vector<128x128xf32>
    %9 = tpu.matmul %7, %8, %cst_3 {dimension_numbers = #tpu.dot_dimension_numbers<[1], [0], [0], [1], [0, 0, 1, 1], [], []>} : vector<128x128xf32>, vector<128x128xf32>, vector<128x128xf32> -> vector<128x128xf32>
    %10 = arith.addf %2, %9 : vector<128x128xf32>
    %11 = vector.extract_strided_slice %0 {offsets = [0, 1], sizes = [128, 1], strides = [1, 1]} : vector<128x8xi32> to vector<128x1xi32>
    %12 = vector.broadcast %11 : vector<128x1xi32> to vector<128x128xi32>
    %13 = arith.cmpi eq, %1, %12 : vector<128x128xi32>
    %14 = arith.extui %13 : vector<128x128xi1> to vector<128x128xi32>
    %15 = arith.sitofp %14 : vector<128x128xi32> to vector<128x128xf32>
    %c128 = arith.constant 128 : index
    %c0_4 = arith.constant 0 : index
    %16 = vector.load %arg2[%c128, %c0_4] : memref<1024x128xf32, #tpu.memory_space<vmem>>, vector<128x128xf32>
    %cst_5 = arith.constant dense<0.000000e+00> : vector<128x128xf32>
    %17 = tpu.matmul %15, %16, %cst_5 {dimension_numbers = #tpu.dot_dimension_numbers<[1], [0], [0], [1], [0, 0, 1, 1], [], []>} : vector<128x128xf32>, vector<128x128xf32>, vector<128x128xf32> -> vector<128x128xf32>
    %18 = arith.addf %10, %17 : vector<128x128xf32>
    %19 = vector.extract_strided_slice %0 {offsets = [0, 2], sizes = [128, 1], strides = [1, 1]} : vector<128x8xi32> to vector<128x1xi32>
    %20 = vector.broadcast %19 : vector<128x1xi32> to vector<128x128xi32>
    %21 = arith.cmpi eq, %1, %20 : vector<128x128xi32>
    %22 = arith.extui %21 : vector<128x128xi1> to vector<128x128xi32>
    %23 = arith.sitofp %22 : vector<128x128xi32> to vector<128x128xf32>
    %c256 = arith.constant 256 : index
    %c0_6 = arith.constant 0 : index
    %24 = vector.load %arg2[%c256, %c0_6] : memref<1024x128xf32, #tpu.memory_space<vmem>>, vector<128x128xf32>
    %cst_7 = arith.constant dense<0.000000e+00> : vector<128x128xf32>
    %25 = tpu.matmul %23, %24, %cst_7 {dimension_numbers = #tpu.dot_dimension_numbers<[1], [0], [0], [1], [0, 0, 1, 1], [], []>} : vector<128x128xf32>, vector<128x128xf32>, vector<128x128xf32> -> vector<128x128xf32>
    %26 = arith.addf %18, %25 : vector<128x128xf32>
    %27 = vector.extract_strided_slice %0 {offsets = [0, 3], sizes = [128, 1], strides = [1, 1]} : vector<128x8xi32> to vector<128x1xi32>
    %28 = vector.broadcast %27 : vector<128x1xi32> to vector<128x128xi32>
    %29 = arith.cmpi eq, %1, %28 : vector<128x128xi32>
    %30 = arith.extui %29 : vector<128x128xi1> to vector<128x128xi32>
    %31 = arith.sitofp %30 : vector<128x128xi32> to vector<128x128xf32>
    %c384 = arith.constant 384 : index
    %c0_8 = arith.constant 0 : index
    %32 = vector.load %arg2[%c384, %c0_8] : memref<1024x128xf32, #tpu.memory_space<vmem>>, vector<128x128xf32>
    %cst_9 = arith.constant dense<0.000000e+00> : vector<128x128xf32>
    %33 = tpu.matmul %31, %32, %cst_9 {dimension_numbers = #tpu.dot_dimension_numbers<[1], [0], [0], [1], [0, 0, 1, 1], [], []>} : vector<128x128xf32>, vector<128x128xf32>, vector<128x128xf32> -> vector<128x128xf32>
    %34 = arith.addf %26, %33 : vector<128x128xf32>
    %35 = vector.extract_strided_slice %0 {offsets = [0, 4], sizes = [128, 1], strides = [1, 1]} : vector<128x8xi32> to vector<128x1xi32>
    %36 = vector.broadcast %35 : vector<128x1xi32> to vector<128x128xi32>
    %37 = arith.cmpi eq, %1, %36 : vector<128x128xi32>
    %38 = arith.extui %37 : vector<128x128xi1> to vector<128x128xi32>
    %39 = arith.sitofp %38 : vector<128x128xi32> to vector<128x128xf32>
    %c512 = arith.constant 512 : index
    %c0_10 = arith.constant 0 : index
    %40 = vector.load %arg2[%c512, %c0_10] : memref<1024x128xf32, #tpu.memory_space<vmem>>, vector<128x128xf32>
    %cst_11 = arith.constant dense<0.000000e+00> : vector<128x128xf32>
    %41 = tpu.matmul %39, %40, %cst_11 {dimension_numbers = #tpu.dot_dimension_numbers<[1], [0], [0], [1], [0, 0, 1, 1], [], []>} : vector<128x128xf32>, vector<128x128xf32>, vector<128x128xf32> -> vector<128x128xf32>
    %42 = arith.addf %34, %41 : vector<128x128xf32>
    %43 = vector.extract_strided_slice %0 {offsets = [0, 5], sizes = [128, 1], strides = [1, 1]} : vector<128x8xi32> to vector<128x1xi32>
    %44 = vector.broadcast %43 : vector<128x1xi32> to vector<128x128xi32>
    %45 = arith.cmpi eq, %1, %44 : vector<128x128xi32>
    %46 = arith.extui %45 : vector<128x128xi1> to vector<128x128xi32>
    %47 = arith.sitofp %46 : vector<128x128xi32> to vector<128x128xf32>
    %c640 = arith.constant 640 : index
    %c0_12 = arith.constant 0 : index
    %48 = vector.load %arg2[%c640, %c0_12] : memref<1024x128xf32, #tpu.memory_space<vmem>>, vector<128x128xf32>
    %cst_13 = arith.constant dense<0.000000e+00> : vector<128x128xf32>
    %49 = tpu.matmul %47, %48, %cst_13 {dimension_numbers = #tpu.dot_dimension_numbers<[1], [0], [0], [1], [0, 0, 1, 1], [], []>} : vector<128x128xf32>, vector<128x128xf32>, vector<128x128xf32> -> vector<128x128xf32>
    %50 = arith.addf %42, %49 : vector<128x128xf32>
    %51 = vector.extract_strided_slice %0 {offsets = [0, 6], sizes = [128, 1], strides = [1, 1]} : vector<128x8xi32> to vector<128x1xi32>
    %52 = vector.broadcast %51 : vector<128x1xi32> to vector<128x128xi32>
    %53 = arith.cmpi eq, %1, %52 : vector<128x128xi32>
    %54 = arith.extui %53 : vector<128x128xi1> to vector<128x128xi32>
    %55 = arith.sitofp %54 : vector<128x128xi32> to vector<128x128xf32>
    %c768 = arith.constant 768 : index
    %c0_14 = arith.constant 0 : index
    %56 = vector.load %arg2[%c768, %c0_14] : memref<1024x128xf32, #tpu.memory_space<vmem>>, vector<128x128xf32>
    %cst_15 = arith.constant dense<0.000000e+00> : vector<128x128xf32>
    %57 = tpu.matmul %55, %56, %cst_15 {dimension_numbers = #tpu.dot_dimension_numbers<[1], [0], [0], [1], [0, 0, 1, 1], [], []>} : vector<128x128xf32>, vector<128x128xf32>, vector<128x128xf32> -> vector<128x128xf32>
    %58 = arith.addf %50, %57 : vector<128x128xf32>
    %59 = vector.extract_strided_slice %0 {offsets = [0, 7], sizes = [128, 1], strides = [1, 1]} : vector<128x8xi32> to vector<128x1xi32>
    %60 = vector.broadcast %59 : vector<128x1xi32> to vector<128x128xi32>
    %61 = arith.cmpi eq, %1, %60 : vector<128x128xi32>
    %62 = arith.extui %61 : vector<128x128xi1> to vector<128x128xi32>
    %63 = arith.sitofp %62 : vector<128x128xi32> to vector<128x128xf32>
    %c896 = arith.constant 896 : index
    %c0_16 = arith.constant 0 : index
    %64 = vector.load %arg2[%c896, %c0_16] : memref<1024x128xf32, #tpu.memory_space<vmem>>, vector<128x128xf32>
    %cst_17 = arith.constant dense<0.000000e+00> : vector<128x128xf32>
    %65 = tpu.matmul %63, %64, %cst_17 {dimension_numbers = #tpu.dot_dimension_numbers<[1], [0], [0], [1], [0, 0, 1, 1], [], []>} : vector<128x128xf32>, vector<128x128xf32>, vector<128x128xf32> -> vector<128x128xf32>
    %66 = arith.addf %58, %65 : vector<128x128xf32>
    %c0_18 = arith.constant 0 : index
    %c0_19 = arith.constant 0 : index
    %67 = vector.load %arg3[%c0_18, %c0_19] : memref<1920x128xf32, #tpu.memory_space<vmem>>, vector<384x128xf32>
    %c0_20 = arith.constant 0 : index
    %c0_21 = arith.constant 0 : index
    %68 = vector.load %arg4[%c0_20, %c0_21] : memref<8x128xf32, #tpu.memory_space<vmem>>, vector<1x128xf32>
    %69 = tpu.iota {dimensions = array<i32: 0>} : vector<128x1xi32>
    %c64_i32 = arith.constant 64 : i32
    %c0_i32 = arith.constant 0 : i32
    %70 = arith.cmpi eq, %c64_i32, %c0_i32 : i32
    %c1_i32 = arith.constant 1 : i32
    %71 = arith.select %70, %c1_i32, %c64_i32 : i32
    %72 = vector.broadcast %71 : i32 to vector<128x1xi32>
    %73 = arith.remsi %69, %72 : vector<128x1xi32>
    %c0_i32_22 = arith.constant 0 : i32
    %74 = vector.broadcast %c0_i32_22 : i32 to vector<128x1xi32>
    %75 = arith.cmpi ne, %73, %74 : vector<128x1xi32>
    %c0_i32_23 = arith.constant 0 : i32
    %76 = vector.broadcast %c0_i32_23 : i32 to vector<128x1xi32>
    %77 = arith.cmpi slt, %73, %76 : vector<128x1xi32>
    %c0_i32_24 = arith.constant 0 : i32
    %78 = arith.cmpi slt, %71, %c0_i32_24 : i32
    %79 = vector.broadcast %78 : i1 to vector<128x1xi1>
    %80 = vector.broadcast %79 : vector<128x1xi1> to vector<128x1xi1>
    %81 = arith.xori %77, %80 : vector<128x1xi1>
    %82 = arith.andi %81, %75 : vector<128x1xi1>
    %83 = vector.broadcast %71 : i32 to vector<128x1xi32>
    %84 = arith.addi %73, %83 : vector<128x1xi32>
    %85 = arith.select %82, %84, %73 : vector<128x1xi1>, vector<128x1xi32>
    %c0_i32_25 = arith.constant 0 : i32
    %86 = vector.broadcast %c0_i32_25 : i32 to vector<128x1xi32>
    %87 = arith.cmpi eq, %85, %86 : vector<128x1xi32>
    %c1_i32_26 = arith.constant 1 : i32
    %88 = tpu.dynamic_rotate %66 by %c1_i32_26 dim 0 : vector<128x128xf32>, i32 -> vector<128x128xf32>
    %cst_27 = arith.constant 0.000000e+00 : f32
    %89 = vector.shape_cast %87 : vector<128x1xi1> to vector<128x1xi1>
    %90 = vector.broadcast %89 : vector<128x1xi1> to vector<128x128xi1>
    %91 = vector.broadcast %cst_27 : f32 to vector<128x128xf32>
    %92 = arith.select %90, %91, %88 : vector<128x128xi1>, vector<128x128xf32>
    %c63_i32 = arith.constant 63 : i32
    %93 = vector.broadcast %c63_i32 : i32 to vector<128x1xi32>
    %94 = arith.cmpi eq, %85, %93 : vector<128x1xi32>
    %c127_i32 = arith.constant 127 : i32
    %95 = tpu.dynamic_rotate %66 by %c127_i32 dim 0 : vector<128x128xf32>, i32 -> vector<128x128xf32>
    %cst_28 = arith.constant 0.000000e+00 : f32
    %96 = vector.shape_cast %94 : vector<128x1xi1> to vector<128x1xi1>
    %97 = vector.broadcast %96 : vector<128x1xi1> to vector<128x128xi1>
    %98 = vector.broadcast %cst_28 : f32 to vector<128x128xf32>
    %99 = arith.select %97, %98, %95 : vector<128x128xi1>, vector<128x128xf32>
    %100 = tpu.concatenate %92, %66, %99 in 1 : vector<128x128xf32>, vector<128x128xf32>, vector<128x128xf32> -> vector<128x384xf32>
    %cst_29 = arith.constant dense<0.000000e+00> : vector<128x128xf32>
    %101 = tpu.matmul %100, %67, %cst_29 {dimension_numbers = #tpu.dot_dimension_numbers<[1], [0], [0], [1], [0, 0, 1, 1], [], []>} : vector<128x384xf32>, vector<384x128xf32>, vector<128x128xf32> -> vector<128x128xf32>
    %102 = vector.broadcast %68 : vector<1x128xf32> to vector<128x128xf32>
    %103 = arith.addf %101, %102 : vector<128x128xf32>
    %c0_30 = arith.constant 0 : index
    %c0_31 = arith.constant 0 : index
    %104 = vector.load %arg10[%c0_30, %c0_31] : memref<128x128xf32, #tpu.memory_space<vmem>>, vector<128x128xf32>
    tpu.vector_store %arg10[%c0_30, %c0_31], %103 {strides = array<i32>} : memref<128x128xf32, #tpu.memory_space<vmem>>, vector<128x128xf32>,
    %c0_32 = arith.constant 0 : index
    %c0_33 = arith.constant 0 : index
    %105 = tpu.strided_load %arg10[%c0_32, %c0_33] {strides = array<i32: 2, 1>} : memref<128x128xf32, #tpu.memory_space<vmem>>, vector<64x128xf32>
    %c1 = arith.constant 1 : index
    %c0_34 = arith.constant 0 : index
    %106 = tpu.strided_load %arg10[%c1, %c0_34] {strides = array<i32: 2, 1>} : memref<128x128xf32, #tpu.memory_space<vmem>>, vector<64x128xf32>
    %107 = arith.maximumf %105, %106 : vector<64x128xf32>
    %cst_35 = arith.constant 0.000000e+00 : f32
    %108 = vector.broadcast %cst_35 : f32 to vector<64x128xf32>
    %109 = arith.maximumf %107, %108 : vector<64x128xf32>
    %c384_36 = arith.constant 384 : index
    %c0_37 = arith.constant 0 : index
    %110 = vector.load %arg3[%c384_36, %c0_37] : memref<1920x128xf32, #tpu.memory_space<vmem>>, vector<384x128xf32>
    %c1_38 = arith.constant 1 : index
    %c0_39 = arith.constant 0 : index
    %111 = vector.load %arg4[%c1_38, %c0_39] : memref<8x128xf32, #tpu.memory_space<vmem>>, vector<1x128xf32>
    %112 = tpu.iota {dimensions = array<i32: 0>} : vector<64x1xi32>
    %c32_i32 = arith.constant 32 : i32
    %c0_i32_40 = arith.constant 0 : i32
    %113 = arith.cmpi eq, %c32_i32, %c0_i32_40 : i32
    %c1_i32_41 = arith.constant 1 : i32
    %114 = arith.select %113, %c1_i32_41, %c32_i32 : i32
    %115 = vector.broadcast %114 : i32 to vector<64x1xi32>
    %116 = arith.remsi %112, %115 : vector<64x1xi32>
    %c0_i32_42 = arith.constant 0 : i32
    %117 = vector.broadcast %c0_i32_42 : i32 to vector<64x1xi32>
    %118 = arith.cmpi ne, %116, %117 : vector<64x1xi32>
    %c0_i32_43 = arith.constant 0 : i32
    %119 = vector.broadcast %c0_i32_43 : i32 to vector<64x1xi32>
    %120 = arith.cmpi slt, %116, %119 : vector<64x1xi32>
    %c0_i32_44 = arith.constant 0 : i32
    %121 = arith.cmpi slt, %114, %c0_i32_44 : i32
    %122 = vector.broadcast %121 : i1 to vector<64x1xi1>
    %123 = vector.broadcast %122 : vector<64x1xi1> to vector<64x1xi1>
    %124 = arith.xori %120, %123 : vector<64x1xi1>
    %125 = arith.andi %124, %118 : vector<64x1xi1>
    %126 = vector.broadcast %114 : i32 to vector<64x1xi32>
    %127 = arith.addi %116, %126 : vector<64x1xi32>
    %128 = arith.select %125, %127, %116 : vector<64x1xi1>, vector<64x1xi32>
    %c0_i32_45 = arith.constant 0 : i32
    %129 = vector.broadcast %c0_i32_45 : i32 to vector<64x1xi32>
    %130 = arith.cmpi eq, %128, %129 : vector<64x1xi32>
    %c1_i32_46 = arith.constant 1 : i32
    %131 = tpu.dynamic_rotate %109 by %c1_i32_46 dim 0 : vector<64x128xf32>, i32 -> vector<64x128xf32>
    %cst_47 = arith.constant 0.000000e+00 : f32
    %132 = vector.shape_cast %130 : vector<64x1xi1> to vector<64x1xi1>
    %133 = vector.broadcast %132 : vector<64x1xi1> to vector<64x128xi1>
    %134 = vector.broadcast %cst_47 : f32 to vector<64x128xf32>
    %135 = arith.select %133, %134, %131 : vector<64x128xi1>, vector<64x128xf32>
    %c31_i32 = arith.constant 31 : i32
    %136 = vector.broadcast %c31_i32 : i32 to vector<64x1xi32>
    %137 = arith.cmpi eq, %128, %136 : vector<64x1xi32>
    %c63_i32_48 = arith.constant 63 : i32
    %138 = tpu.dynamic_rotate %109 by %c63_i32_48 dim 0 : vector<64x128xf32>, i32 -> vector<64x128xf32>
    %cst_49 = arith.constant 0.000000e+00 : f32
    %139 = vector.shape_cast %137 : vector<64x1xi1> to vector<64x1xi1>
    %140 = vector.broadcast %139 : vector<64x1xi1> to vector<64x128xi1>
    %141 = vector.broadcast %cst_49 : f32 to vector<64x128xf32>
    %142 = arith.select %140, %141, %138 : vector<64x128xi1>, vector<64x128xf32>
    %143 = tpu.concatenate %135, %109, %142 in 1 : vector<64x128xf32>, vector<64x128xf32>, vector<64x128xf32> -> vector<64x384xf32>
    %cst_50 = arith.constant dense<0.000000e+00> : vector<64x128xf32>
    %144 = tpu.matmul %143, %110, %cst_50 {dimension_numbers = #tpu.dot_dimension_numbers<[1], [0], [0], [1], [0, 0, 1, 1], [], []>} : vector<64x384xf32>, vector<384x128xf32>, vector<64x128xf32> -> vector<64x128xf32>
    %145 = vector.broadcast %111 : vector<1x128xf32> to vector<64x128xf32>
    %146 = arith.addf %144, %145 : vector<64x128xf32>
    %c0_51 = arith.constant 0 : index
    %c0_52 = arith.constant 0 : index
    %147 = vector.load %arg10[%c0_51, %c0_52] : memref<128x128xf32, #tpu.memory_space<vmem>>, vector<64x128xf32>
    tpu.vector_store %arg10[%c0_51, %c0_52], %146 {strides = array<i32>} : memref<128x128xf32, #tpu.memory_space<vmem>>, vector<64x128xf32>,
    %c0_53 = arith.constant 0 : index
    %c0_54 = arith.constant 0 : index
    %148 = tpu.strided_load %arg10[%c0_53, %c0_54] {strides = array<i32: 2, 1>} : memref<128x128xf32, #tpu.memory_space<vmem>>, vector<32x128xf32>
    %c1_55 = arith.constant 1 : index
    %c0_56 = arith.constant 0 : index
    %149 = tpu.strided_load %arg10[%c1_55, %c0_56] {strides = array<i32: 2, 1>} : memref<128x128xf32, #tpu.memory_space<vmem>>, vector<32x128xf32>
    %150 = arith.maximumf %148, %149 : vector<32x128xf32>
    %cst_57 = arith.constant 0.000000e+00 : f32
    %151 = vector.broadcast %cst_57 : f32 to vector<32x128xf32>
    %152 = arith.maximumf %150, %151 : vector<32x128xf32>
    %c768_58 = arith.constant 768 : index
    %c0_59 = arith.constant 0 : index
    %153 = vector.load %arg3[%c768_58, %c0_59] : memref<1920x128xf32, #tpu.memory_space<vmem>>, vector<384x128xf32>
    %c2 = arith.constant 2 : index
    %c0_60 = arith.constant 0 : index
    %154 = vector.load %arg4[%c2, %c0_60] : memref<8x128xf32, #tpu.memory_space<vmem>>, vector<1x128xf32>
    %155 = tpu.iota {dimensions = array<i32: 0>} : vector<32x1xi32>
    %c16_i32 = arith.constant 16 : i32
    %c0_i32_61 = arith.constant 0 : i32
    %156 = arith.cmpi eq, %c16_i32, %c0_i32_61 : i32
    %c1_i32_62 = arith.constant 1 : i32
    %157 = arith.select %156, %c1_i32_62, %c16_i32 : i32
    %158 = vector.broadcast %157 : i32 to vector<32x1xi32>
    %159 = arith.remsi %155, %158 : vector<32x1xi32>
    %c0_i32_63 = arith.constant 0 : i32
    %160 = vector.broadcast %c0_i32_63 : i32 to vector<32x1xi32>
    %161 = arith.cmpi ne, %159, %160 : vector<32x1xi32>
    %c0_i32_64 = arith.constant 0 : i32
    %162 = vector.broadcast %c0_i32_64 : i32 to vector<32x1xi32>
    %163 = arith.cmpi slt, %159, %162 : vector<32x1xi32>
    %c0_i32_65 = arith.constant 0 : i32
    %164 = arith.cmpi slt, %157, %c0_i32_65 : i32
    %165 = vector.broadcast %164 : i1 to vector<32x1xi1>
    %166 = vector.broadcast %165 : vector<32x1xi1> to vector<32x1xi1>
    %167 = arith.xori %163, %166 : vector<32x1xi1>
    %168 = arith.andi %167, %161 : vector<32x1xi1>
    %169 = vector.broadcast %157 : i32 to vector<32x1xi32>
    %170 = arith.addi %159, %169 : vector<32x1xi32>
    %171 = arith.select %168, %170, %159 : vector<32x1xi1>, vector<32x1xi32>
    %c0_i32_66 = arith.constant 0 : i32
    %172 = vector.broadcast %c0_i32_66 : i32 to vector<32x1xi32>
    %173 = arith.cmpi eq, %171, %172 : vector<32x1xi32>
    %c1_i32_67 = arith.constant 1 : i32
    %174 = tpu.dynamic_rotate %152 by %c1_i32_67 dim 0 : vector<32x128xf32>, i32 -> vector<32x128xf32>
    %cst_68 = arith.constant 0.000000e+00 : f32
    %175 = vector.shape_cast %173 : vector<32x1xi1> to vector<32x1xi1>
    %176 = vector.broadcast %175 : vector<32x1xi1> to vector<32x128xi1>
    %177 = vector.broadcast %cst_68 : f32 to vector<32x128xf32>
    %178 = arith.select %176, %177, %174 : vector<32x128xi1>, vector<32x128xf32>
    %c15_i32 = arith.constant 15 : i32
    %179 = vector.broadcast %c15_i32 : i32 to vector<32x1xi32>
    %180 = arith.cmpi eq, %171, %179 : vector<32x1xi32>
    %c31_i32_69 = arith.constant 31 : i32
    %181 = tpu.dynamic_rotate %152 by %c31_i32_69 dim 0 : vector<32x128xf32>, i32 -> vector<32x128xf32>
    %cst_70 = arith.constant 0.000000e+00 : f32
    %182 = vector.shape_cast %180 : vector<32x1xi1> to vector<32x1xi1>
    %183 = vector.broadcast %182 : vector<32x1xi1> to vector<32x128xi1>
    %184 = vector.broadcast %cst_70 : f32 to vector<32x128xf32>
    %185 = arith.select %183, %184, %181 : vector<32x128xi1>, vector<32x128xf32>
    %186 = tpu.concatenate %178, %152, %185 in 1 : vector<32x128xf32>, vector<32x128xf32>, vector<32x128xf32> -> vector<32x384xf32>
    %cst_71 = arith.constant dense<0.000000e+00> : vector<32x128xf32>
    %187 = tpu.matmul %186, %153, %cst_71 {dimension_numbers = #tpu.dot_dimension_numbers<[1], [0], [0], [1], [0, 0, 1, 1], [], []>} : vector<32x384xf32>, vector<384x128xf32>, vector<32x128xf32> -> vector<32x128xf32>
    %188 = vector.broadcast %154 : vector<1x128xf32> to vector<32x128xf32>
    %189 = arith.addf %187, %188 : vector<32x128xf32>
    %c0_72 = arith.constant 0 : index
    %c0_73 = arith.constant 0 : index
    %190 = vector.load %arg10[%c0_72, %c0_73] : memref<128x128xf32, #tpu.memory_space<vmem>>, vector<32x128xf32>
    tpu.vector_store %arg10[%c0_72, %c0_73], %189 {strides = array<i32>} : memref<128x128xf32, #tpu.memory_space<vmem>>, vector<32x128xf32>,
    %c0_74 = arith.constant 0 : index
    %c0_75 = arith.constant 0 : index
    %191 = tpu.strided_load %arg10[%c0_74, %c0_75] {strides = array<i32: 2, 1>} : memref<128x128xf32, #tpu.memory_space<vmem>>, vector<16x128xf32>
    %c1_76 = arith.constant 1 : index
    %c0_77 = arith.constant 0 : index
    %192 = tpu.strided_load %arg10[%c1_76, %c0_77] {strides = array<i32: 2, 1>} : memref<128x128xf32, #tpu.memory_space<vmem>>, vector<16x128xf32>
    %193 = arith.maximumf %191, %192 : vector<16x128xf32>
    %cst_78 = arith.constant 0.000000e+00 : f32
    %194 = vector.broadcast %cst_78 : f32 to vector<16x128xf32>
    %195 = arith.maximumf %193, %194 : vector<16x128xf32>
    %c1152 = arith.constant 1152 : index
    %c0_79 = arith.constant 0 : index
    %196 = vector.load %arg3[%c1152, %c0_79] : memref<1920x128xf32, #tpu.memory_space<vmem>>, vector<384x128xf32>
    %c3 = arith.constant 3 : index
    %c0_80 = arith.constant 0 : index
    %197 = vector.load %arg4[%c3, %c0_80] : memref<8x128xf32, #tpu.memory_space<vmem>>, vector<1x128xf32>
    %198 = tpu.iota {dimensions = array<i32: 0>} : vector<16x1xi32>
    %c8_i32 = arith.constant 8 : i32
    %c0_i32_81 = arith.constant 0 : i32
    %199 = arith.cmpi eq, %c8_i32, %c0_i32_81 : i32
    %c1_i32_82 = arith.constant 1 : i32
    %200 = arith.select %199, %c1_i32_82, %c8_i32 : i32
    %201 = vector.broadcast %200 : i32 to vector<16x1xi32>
    %202 = arith.remsi %198, %201 : vector<16x1xi32>
    %c0_i32_83 = arith.constant 0 : i32
    %203 = vector.broadcast %c0_i32_83 : i32 to vector<16x1xi32>
    %204 = arith.cmpi ne, %202, %203 : vector<16x1xi32>
    %c0_i32_84 = arith.constant 0 : i32
    %205 = vector.broadcast %c0_i32_84 : i32 to vector<16x1xi32>
    %206 = arith.cmpi slt, %202, %205 : vector<16x1xi32>
    %c0_i32_85 = arith.constant 0 : i32
    %207 = arith.cmpi slt, %200, %c0_i32_85 : i32
    %208 = vector.broadcast %207 : i1 to vector<16x1xi1>
    %209 = vector.broadcast %208 : vector<16x1xi1> to vector<16x1xi1>
    %210 = arith.xori %206, %209 : vector<16x1xi1>
    %211 = arith.andi %210, %204 : vector<16x1xi1>
    %212 = vector.broadcast %200 : i32 to vector<16x1xi32>
    %213 = arith.addi %202, %212 : vector<16x1xi32>
    %214 = arith.select %211, %213, %202 : vector<16x1xi1>, vector<16x1xi32>
    %c0_i32_86 = arith.constant 0 : i32
    %215 = vector.broadcast %c0_i32_86 : i32 to vector<16x1xi32>
    %216 = arith.cmpi eq, %214, %215 : vector<16x1xi32>
    %c1_i32_87 = arith.constant 1 : i32
    %217 = tpu.dynamic_rotate %195 by %c1_i32_87 dim 0 : vector<16x128xf32>, i32 -> vector<16x128xf32>
    %cst_88 = arith.constant 0.000000e+00 : f32
    %218 = vector.shape_cast %216 : vector<16x1xi1> to vector<16x1xi1>
    %219 = vector.broadcast %218 : vector<16x1xi1> to vector<16x128xi1>
    %220 = vector.broadcast %cst_88 : f32 to vector<16x128xf32>
    %221 = arith.select %219, %220, %217 : vector<16x128xi1>, vector<16x128xf32>
    %c7_i32 = arith.constant 7 : i32
    %222 = vector.broadcast %c7_i32 : i32 to vector<16x1xi32>
    %223 = arith.cmpi eq, %214, %222 : vector<16x1xi32>
    %c15_i32_89 = arith.constant 15 : i32
    %224 = tpu.dynamic_rotate %195 by %c15_i32_89 dim 0 : vector<16x128xf32>, i32 -> vector<16x128xf32>
    %cst_90 = arith.constant 0.000000e+00 : f32
    %225 = vector.shape_cast %223 : vector<16x1xi1> to vector<16x1xi1>
    %226 = vector.broadcast %225 : vector<16x1xi1> to vector<16x128xi1>
    %227 = vector.broadcast %cst_90 : f32 to vector<16x128xf32>
    %228 = arith.select %226, %227, %224 : vector<16x128xi1>, vector<16x128xf32>
    %229 = tpu.concatenate %221, %195, %228 in 1 : vector<16x128xf32>, vector<16x128xf32>, vector<16x128xf32> -> vector<16x384xf32>
    %cst_91 = arith.constant dense<0.000000e+00> : vector<16x128xf32>
    %230 = tpu.matmul %229, %196, %cst_91 {dimension_numbers = #tpu.dot_dimension_numbers<[1], [0], [0], [1], [0, 0, 1, 1], [], []>} : vector<16x384xf32>, vector<384x128xf32>, vector<16x128xf32> -> vector<16x128xf32>
    %231 = vector.broadcast %197 : vector<1x128xf32> to vector<16x128xf32>
    %232 = arith.addf %230, %231 : vector<16x128xf32>
    %c0_92 = arith.constant 0 : index
    %c0_93 = arith.constant 0 : index
    %233 = vector.load %arg10[%c0_92, %c0_93] : memref<128x128xf32, #tpu.memory_space<vmem>>, vector<16x128xf32>
    tpu.vector_store %arg10[%c0_92, %c0_93], %232 {strides = array<i32>} : memref<128x128xf32, #tpu.memory_space<vmem>>, vector<16x128xf32>,
    %c0_94 = arith.constant 0 : index
    %c0_95 = arith.constant 0 : index
    %234 = tpu.strided_load %arg10[%c0_94, %c0_95] {strides = array<i32: 2, 1>} : memref<128x128xf32, #tpu.memory_space<vmem>>, vector<8x128xf32>
    %c1_96 = arith.constant 1 : index
    %c0_97 = arith.constant 0 : index
    %235 = tpu.strided_load %arg10[%c1_96, %c0_97] {strides = array<i32: 2, 1>} : memref<128x128xf32, #tpu.memory_space<vmem>>, vector<8x128xf32>
    %236 = arith.maximumf %234, %235 : vector<8x128xf32>
    %cst_98 = arith.constant 0.000000e+00 : f32
    %237 = vector.broadcast %cst_98 : f32 to vector<8x128xf32>
    %238 = arith.maximumf %236, %237 : vector<8x128xf32>
    %c1536 = arith.constant 1536 : index
    %c0_99 = arith.constant 0 : index
    %239 = vector.load %arg3[%c1536, %c0_99] : memref<1920x128xf32, #tpu.memory_space<vmem>>, vector<384x128xf32>
    %c4 = arith.constant 4 : index
    %c0_100 = arith.constant 0 : index
    %240 = vector.load %arg4[%c4, %c0_100] : memref<8x128xf32, #tpu.memory_space<vmem>>, vector<1x128xf32>
    %241 = tpu.iota {dimensions = array<i32: 0>} : vector<8x1xi32>
    %c4_i32 = arith.constant 4 : i32
    %c0_i32_101 = arith.constant 0 : i32
    %242 = arith.cmpi eq, %c4_i32, %c0_i32_101 : i32
    %c1_i32_102 = arith.constant 1 : i32
    %243 = arith.select %242, %c1_i32_102, %c4_i32 : i32
    %244 = vector.broadcast %243 : i32 to vector<8x1xi32>
    %245 = arith.remsi %241, %244 : vector<8x1xi32>
    %c0_i32_103 = arith.constant 0 : i32
    %246 = vector.broadcast %c0_i32_103 : i32 to vector<8x1xi32>
    %247 = arith.cmpi ne, %245, %246 : vector<8x1xi32>
    %c0_i32_104 = arith.constant 0 : i32
    %248 = vector.broadcast %c0_i32_104 : i32 to vector<8x1xi32>
    %249 = arith.cmpi slt, %245, %248 : vector<8x1xi32>
    %c0_i32_105 = arith.constant 0 : i32
    %250 = arith.cmpi slt, %243, %c0_i32_105 : i32
    %251 = vector.broadcast %250 : i1 to vector<8x1xi1>
    %252 = vector.broadcast %251 : vector<8x1xi1> to vector<8x1xi1>
    %253 = arith.xori %249, %252 : vector<8x1xi1>
    %254 = arith.andi %253, %247 : vector<8x1xi1>
    %255 = vector.broadcast %243 : i32 to vector<8x1xi32>
    %256 = arith.addi %245, %255 : vector<8x1xi32>
    %257 = arith.select %254, %256, %245 : vector<8x1xi1>, vector<8x1xi32>
    %c0_i32_106 = arith.constant 0 : i32
    %258 = vector.broadcast %c0_i32_106 : i32 to vector<8x1xi32>
    %259 = arith.cmpi eq, %257, %258 : vector<8x1xi32>
    %c1_i32_107 = arith.constant 1 : i32
    %260 = tpu.dynamic_rotate %238 by %c1_i32_107 dim 0 : vector<8x128xf32>, i32 -> vector<8x128xf32>
    %cst_108 = arith.constant 0.000000e+00 : f32
    %261 = vector.shape_cast %259 : vector<8x1xi1> to vector<8x1xi1>
    %262 = vector.broadcast %261 : vector<8x1xi1> to vector<8x128xi1>
    %263 = vector.broadcast %cst_108 : f32 to vector<8x128xf32>
    %264 = arith.select %262, %263, %260 : vector<8x128xi1>, vector<8x128xf32>
    %c3_i32 = arith.constant 3 : i32
    %265 = vector.broadcast %c3_i32 : i32 to vector<8x1xi32>
    %266 = arith.cmpi eq, %257, %265 : vector<8x1xi32>
    %c7_i32_109 = arith.constant 7 : i32
    %267 = tpu.dynamic_rotate %238 by %c7_i32_109 dim 0 : vector<8x128xf32>, i32 -> vector<8x128xf32>
    %cst_110 = arith.constant 0.000000e+00 : f32
    %268 = vector.shape_cast %266 : vector<8x1xi1> to vector<8x1xi1>
    %269 = vector.broadcast %268 : vector<8x1xi1> to vector<8x128xi1>
    %270 = vector.broadcast %cst_110 : f32 to vector<8x128xf32>
    %271 = arith.select %269, %270, %267 : vector<8x128xi1>, vector<8x128xf32>
    %272 = tpu.concatenate %264, %238, %271 in 1 : vector<8x128xf32>, vector<8x128xf32>, vector<8x128xf32> -> vector<8x384xf32>
    %cst_111 = arith.constant dense<0.000000e+00> : vector<8x128xf32>
    %273 = tpu.matmul %272, %239, %cst_111 {dimension_numbers = #tpu.dot_dimension_numbers<[1], [0], [0], [1], [0, 0, 1, 1], [], []>} : vector<8x384xf32>, vector<384x128xf32>, vector<8x128xf32> -> vector<8x128xf32>
    %274 = vector.broadcast %240 : vector<1x128xf32> to vector<8x128xf32>
    %275 = arith.addf %273, %274 : vector<8x128xf32>
    %c0_112 = arith.constant 0 : index
    %c0_113 = arith.constant 0 : index
    %276 = vector.load %arg10[%c0_112, %c0_113] : memref<128x128xf32, #tpu.memory_space<vmem>>, vector<8x128xf32>
    tpu.vector_store %arg10[%c0_112, %c0_113], %275 {strides = array<i32>} : memref<128x128xf32, #tpu.memory_space<vmem>>, vector<8x128xf32>,
    %c0_114 = arith.constant 0 : index
    %c0_115 = arith.constant 0 : index
    %277 = tpu.strided_load %arg10[%c0_114, %c0_115] {strides = array<i32: 2, 1>} : memref<128x128xf32, #tpu.memory_space<vmem>>, vector<4x128xf32>
    %c1_116 = arith.constant 1 : index
    %c0_117 = arith.constant 0 : index
    %278 = tpu.strided_load %arg10[%c1_116, %c0_117] {strides = array<i32: 2, 1>} : memref<128x128xf32, #tpu.memory_space<vmem>>, vector<4x128xf32>
    %279 = arith.maximumf %277, %278 : vector<4x128xf32>
    %cst_118 = arith.constant 0.000000e+00 : f32
    %280 = vector.broadcast %cst_118 : f32 to vector<4x128xf32>
    %281 = arith.maximumf %279, %280 : vector<4x128xf32>
    %282 = vector.shape_cast %281 : vector<4x128xf32> to vector<2x256xf32>
    %c0_119 = arith.constant 0 : index
    %c0_120 = arith.constant 0 : index
    %283 = vector.load %arg5[%c0_119, %c0_120] : memref<256x64xf32, #tpu.memory_space<vmem>>, vector<256x64xf32>
    %cst_121 = arith.constant dense<0.000000e+00> : vector<2x64xf32>
    %284 = tpu.matmul %282, %283, %cst_121 {dimension_numbers = #tpu.dot_dimension_numbers<[1], [0], [0], [1], [0, 0, 1, 1], [], []>} : vector<2x256xf32>, vector<256x64xf32>, vector<2x64xf32> -> vector<2x64xf32>
    %c0_122 = arith.constant 0 : index
    %c0_123 = arith.constant 0 : index
    %285 = vector.load %arg6[%c0_122, %c0_123] : memref<1x64xf32, #tpu.memory_space<vmem>>, vector<1x64xf32>
    %286 = vector.broadcast %285 : vector<1x64xf32> to vector<2x64xf32>
    %287 = arith.addf %284, %286 : vector<2x64xf32>
    %cst_124 = arith.constant 0.000000e+00 : f32
    %288 = vector.broadcast %cst_124 : f32 to vector<2x64xf32>
    %289 = arith.maximumf %287, %288 : vector<2x64xf32>
    %c0_125 = arith.constant 0 : index
    %c0_126 = arith.constant 0 : index
    %290 = vector.load %arg7[%c0_125, %c0_126] : memref<64x16xf32, #tpu.memory_space<vmem>>, vector<64x16xf32>
    %cst_127 = arith.constant dense<0.000000e+00> : vector<2x16xf32>
    %291 = tpu.matmul %289, %290, %cst_127 {dimension_numbers = #tpu.dot_dimension_numbers<[1], [0], [0], [1], [0, 0, 1, 1], [], []>} : vector<2x64xf32>, vector<64x16xf32>, vector<2x16xf32> -> vector<2x16xf32>
    %c0_128 = arith.constant 0 : index
    %c0_129 = arith.constant 0 : index
    %292 = vector.load %arg8[%c0_128, %c0_129] : memref<1x16xf32, #tpu.memory_space<vmem>>, vector<1x16xf32>
    %293 = vector.broadcast %292 : vector<1x16xf32> to vector<2x16xf32>
    %294 = arith.addf %291, %293 : vector<2x16xf32>
    %c0_130 = arith.constant 0 : index
    %c0_131 = arith.constant 0 : index
    %295 = vector.load %arg9[%c0_130, %c0_131] : memref<2x16xf32, #tpu.memory_space<vmem>>, vector<2x16xf32>
    tpu.vector_store %arg9[%c0_130, %c0_131], %294 {strides = array<i32>} : memref<2x16xf32, #tpu.memory_space<vmem>>, vector<2x16xf32>,
    return
  }
  func.func @transform_0(%arg0: i32) -> (i32, i32) {
    %c0_i32 = arith.constant 0 : i32
    %c0_i32_0 = arith.constant 0 : i32
    return %arg0, %c0_i32 : i32, i32
  }
  func.func @transform_1(%arg0: i32) -> (i32, i32) {
    %c0_i32 = arith.constant 0 : i32
    %c0_i32_0 = arith.constant 0 : i32
    %c0_i32_1 = arith.constant 0 : i32
    return %c0_i32, %c0_i32_0 : i32, i32
  }
  func.func @transform_2(%arg0: i32) -> (i32, i32) {
    %c0_i32 = arith.constant 0 : i32
    %c0_i32_0 = arith.constant 0 : i32
    %c0_i32_1 = arith.constant 0 : i32
    return %c0_i32, %c0_i32_0 : i32, i32
  }
  func.func @transform_3(%arg0: i32) -> (i32, i32) {
    %c0_i32 = arith.constant 0 : i32
    %c0_i32_0 = arith.constant 0 : i32
    %c0_i32_1 = arith.constant 0 : i32
    return %c0_i32, %c0_i32_0 : i32, i32
  }
  func.func @transform_4(%arg0: i32) -> (i32, i32) {
    %c0_i32 = arith.constant 0 : i32
    %c0_i32_0 = arith.constant 0 : i32
    %c0_i32_1 = arith.constant 0 : i32
    return %c0_i32, %c0_i32_0 : i32, i32
  }
  func.func @transform_5(%arg0: i32) -> (i32, i32) {
    %c0_i32 = arith.constant 0 : i32
    %c0_i32_0 = arith.constant 0 : i32
    %c0_i32_1 = arith.constant 0 : i32
    return %c0_i32, %c0_i32_0 : i32, i32
  }
  func.func @transform_6(%arg0: i32) -> (i32, i32) {
    %c0_i32 = arith.constant 0 : i32
    %c0_i32_0 = arith.constant 0 : i32
    %c0_i32_1 = arith.constant 0 : i32
    return %c0_i32, %c0_i32_0 : i32, i32
  }
  func.func @transform_7(%arg0: i32) -> (i32, i32) {
    %c0_i32 = arith.constant 0 : i32
    %c0_i32_0 = arith.constant 0 : i32
    %c0_i32_1 = arith.constant 0 : i32
    return %c0_i32, %c0_i32_0 : i32, i32
  }
  func.func @transform_8(%arg0: i32) -> (i32, i32) {
    %c0_i32 = arith.constant 0 : i32
    %c0_i32_0 = arith.constant 0 : i32
    return %arg0, %c0_i32 : i32, i32
  }
}

</mosaic_0001>

<llo_original>
// kernel: tpu_custom_call.1
$region0: #{tpu_custom_call.1}
  #allocation0 [shape = 'u32[]', space=smem, size = 0x4, offset = 0x4, fixed_abs, tag = 'smem constant byte address 0x4 - core index']
  #allocation1 [shape = 'u32[144,128]{1,0:T(1,128)}', space=vmem, size = 0x12000, scoped, tag = 'internal scratch']
  #allocation2 [shape = 'f32[128,128]{1,0:T(8,128)}', space=vmem, size = 0x10000, scoped, tag = 'scratch operand']
  %s0 = inlined_call_operand.vmem [shape: s32[128,8], index: 0, kind: input, shape index: {}]
  %s1 = inlined_call_operand.hbm [shape: f32[1024,128], index: 1, kind: input, shape index: {}]
  %s2 = inlined_call_operand.hbm [shape: f32[1920,128], index: 2, kind: input, shape index: {}]
  %s3 = inlined_call_operand.vmem [shape: f32[8,128], index: 3, kind: input, shape index: {}]
  %s4 = inlined_call_operand.vmem [shape: f32[256,64], index: 4, kind: input, shape index: {}]
  %s5 = inlined_call_operand.vmem [shape: f32[1,64], index: 5, kind: input, shape index: {}]
  %s6 = inlined_call_operand.vmem [shape: f32[64,16], index: 6, kind: input, shape index: {}]
  %s7 = inlined_call_operand.vmem [shape: f32[1,16], index: 7, kind: input, shape index: {}]
  %s8 = inlined_call_operand.hbm [shape: f32[2,16], index: 8, kind: output, shape index: {}]
  %s9 = sld [smem:[#allocation0]]
  $region50: #{tpu_custom_call.1} parent=0
    _
  %s11 = ssub.s32 1, %s9
  %s12 = scalar_select 0, %s11, %s9
  $region1: #{tpu_custom_call.1} parent=0
    #allocation3 [shape = 'u8[524288]{0}', space=vmem, size = 0x80000, scoped, tag = 'input window, operand 1, single buffered']
    #allocation4 [shape = 's32[1]{0}', space=sflag, size = 0x4, scoped, tag = 'scoped memory for tpu_custom_call.1']
    #allocation5 [shape = 's32[1]{0}', space=sflag, size = 0x4, scoped, tag = 'scoped memory for tpu_custom_call.1']
    #allocation6 [shape = 'u8[983040]{0}', space=vmem, size = 0xf0000, scoped, tag = 'input window, operand 2, single buffered']
    #allocation7 [shape = 's32[1]{0}', space=sflag, size = 0x4, scoped, tag = 'scoped memory for tpu_custom_call.1']
    #allocation8 [shape = 'u8[1024]{0}', space=vmem, size = 0x400, scoped, tag = 'output window, operand 0, single buffered']
    %13 = vsyncpa [#allocation4], 0
    %14 = vsyncpa [#allocation7], 0
    %15 = vsyncpa [#allocation5], 0
    // Predicated region
    $region2: #{tpu_custom_call.1} parent=1 // pred_check
      _
    $region3: #{tpu_custom_call.1} parent=1 // pred_check_branch
      %17 = sbr.rel (0) target = $region5
    $region4: #{tpu_custom_call.1} parent=1 // pred_region
      _
    $region5: #{tpu_custom_call.1} parent=1 // pred_fallthru
      _
    // Predicated region
    $region6: #{tpu_custom_call.1} parent=1 // pred_check
      _
    $region7: #{tpu_custom_call.1} parent=1 // pred_check_branch
      %19 = sbr.rel (0) target = $region9
    $region8: #{tpu_custom_call.1} parent=1 // pred_region
      %s21 = ssub.s32 16384, 16384
      %22 = vsyncadd [#allocation4], %s21
      %s23 = sshll.u32 [#allocation3], 4
      %s24 = int_to_ptr.vmem [resolvable:$true] %s23
      %29 = dma.hbm_to_vmem [thread:$0]  %s1, 16384, %s24, [#allocation4], 128, 128, 8
    $region9: #{tpu_custom_call.1} parent=1 // pred_fallthru
      _
    // Predicated region
    $region10: #{tpu_custom_call.1} parent=1 // pred_check
      _
    $region11: #{tpu_custom_call.1} parent=1 // pred_check_branch
      %31 = sbr.rel (0) target = $region13
    $region12: #{tpu_custom_call.1} parent=1 // pred_region
      %s33 = ssub.s32 30720, 30720
      %34 = vsyncadd [#allocation7], %s33
      %s35 = sshll.u32 [#allocation6], 4
      %s36 = int_to_ptr.vmem [resolvable:$true] %s35
      %41 = dma.hbm_to_vmem [thread:$0]  %s2, 30720, %s36, [#allocation7], 128, 128, 8
    $region13: #{tpu_custom_call.1} parent=1 // pred_fallthru
      _
    // Predicated region
    $region14: #{tpu_custom_call.1} parent=1 // pred_check
      _
    $region15: #{tpu_custom_call.1} parent=1 // pred_check_branch
      %43 = sbr.rel (0) target = $region17
    $region16: #{tpu_custom_call.1} parent=1 // pred_region
      _
    $region17: #{tpu_custom_call.1} parent=1 // pred_fallthru
      _
    // Predicated region
    $region18: #{tpu_custom_call.1} parent=1 // pred_check
      _
    $region19: #{tpu_custom_call.1} parent=1 // pred_check_branch
      %45 = sbr.rel (0) target = $region21
    $region20: #{tpu_custom_call.1} parent=1 // pred_region
      _
    $region21: #{tpu_custom_call.1} parent=1 // pred_fallthru
      _
    // Predicated region
    $region22: #{tpu_custom_call.1} parent=1 // pred_check
      _
    $region23: #{tpu_custom_call.1} parent=1 // pred_check_branch
      %47 = sbr.rel (0) target = $region25
    $region24: #{tpu_custom_call.1} parent=1 // pred_region
      _
    $region25: #{tpu_custom_call.1} parent=1 // pred_fallthru
      _
    // Predicated region
    $region26: #{tpu_custom_call.1} parent=1 // pred_check
      _
    $region27: #{tpu_custom_call.1} parent=1 // pred_check_branch
      %49 = sbr.rel (0) target = $region29
    $region28: #{tpu_custom_call.1} parent=1 // pred_region
      _
    $region29: #{tpu_custom_call.1} parent=1 // pred_fallthru
      _
    // Predicated region
    $region30: #{tpu_custom_call.1} parent=1 // pred_check
      _
    $region31: #{tpu_custom_call.1} parent=1 // pred_check_branch
      %51 = sbr.rel (0) target = $region33
    $region32: #{tpu_custom_call.1} parent=1 // pred_region
      _
    $region33: #{tpu_custom_call.1} parent=1 // pred_fallthru
      _
    // Predicated region
    $region34: #{tpu_custom_call.1} parent=1 // pred_check
      _
    $region35: #{tpu_custom_call.1} parent=1 // pred_check_branch
      %53 = sbr.rel (0) target = $region37
    $region36: #{tpu_custom_call.1} parent=1 // pred_region
      %54 = dma.done [#allocation4], 16384
    $region37: #{tpu_custom_call.1} parent=1 // pred_fallthru
      _
    // Predicated region
    $region38: #{tpu_custom_call.1} parent=1 // pred_check
      _
    $region39: #{tpu_custom_call.1} parent=1 // pred_check_branch
      %56 = sbr.rel (0) target = $region41
    $region40: #{tpu_custom_call.1} parent=1 // pred_region
      %57 = dma.done [#allocation7], 30720
    $region41: #{tpu_custom_call.1} parent=1 // pred_fallthru
      _
    %v58 = vld [vmem:[%s0] sm:$0xff]
    %v59 = vld [vmem:[%s0 + $0x8] sm:$0xff]
    %v60 = vld [vmem:[%s0 + $0x10] sm:$0xff]
    %v61 = vld [vmem:[%s0 + $0x18] sm:$0xff]
    %v62 = vld [vmem:[%s0 + $0x20] sm:$0xff]
    %v63 = vld [vmem:[%s0 + $0x28] sm:$0xff]
    %v64 = vld [vmem:[%s0 + $0x30] sm:$0xff]
    %v65 = vld [vmem:[%s0 + $0x38] sm:$0xff]
    %v66 = vld [vmem:[%s0 + $0x40] sm:$0xff]
    %v67 = vld [vmem:[%s0 + $0x48] sm:$0xff]
    %v68 = vld [vmem:[%s0 + $0x50] sm:$0xff]
    %v69 = vld [vmem:[%s0 + $0x58] sm:$0xff]
    %v70 = vld [vmem:[%s0 + $0x60] sm:$0xff]
    %v71 = vld [vmem:[%s0 + $0x68] sm:$0xff]
    %v72 = vld [vmem:[%s0 + $0x70] sm:$0xff]
    %v73 = vld [vmem:[%s0 + $0x78] sm:$0xff]
    %v74 = vlaneseq
    %v75 = vand.u32 %v74, 127
    %76 = vset.pattern.permute.xlu0 0
    %77 = vperm.xlu0 %76, %v58
    %v78 = vpop.permute.xlu0 %77
    %79 = vset.pattern.permute.xlu0 0
    %80 = vperm.xlu0 %79, %v59
    %v81 = vpop.permute.xlu0 %80
    %82 = vset.pattern.permute.xlu0 0
    %83 = vperm.xlu0 %82, %v60
    %v84 = vpop.permute.xlu0 %83
    %85 = vset.pattern.permute.xlu0 0
    %86 = vperm.xlu0 %85, %v61
    %v87 = vpop.permute.xlu0 %86
    %88 = vset.pattern.permute.xlu0 0
    %89 = vperm.xlu0 %88, %v62
    %v90 = vpop.permute.xlu0 %89
    %91 = vset.pattern.permute.xlu0 0
    %92 = vperm.xlu0 %91, %v63
    %v93 = vpop.permute.xlu0 %92
    %94 = vset.pattern.permute.xlu0 0
    %95 = vperm.xlu0 %94, %v64
    %v96 = vpop.permute.xlu0 %95
    %97 = vset.pattern.permute.xlu0 0
    %98 = vperm.xlu0 %97, %v65
    %v99 = vpop.permute.xlu0 %98
    %100 = vset.pattern.permute.xlu0 0
    %101 = vperm.xlu0 %100, %v66
    %v102 = vpop.permute.xlu0 %101
    %103 = vset.pattern.permute.xlu0 0
    %104 = vperm.xlu0 %103, %v67
    %v105 = vpop.permute.xlu0 %104
    %106 = vset.pattern.permute.xlu0 0
    %107 = vperm.xlu0 %106, %v68
    %v108 = vpop.permute.xlu0 %107
    %109 = vset.pattern.permute.xlu0 0
    %110 = vperm.xlu0 %109, %v69
    %v111 = vpop.permute.xlu0 %110
    %112 = vset.pattern.permute.xlu0 0
    %113 = vperm.xlu0 %112, %v70
    %v114 = vpop.permute.xlu0 %113
    %115 = vset.pattern.permute.xlu0 0
    %116 = vperm.xlu0 %115, %v71
    %v117 = vpop.permute.xlu0 %116
    %118 = vset.pattern.permute.xlu0 0
    %119 = vperm.xlu0 %118, %v72
    %v120 = vpop.permute.xlu0 %119
    %121 = vset.pattern.permute.xlu0 0
    %122 = vperm.xlu0 %121, %v73
    %v123 = vpop.permute.xlu0 %122
    %vm124 = vcmp.eq.s32.totalorder %v75, %v78
    %vm125 = vcmp.eq.s32.totalorder %v75, %v81
    %vm126 = vcmp.eq.s32.totalorder %v75, %v84
    %vm127 = vcmp.eq.s32.totalorder %v75, %v87
    %vm128 = vcmp.eq.s32.totalorder %v75, %v90
    %vm129 = vcmp.eq.s32.totalorder %v75, %v93
    %vm130 = vcmp.eq.s32.totalorder %v75, %v96
    %vm131 = vcmp.eq.s32.totalorder %v75, %v99
    %vm132 = vcmp.eq.s32.totalorder %v75, %v102
    %vm133 = vcmp.eq.s32.totalorder %v75, %v105
    %vm134 = vcmp.eq.s32.totalorder %v75, %v108
    %vm135 = vcmp.eq.s32.totalorder %v75, %v111
    %vm136 = vcmp.eq.s32.totalorder %v75, %v114
    %vm137 = vcmp.eq.s32.totalorder %v75, %v117
    %vm138 = vcmp.eq.s32.totalorder %v75, %v120
    %vm139 = vcmp.eq.s32.totalorder %v75, %v123
    %v140 = vsel %vm124, 1, 0
    %v141 = vsel %vm125, 1, 0
    %v142 = vsel %vm126, 1, 0
    %v143 = vsel %vm127, 1, 0
    %v144 = vsel %vm128, 1, 0
    %v145 = vsel %vm129, 1, 0
    %v146 = vsel %vm130, 1, 0
    %v147 = vsel %vm131, 1, 0
    %v148 = vsel %vm132, 1, 0
    %v149 = vsel %vm133, 1, 0
    %v150 = vsel %vm134, 1, 0
    %v151 = vsel %vm135, 1, 0
    %v152 = vsel %vm136, 1, 0
    %v153 = vsel %vm137, 1, 0
    %v154 = vsel %vm138, 1, 0
    %v155 = vsel %vm139, 1, 0
    %v156 = vcvt.s32.f32 %v140
    %v157 = vcvt.s32.f32 %v141
    %v158 = vcvt.s32.f32 %v142
    %v159 = vcvt.s32.f32 %v143
    %v160 = vcvt.s32.f32 %v144
    %v161 = vcvt.s32.f32 %v145
    %v162 = vcvt.s32.f32 %v146
    %v163 = vcvt.s32.f32 %v147
    %v164 = vcvt.s32.f32 %v148
    %v165 = vcvt.s32.f32 %v149
    %v166 = vcvt.s32.f32 %v150
    %v167 = vcvt.s32.f32 %v151
    %v168 = vcvt.s32.f32 %v152
    %v169 = vcvt.s32.f32 %v153
    %v170 = vcvt.s32.f32 %v154
    %v171 = vcvt.s32.f32 %v155
    %v172 = vld [vmem:[#allocation3] sm:$0xff]
    %v173 = vld [vmem:[#allocation3 + $0x8] sm:$0xff]
    %v174 = vld [vmem:[#allocation3 + $0x10] sm:$0xff]
    %v175 = vld [vmem:[#allocation3 + $0x18] sm:$0xff]
    %v176 = vld [vmem:[#allocation3 + $0x20] sm:$0xff]
    %v177 = vld [vmem:[#allocation3 + $0x28] sm:$0xff]
    %v178 = vld [vmem:[#allocation3 + $0x30] sm:$0xff]
    %v179 = vld [vmem:[#allocation3 + $0x38] sm:$0xff]
    %v180 = vld [vmem:[#allocation3 + $0x40] sm:$0xff]
    %v181 = vld [vmem:[#allocation3 + $0x48] sm:$0xff]
    %v182 = vld [vmem:[#allocation3 + $0x50] sm:$0xff]
    %v183 = vld [vmem:[#allocation3 + $0x58] sm:$0xff]
    %v184 = vld [vmem:[#allocation3 + $0x60] sm:$0xff]
    %v185 = vld [vmem:[#allocation3 + $0x68] sm:$0xff]
    %v186 = vld [vmem:[#allocation3 + $0x70] sm:$0xff]
    %v187 = vld [vmem:[#allocation3 + $0x78] sm:$0xff]
    %188 = vset.pattern.permute.xlu0 1
    %189 = vperm.xlu0 %188, %v58
    %v190 = vpop.permute.xlu0 %189
    %191 = vset.pattern.permute.xlu0 1
    %192 = vperm.xlu0 %191, %v59
    %v193 = vpop.permute.xlu0 %192
    %194 = vset.pattern.permute.xlu0 1
    %195 = vperm.xlu0 %194, %v60
    %v196 = vpop.permute.xlu0 %195
    %197 = vset.pattern.permute.xlu0 1
    %198 = vperm.xlu0 %197, %v61
    %v199 = vpop.permute.xlu0 %198
    %200 = vset.pattern.permute.xlu0 1
    %201 = vperm.xlu0 %200, %v62
    %v202 = vpop.permute.xlu0 %201
    %203 = vset.pattern.permute.xlu0 1
    %204 = vperm.xlu0 %203, %v63
    %v205 = vpop.permute.xlu0 %204
    %206 = vset.pattern.permute.xlu0 1
    %207 = vperm.xlu0 %206, %v64
    %v208 = vpop.permute.xlu0 %207
    %209 = vset.pattern.permute.xlu0 1
    %210 = vperm.xlu0 %209, %v65
    %v211 = vpop.permute.xlu0 %210
    %212 = vset.pattern.permute.xlu0 1
    %213 = vperm.xlu0 %212, %v66
    %v214 = vpop.permute.xlu0 %213
    %215 = vset.pattern.permute.xlu0 1
    %216 = vperm.xlu0 %215, %v67
    %v217 = vpop.permute.xlu0 %216
    %218 = vset.pattern.permute.xlu0 1
    %219 = vperm.xlu0 %218, %v68
    %v220 = vpop.permute.xlu0 %219
    %221 = vset.pattern.permute.xlu0 1
    %222 = vperm.xlu0 %221, %v69
    %v223 = vpop.permute.xlu0 %222
    %224 = vset.pattern.permute.xlu0 1
    %225 = vperm.xlu0 %224, %v70
    %v226 = vpop.permute.xlu0 %225
    %227 = vset.pattern.permute.xlu0 1
    %228 = vperm.xlu0 %227, %v71
    %v229 = vpop.permute.xlu0 %228
    %230 = vset.pattern.permute.xlu0 1
    %231 = vperm.xlu0 %230, %v72
    %v232 = vpop.permute.xlu0 %231
    %233 = vset.pattern.permute.xlu0 1
    %234 = vperm.xlu0 %233, %v73
    %v235 = vpop.permute.xlu0 %234
    %vm236 = vcmp.eq.s32.totalorder %v75, %v190
    %vm237 = vcmp.eq.s32.totalorder %v75, %v193
    %vm238 = vcmp.eq.s32.totalorder %v75, %v196
    %vm239 = vcmp.eq.s32.totalorder %v75, %v199
    %vm240 = vcmp.eq.s32.totalorder %v75, %v202
    %vm241 = vcmp.eq.s32.totalorder %v75, %v205
    %vm242 = vcmp.eq.s32.totalorder %v75, %v208
    %vm243 = vcmp.eq.s32.totalorder %v75, %v211
    %vm244 = vcmp.eq.s32.totalorder %v75, %v214
    %vm245 = vcmp.eq.s32.totalorder %v75, %v217
    %vm246 = vcmp.eq.s32.totalorder %v75, %v220
    %vm247 = vcmp.eq.s32.totalorder %v75, %v223
    %vm248 = vcmp.eq.s32.totalorder %v75, %v226
    %vm249 = vcmp.eq.s32.totalorder %v75, %v229
    %vm250 = vcmp.eq.s32.totalorder %v75, %v232
    %vm251 = vcmp.eq.s32.totalorder %v75, %v235
    %v252 = vsel %vm236, 1, 0
    %v253 = vsel %vm237, 1, 0
    %v254 = vsel %vm238, 1, 0
    %v255 = vsel %vm239, 1, 0
    %v256 = vsel %vm240, 1, 0
    %v257 = vsel %vm241, 1, 0
    %v258 = vsel %vm242, 1, 0
    %v259 = vsel %vm243, 1, 0
    %v260 = vsel %vm244, 1, 0
    %v261 = vsel %vm245, 1, 0
    %v262 = vsel %vm246, 1, 0
    %v263 = vsel %vm247, 1, 0
    %v264 = vsel %vm248, 1, 0
    %v265 = vsel %vm249, 1, 0
    %v266 = vsel %vm250, 1, 0
    %v267 = vsel %vm251, 1, 0
    %v268 = vcvt.s32.f32 %v252
    %v269 = vcvt.s32.f32 %v253
    %v270 = vcvt.s32.f32 %v254
    %v271 = vcvt.s32.f32 %v255
    %v272 = vcvt.s32.f32 %v256
    %v273 = vcvt.s32.f32 %v257
    %v274 = vcvt.s32.f32 %v258
    %v275 = vcvt.s32.f32 %v259
    %v276 = vcvt.s32.f32 %v260
    %v277 = vcvt.s32.f32 %v261
    %v278 = vcvt.s32.f32 %v262
    %v279 = vcvt.s32.f32 %v263
    %v280 = vcvt.s32.f32 %v264
    %v281 = vcvt.s32.f32 %v265
    %v282 = vcvt.s32.f32 %v266
    %v283 = vcvt.s32.f32 %v267
    %v284 = vld [vmem:[#allocation3 + $0x80] sm:$0xff]
    %v285 = vld [vmem:[#allocation3 + $0x88] sm:$0xff]
    %v286 = vld [vmem:[#allocation3 + $0x90] sm:$0xff]
    %v287 = vld [vmem:[#allocation3 + $0x98] sm:$0xff]
    %v288 = vld [vmem:[#allocation3 + $0xa0] sm:$0xff]
    %v289 = vld [vmem:[#allocation3 + $0xa8] sm:$0xff]
    %v290 = vld [vmem:[#allocation3 + $0xb0] sm:$0xff]
    %v291 = vld [vmem:[#allocation3 + $0xb8] sm:$0xff]
    %v292 = vld [vmem:[#allocation3 + $0xc0] sm:$0xff]
    %v293 = vld [vmem:[#allocation3 + $0xc8] sm:$0xff]
    %v294 = vld [vmem:[#allocation3 + $0xd0] sm:$0xff]
    %v295 = vld [vmem:[#allocation3 + $0xd8] sm:$0xff]
    %v296 = vld [vmem:[#allocation3 + $0xe0] sm:$0xff]
    %v297 = vld [vmem:[#allocation3 + $0xe8] sm:$0xff]
    %v298 = vld [vmem:[#allocation3 + $0xf0] sm:$0xff]
    %v299 = vld [vmem:[#allocation3 + $0xf8] sm:$0xff]
    %300 = vmatprep.subr.mxu0 0.0
    %301 = vmatpush1.msra.mxu0 %v284
    %302 = vmatprep.subr.mxu0 0.0
    %303 = vmatpush1.msra.mxu0 %v285
    %304 = vmatprep.subr.mxu0 0.0
    %305 = vmatpush1.msra.mxu0 %v286
    %306 = vmatprep.subr.mxu0 0.0
    %307 = vmatpush1.msra.mxu0 %v287
    %308 = vmatprep.subr.mxu0 0.0
    %309 = vmatpush1.msra.mxu0 %v288
    %310 = vmatprep.subr.mxu0 0.0
    %311 = vmatpush1.msra.mxu0 %v289
    %312 = vmatprep.subr.mxu0 0.0
    %313 = vmatpush1.msra.mxu0 %v290
    %314 = vmatprep.subr.mxu0 0.0
    %315 = vmatpush1.msra.mxu0 %v291
    %316 = vmatprep.subr.mxu0 0.0
    %317 = vmatpush1.msra.mxu0 %v292
    %318 = vmatprep.subr.mxu0 0.0
    %319 = vmatpush1.msra.mxu0 %v293
    %320 = vmatprep.subr.mxu0 0.0
    %321 = vmatpush1.msra.mxu0 %v294
    %322 = vmatprep.subr.mxu0 0.0
    %323 = vmatpush1.msra.mxu0 %v295
    %324 = vmatprep.subr.mxu0 0.0
    %325 = vmatpush1.msra.mxu0 %v296
    %326 = vmatprep.subr.mxu0 0.0
    %327 = vmatpush1.msra.mxu0 %v297
    %328 = vmatprep.subr.mxu0 0.0
    %329 = vmatpush1.msra.mxu0 %v298
    %330 = vmatprep.subr.mxu0 0.0
    %331 = vmatpush1.msra.mxu0 %v299
    %332 = vmatprep.subr.mxu0 0.0
    %333 = vmatpush1.msra.mxu0 0.0
    %334 = vmatprep.subr.mxu0 0.0
    %335 = vmatpush1.msra.mxu0 0.0
    %336 = vmatprep.subr.mxu0 0.0
    %337 = vmatpush1.msra.mxu0 0.0
    %338 = vmatprep.subr.mxu0 0.0
    %339 = vmatpush1.msra.mxu0 0.0
    %340 = vmatprep.subr.mxu0 0.0
    %341 = vmatpush1.msra.mxu0 0.0
    %342 = vmatprep.subr.mxu0 0.0
    %343 = vmatpush1.msra.mxu0 0.0
    %344 = vmatprep.subr.mxu0 0.0
    %345 = vmatpush1.msra.mxu0 0.0
    %346 = vmatprep.subr.mxu0 0.0
    %347 = vmatpush1.msra.mxu0 0.0
    %348 = vmatprep.subr.mxu0 0.0
    %349 = vmatpush1.msra.mxu0 0.0
    %350 = vmatprep.subr.mxu0 0.0
    %351 = vmatpush1.msra.mxu0 0.0
    %352 = vmatprep.subr.mxu0 0.0
    %353 = vmatpush1.msra.mxu0 0.0
    %354 = vmatprep.subr.mxu0 0.0
    %355 = vmatpush1.msra.mxu0 0.0
    %356 = vmatprep.subr.mxu0 0.0
    %357 = vmatpush1.msra.mxu0 0.0
    %358 = vmatprep.subr.mxu0 0.0
    %359 = vmatpush1.msra.mxu0 0.0
    %360 = vmatprep.subr.mxu0 0.0
    %361 = vmatpush1.msra.mxu0 0.0
    %362 = vmatprep.subr.mxu0 0.0
    %363 = vmatpush1.msra.mxu0 0.0
    %364 = vmatprep.mubr.f32.mxu0 0.0
    %365 = vmatmul.mubr.f32.gmra.mrb[0].mxu0 %v268
    %v366 = vpop.f32.mrb[0].mxu0
    %v367 = vadd.f32 0.0, %v366
    %v368 = vpop.f32.mrb[0].mxu0
    %369 = vmatprep.mubr.f32.mxu0 0.0
    %370 = vmatmul.mubr.f32.gmra.mrb[0].mxu0 %v269
    %v371 = vpop.f32.mrb[0].mxu0
    %v372 = vadd.f32 0.0, %v371
    %v373 = vpop.f32.mrb[0].mxu0
    %374 = vmatprep.mubr.f32.mxu0 0.0
    %375 = vmatmul.mubr.f32.gmra.mrb[0].mxu0 %v270
    %v376 = vpop.f32.mrb[0].mxu0
    %v377 = vadd.f32 0.0, %v376
    %v378 = vpop.f32.mrb[0].mxu0
    %379 = vmatprep.mubr.f32.mxu0 0.0
    %380 = vmatmul.mubr.f32.gmra.mrb[0].mxu0 %v271
    %v381 = vpop.f32.mrb[0].mxu0
    %v382 = vadd.f32 0.0, %v381
    %v383 = vpop.f32.mrb[0].mxu0
    %384 = vmatprep.mubr.f32.mxu0 0.0
    %385 = vmatmul.mubr.f32.gmra.mrb[0].mxu0 %v272
    %v386 = vpop.f32.mrb[0].mxu0
    %v387 = vadd.f32 0.0, %v386
    %v388 = vpop.f32.mrb[0].mxu0
    %389 = vmatprep.mubr.f32.mxu0 0.0
    %390 = vmatmul.mubr.f32.gmra.mrb[0].mxu0 %v273
    %v391 = vpop.f32.mrb[0].mxu0
    %v392 = vadd.f32 0.0, %v391
    %v393 = vpop.f32.mrb[0].mxu0
    %394 = vmatprep.mubr.f32.mxu0 0.0
    %395 = vmatmul.mubr.f32.gmra.mrb[0].mxu0 %v274
    %v396 = vpop.f32.mrb[0].mxu0
    %v397 = vadd.f32 0.0, %v396
    %v398 = vpop.f32.mrb[0].mxu0
    %399 = vmatprep.mubr.f32.mxu0 0.0
    %400 = vmatmul.mubr.f32.gmra.mrb[0].mxu0 %v275
    %v401 = vpop.f32.mrb[0].mxu0
    %v402 = vadd.f32 0.0, %v401
    %v403 = vpop.f32.mrb[0].mxu0
    %404 = vmatprep.mubr.f32.mxu0 0.0
    %405 = vmatmul.mubr.f32.gmra.mrb[0].mxu0 %v276
    %v406 = vpop.f32.mrb[0].mxu0
    %v407 = vadd.f32 0.0, %v406
    %v408 = vpop.f32.mrb[0].mxu0
    %409 = vmatprep.mubr.f32.mxu0 0.0
    %410 = vmatmul.mubr.f32.gmra.mrb[0].mxu0 %v277
    %v411 = vpop.f32.mrb[0].mxu0
    %v412 = vadd.f32 0.0, %v411
    %v413 = vpop.f32.mrb[0].mxu0
    %414 = vmatprep.mubr.f32.mxu0 0.0
    %415 = vmatmul.mubr.f32.gmra.mrb[0].mxu0 %v278
    %v416 = vpop.f32.mrb[0].mxu0
    %v417 = vadd.f32 0.0, %v416
    %v418 = vpop.f32.mrb[0].mxu0
    %419 = vmatprep.mubr.f32.mxu0 0.0
    %420 = vmatmul.mubr.f32.gmra.mrb[0].mxu0 %v279
    %v421 = vpop.f32.mrb[0].mxu0
    %v422 = vadd.f32 0.0, %v421
    %v423 = vpop.f32.mrb[0].mxu0
    %424 = vmatprep.mubr.f32.mxu0 0.0
    %425 = vmatmul.mubr.f32.gmra.mrb[0].mxu0 %v280
    %v426 = vpop.f32.mrb[0].mxu0
    %v427 = vadd.f32 0.0, %v426
    %v428 = vpop.f32.mrb[0].mxu0
    %429 = vmatprep.mubr.f32.mxu0 0.0
    %430 = vmatmul.mubr.f32.gmra.mrb[0].mxu0 %v281
    %v431 = vpop.f32.mrb[0].mxu0
    %v432 = vadd.f32 0.0, %v431
    %v433 = vpop.f32.mrb[0].mxu0
    %434 = vmatprep.mubr.f32.mxu0 0.0
    %435 = vmatmul.mubr.f32.gmra.mrb[0].mxu0 %v282
    %v436 = vpop.f32.mrb[0].mxu0
    %v437 = vadd.f32 0.0, %v436
    %v438 = vpop.f32.mrb[0].mxu0
    %439 = vmatprep.mubr.f32.mxu0 0.0
    %440 = vmatmul.mubr.f32.gmra.mrb[0].mxu0 %v283
    %v441 = vpop.f32.mrb[0].mxu0
    %v442 = vadd.f32 0.0, %v441
    %v443 = vpop.f32.mrb[0].mxu0
    %444 = vdwg.mxu0
    %445 = vmatprep.subr.mxu0 0.0
    %446 = vmatpush1.msra.mxu0 %v172
    %447 = vmatprep.subr.mxu0 0.0
    %448 = vmatpush1.msra.mxu0 %v173
    %449 = vmatprep.subr.mxu0 0.0
    %450 = vmatpush1.msra.mxu0 %v174
    %451 = vmatprep.subr.mxu0 0.0
    %452 = vmatpush1.msra.mxu0 %v175
    %453 = vmatprep.subr.mxu0 0.0
    %454 = vmatpush1.msra.mxu0 %v176
    %455 = vmatprep.subr.mxu0 0.0
    %456 = vmatpush1.msra.mxu0 %v177
    %457 = vmatprep.subr.mxu0 0.0
    %458 = vmatpush1.msra.mxu0 %v178
    %459 = vmatprep.subr.mxu0 0.0
    %460 = vmatpush1.msra.mxu0 %v179
    %461 = vmatprep.subr.mxu0 0.0
    %462 = vmatpush1.msra.mxu0 %v180
    %463 = vmatprep.subr.mxu0 0.0
    %464 = vmatpush1.msra.mxu0 %v181
    %465 = vmatprep.subr.mxu0 0.0
    %466 = vmatpush1.msra.mxu0 %v182
    %467 = vmatprep.subr.mxu0 0.0
    %468 = vmatpush1.msra.mxu0 %v183
    %469 = vmatprep.subr.mxu0 0.0
    %470 = vmatpush1.msra.mxu0 %v184
    %471 = vmatprep.subr.mxu0 0.0
    %472 = vmatpush1.msra.mxu0 %v185
    %473 = vmatprep.subr.mxu0 0.0
    %474 = vmatpush1.msra.mxu0 %v186
    %475 = vmatprep.subr.mxu0 0.0
    %476 = vmatpush1.msra.mxu0 %v187
    %477 = vmatprep.subr.mxu0 0.0
    %478 = vmatpush1.msra.mxu0 0.0
    %479 = vmatprep.subr.mxu0 0.0
    %480 = vmatpush1.msra.mxu0 0.0
    %481 = vmatprep.subr.mxu0 0.0
    %482 = vmatpush1.msra.mxu0 0.0
    %483 = vmatprep.subr.mxu0 0.0
    %484 = vmatpush1.msra.mxu0 0.0
    %485 = vmatprep.subr.mxu0 0.0
    %486 = vmatpush1.msra.mxu0 0.0
    %487 = vmatprep.subr.mxu0 0.0
    %488 = vmatpush1.msra.mxu0 0.0
    %489 = vmatprep.subr.mxu0 0.0
    %490 = vmatpush1.msra.mxu0 0.0
    %491 = vmatprep.subr.mxu0 0.0
    %492 = vmatpush1.msra.mxu0 0.0
    %493 = vmatprep.subr.mxu0 0.0
    %494 = vmatpush1.msra.mxu0 0.0
    %495 = vmatprep.subr.mxu0 0.0
    %496 = vmatpush1.msra.mxu0 0.0
    %497 = vmatprep.subr.mxu0 0.0
    %498 = vmatpush1.msra.mxu0 0.0
    %499 = vmatprep.subr.mxu0 0.0
    %500 = vmatpush1.msra.mxu0 0.0
    %501 = vmatprep.subr.mxu0 0.0
    %502 = vmatpush1.msra.mxu0 0.0
    %503 = vmatprep.subr.mxu0 0.0
    %504 = vmatpush1.msra.mxu0 0.0
    %505 = vmatprep.subr.mxu0 0.0
    %506 = vmatpush1.msra.mxu0 0.0
    %507 = vmatprep.subr.mxu0 0.0
    %508 = vmatpush1.msra.mxu0 0.0
    %509 = vmatprep.mubr.f32.mxu0 0.0
    %510 = vmatmul.mubr.f32.gmra.mrb[0].mxu0 %v156
    %v511 = vpop.f32.mrb[0].mxu0
    %v512 = vadd.f32 %v367, %v511
    %v513 = vpop.f32.mrb[0].mxu0
    %514 = vmatprep.mubr.f32.mxu0 0.0
    %515 = vmatmul.mubr.f32.gmra.mrb[0].mxu0 %v157
    %v516 = vpop.f32.mrb[0].mxu0
    %v517 = vadd.f32 %v372, %v516
    %v518 = vpop.f32.mrb[0].mxu0
    %519 = vmatprep.mubr.f32.mxu0 0.0
    %520 = vmatmul.mubr.f32.gmra.mrb[0].mxu0 %v158
    %v521 = vpop.f32.mrb[0].mxu0
    %v522 = vadd.f32 %v377, %v521
    %v523 = vpop.f32.mrb[0].mxu0
    %524 = vmatprep.mubr.f32.mxu0 0.0
    %525 = vmatmul.mubr.f32.gmra.mrb[0].mxu0 %v159
    %v526 = vpop.f32.mrb[0].mxu0
    %v527 = vadd.f32 %v382, %v526
    %v528 = vpop.f32.mrb[0].mxu0
    %529 = vmatprep.mubr.f32.mxu0 0.0
    %530 = vmatmul.mubr.f32.gmra.mrb[0].mxu0 %v160
    %v531 = vpop.f32.mrb[0].mxu0
    %v532 = vadd.f32 %v387, %v531
    %v533 = vpop.f32.mrb[0].mxu0
    %534 = vmatprep.mubr.f32.mxu0 0.0
    %535 = vmatmul.mubr.f32.gmra.mrb[0].mxu0 %v161
    %v536 = vpop.f32.mrb[0].mxu0
    %v537 = vadd.f32 %v392, %v536
    %v538 = vpop.f32.mrb[0].mxu0
    %539 = vmatprep.mubr.f32.mxu0 0.0
    %540 = vmatmul.mubr.f32.gmra.mrb[0].mxu0 %v162
    %v541 = vpop.f32.mrb[0].mxu0
    %v542 = vadd.f32 %v397, %v541
    %v543 = vpop.f32.mrb[0].mxu0
    %544 = vmatprep.mubr.f32.mxu0 0.0
    %545 = vmatmul.mubr.f32.gmra.mrb[0].mxu0 %v163
    %v546 = vpop.f32.mrb[0].mxu0
    %v547 = vadd.f32 %v402, %v546
    %v548 = vpop.f32.mrb[0].mxu0
    %549 = vmatprep.mubr.f32.mxu0 0.0
    %550 = vmatmul.mubr.f32.gmra.mrb[0].mxu0 %v164
    %v551 = vpop.f32.mrb[0].mxu0
    %v552 = vadd.f32 %v407, %v551
    %v553 = vpop.f32.mrb[0].mxu0
    %554 = vmatprep.mubr.f32.mxu0 0.0
    %555 = vmatmul.mubr.f32.gmra.mrb[0].mxu0 %v165
    %v556 = vpop.f32.mrb[0].mxu0
    %v557 = vadd.f32 %v412, %v556
    %v558 = vpop.f32.mrb[0].mxu0
    %559 = vmatprep.mubr.f32.mxu0 0.0
    %560 = vmatmul.mubr.f32.gmra.mrb[0].mxu0 %v166
    %v561 = vpop.f32.mrb[0].mxu0
    %v562 = vadd.f32 %v417, %v561
    %v563 = vpop.f32.mrb[0].mxu0
    %564 = vmatprep.mubr.f32.mxu0 0.0
    %565 = vmatmul.mubr.f32.gmra.mrb[0].mxu0 %v167
    %v566 = vpop.f32.mrb[0].mxu0
    %v567 = vadd.f32 %v422, %v566
    %v568 = vpop.f32.mrb[0].mxu0
    %569 = vmatprep.mubr.f32.mxu0 0.0
    %570 = vmatmul.mubr.f32.gmra.mrb[0].mxu0 %v168
    %v571 = vpop.f32.mrb[0].mxu0
    %v572 = vadd.f32 %v427, %v571
    %v573 = vpop.f32.mrb[0].mxu0
    %574 = vmatprep.mubr.f32.mxu0 0.0
    %575 = vmatmul.mubr.f32.gmra.mrb[0].mxu0 %v169
    %v576 = vpop.f32.mrb[0].mxu0
    %v577 = vadd.f32 %v432, %v576
    %v578 = vpop.f32.mrb[0].mxu0
    %579 = vmatprep.mubr.f32.mxu0 0.0
    %580 = vmatmul.mubr.f32.gmra.mrb[0].mxu0 %v170
    %v581 = vpop.f32.mrb[0].mxu0
    %v582 = vadd.f32 %v437, %v581
    %v583 = vpop.f32.mrb[0].mxu0
    %584 = vmatprep.mubr.f32.mxu0 0.0
    %585 = vmatmul.mubr.f32.gmra.mrb[0].mxu0 %v171
    %v586 = vpop.f32.mrb[0].mxu0
    %v587 = vadd.f32 %v442, %v586
    %v588 = vpop.f32.mrb[0].mxu0
    %589 = vdwg.mxu0
    %590 = vset.pattern.permute.xlu0 2
    %591 = vperm.xlu0 %590, %v58
    %v592 = vpop.permute.xlu0 %591
    %593 = vset.pattern.permute.xlu0 2
    %594 = vperm.xlu0 %593, %v59
    %v595 = vpop.permute.xlu0 %594
    %596 = vset.pattern.permute.xlu0 2
    %597 = vperm.xlu0 %596, %v60
    %v598 = vpop.permute.xlu0 %597
    %599 = vset.pattern.permute.xlu0 2
    %600 = vperm.xlu0 %599, %v61
    %v601 = vpop.permute.xlu0 %600
    %602 = vset.pattern.permute.xlu0 2
    %603 = vperm.xlu0 %602, %v62
    %v604 = vpop.permute.xlu0 %603
    %605 = vset.pattern.permute.xlu0 2
    %606 = vperm.xlu0 %605, %v63
    %v607 = vpop.permute.xlu0 %606
    %608 = vset.pattern.permute.xlu0 2
    %609 = vperm.xlu0 %608, %v64
    %v610 = vpop.permute.xlu0 %609
    %611 = vset.pattern.permute.xlu0 2
    %612 = vperm.xlu0 %611, %v65
    %v613 = vpop.permute.xlu0 %612
    %614 = vset.pattern.permute.xlu0 2
    %615 = vperm.xlu0 %614, %v66
    %v616 = vpop.permute.xlu0 %615
    %617 = vset.pattern.permute.xlu0 2
    %618 = vperm.xlu0 %617, %v67
    %v619 = vpop.permute.xlu0 %618
    %620 = vset.pattern.permute.xlu0 2
    %621 = vperm.xlu0 %620, %v68
    %v622 = vpop.permute.xlu0 %621
    %623 = vset.pattern.permute.xlu0 2
    %624 = vperm.xlu0 %623, %v69
    %v625 = vpop.permute.xlu0 %624
    %626 = vset.pattern.permute.xlu0 2
    %627 = vperm.xlu0 %626, %v70
    %v628 = vpop.permute.xlu0 %627
    %629 = vset.pattern.permute.xlu0 2
    %630 = vperm.xlu0 %629, %v71
    %v631 = vpop.permute.xlu0 %630
    %632 = vset.pattern.permute.xlu0 2
    %633 = vperm.xlu0 %632, %v72
    %v634 = vpop.permute.xlu0 %633
    %635 = vset.pattern.permute.xlu0 2
    %636 = vperm.xlu0 %635, %v73
    %v637 = vpop.permute.xlu0 %636
    %vm638 = vcmp.eq.s32.totalorder %v75, %v592
    %vm639 = vcmp.eq.s32.totalorder %v75, %v595
    %vm640 = vcmp.eq.s32.totalorder %v75, %v598
    %vm641 = vcmp.eq.s32.totalorder %v75, %v601
    %vm642 = vcmp.eq.s32.totalorder %v75, %v604
    %vm643 = vcmp.eq.s32.totalorder %v75, %v607
    %vm644 = vcmp.eq.s32.totalorder %v75, %v610
    %vm645 = vcmp.eq.s32.totalorder %v75, %v613
    %vm646 = vcmp.eq.s32.totalorder %v75, %v616
    %vm647 = vcmp.eq.s32.totalorder %v75, %v619
    %vm648 = vcmp.eq.s32.totalorder %v75, %v622
    %vm649 = vcmp.eq.s32.totalorder %v75, %v625
    %vm650 = vcmp.eq.s32.totalorder %v75, %v628
    %vm651 = vcmp.eq.s32.totalorder %v75, %v631
    %vm652 = vcmp.eq.s32.totalorder %v75, %v634
    %vm653 = vcmp.eq.s32.totalorder %v75, %v637
    %v654 = vsel %vm638, 1, 0
    %v655 = vsel %vm639, 1, 0
    %v656 = vsel %vm640, 1, 0
    %v657 = vsel %vm641, 1, 0
    %v658 = vsel %vm642, 1, 0
    %v659 = vsel %vm643, 1, 0
    %v660 = vsel %vm644, 1, 0
    %v661 = vsel %vm645, 1, 0
    %v662 = vsel %vm646, 1, 0
    %v663 = vsel %vm647, 1, 0
    %v664 = vsel %vm648, 1, 0
    %v665 = vsel %vm649, 1, 0
    %v666 = vsel %vm650, 1, 0
    %v667 = vsel %vm651, 1, 0
    %v668 = vsel %vm652, 1, 0
    %v669 = vsel %vm653, 1, 0
    %v670 = vcvt.s32.f32 %v654
    %v671 = vcvt.s32.f32 %v655
    %v672 = vcvt.s32.f32 %v656
    %v673 = vcvt.s32.f32 %v657
    %v674 = vcvt.s32.f32 %v658
    %v675 = vcvt.s32.f32 %v659
    %v676 = vcvt.s32.f32 %v660
    %v677 = vcvt.s32.f32 %v661
    %v678 = vcvt.s32.f32 %v662
    %v679 = vcvt.s32.f32 %v663
    %v680 = vcvt.s32.f32 %v664
    %v681 = vcvt.s32.f32 %v665
    %v682 = vcvt.s32.f32 %v666
    %v683 = vcvt.s32.f32 %v667
    %v684 = vcvt.s32.f32 %v668
    %v685 = vcvt.s32.f32 %v669
    %v686 = vld [vmem:[#allocation3 + $0x100] sm:$0xff]
    %v687 = vld [vmem:[#allocation3 + $0x108] sm:$0xff]
    %v688 = vld [vmem:[#allocation3 + $0x110] sm:$0xff]
    %v689 = vld [vmem:[#allocation3 + $0x118] sm:$0xff]
    %v690 = vld [vmem:[#allocation3 + $0x120] sm:$0xff]
    %v691 = vld [vmem:[#allocation3 + $0x128] sm:$0xff]
    %v692 = vld [vmem:[#allocation3 + $0x130] sm:$0xff]
    %v693 = vld [vmem:[#allocation3 + $0x138] sm:$0xff]
    %v694 = vld [vmem:[#allocation3 + $0x140] sm:$0xff]
    %v695 = vld [vmem:[#allocation3 + $0x148] sm:$0xff]
    %v696 = vld [vmem:[#allocation3 + $0x150] sm:$0xff]
    %v697 = vld [vmem:[#allocation3 + $0x158] sm:$0xff]
    %v698 = vld [vmem:[#allocation3 + $0x160] sm:$0xff]
    %v699 = vld [vmem:[#allocation3 + $0x168] sm:$0xff]
    %v700 = vld [vmem:[#allocation3 + $0x170] sm:$0xff]
    %v701 = vld [vmem:[#allocation3 + $0x178] sm:$0xff]
    %702 = vmatprep.subr.mxu0 0.0
    %703 = vmatpush1.msra.mxu0 %v686
    %704 = vmatprep.subr.mxu0 0.0
    %705 = vmatpush1.msra.mxu0 %v687
    %706 = vmatprep.subr.mxu0 0.0
    %707 = vmatpush1.msra.mxu0 %v688
    %708 = vmatprep.subr.mxu0 0.0
    %709 = vmatpush1.msra.mxu0 %v689
    %710 = vmatprep.subr.mxu0 0.0
    %711 = vmatpush1.msra.mxu0 %v690
    %712 = vmatprep.subr.mxu0 0.0
    %713 = vmatpush1.msra.mxu0 %v691
    %714 = vmatprep.subr.mxu0 0.0
    %715 = vmatpush1.msra.mxu0 %v692
    %716 = vmatprep.subr.mxu0 0.0
    %717 = vmatpush1.msra.mxu0 %v693
    %718 = vmatprep.subr.mxu0 0.0
    %719 = vmatpush1.msra.mxu0 %v694
    %720 = vmatprep.subr.mxu0 0.0
    %721 = vmatpush1.msra.mxu0 %v695
    %722 = vmatprep.subr.mxu0 0.0
    %723 = vmatpush1.msra.mxu0 %v696
    %724 = vmatprep.subr.mxu0 0.0
    %725 = vmatpush1.msra.mxu0 %v697
    %726 = vmatprep.subr.mxu0 0.0
    %727 = vmatpush1.msra.mxu0 %v698
    %728 = vmatprep.subr.mxu0 0.0
    %729 = vmatpush1.msra.mxu0 %v699
    %730 = vmatprep.subr.mxu0 0.0
    %731 = vmatpush1.msra.mxu0 %v700
    %732 = vmatprep.subr.mxu0 0.0
    %733 = vmatpush1.msra.mxu0 %v701
    %734 = vmatprep.subr.mxu0 0.0
    %735 = vmatpush1.msra.mxu0 0.0
    %736 = vmatprep.subr.mxu0 0.0
    %737 = vmatpush1.msra.mxu0 0.0
    %738 = vmatprep.subr.mxu0 0.0
    %739 = vmatpush1.msra.mxu0 0.0
    %740 = vmatprep.subr.mxu0 0.0
    %741 = vmatpush1.msra.mxu0 0.0
    %742 = vmatprep.subr.mxu0 0.0
    %743 = vmatpush1.msra.mxu0 0.0
    %744 = vmatprep.subr.mxu0 0.0
    %745 = vmatpush1.msra.mxu0 0.0
    %746 = vmatprep.subr.mxu0 0.0
    %747 = vmatpush1.msra.mxu0 0.0
    %748 = vmatprep.subr.mxu0 0.0
    %749 = vmatpush1.msra.mxu0 0.0
    %750 = vmatprep.subr.mxu0 0.0
    %751 = vmatpush1.msra.mxu0 0.0
    %752 = vmatprep.subr.mxu0 0.0
    %753 = vmatpush1.msra.mxu0 0.0
    %754 = vmatprep.subr.mxu0 0.0
    %755 = vmatpush1.msra.mxu0 0.0
    %756 = vmatprep.subr.mxu0 0.0
    %757 = vmatpush1.msra.mxu0 0.0
    %758 = vmatprep.subr.mxu0 0.0
    %759 = vmatpush1.msra.mxu0 0.0
    %760 = vmatprep.subr.mxu0 0.0
    %761 = vmatpush1.msra.mxu0 0.0
    %762 = vmatprep.subr.mxu0 0.0
    %763 = vmatpush1.msra.mxu0 0.0
    %764 = vmatprep.subr.mxu0 0.0
    %765 = vmatpush1.msra.mxu0 0.0
    %766 = vmatprep.mubr.f32.mxu0 0.0
    %767 = vmatmul.mubr.f32.gmra.mrb[0].mxu0 %v670
    %v768 = vpop.f32.mrb[0].mxu0
    %v769 = vadd.f32 0.0, %v768
    %v770 = vpop.f32.mrb[0].mxu0
    %771 = vmatprep.mubr.f32.mxu0 0.0
    %772 = vmatmul.mubr.f32.gmra.mrb[0].mxu0 %v671
    %v773 = vpop.f32.mrb[0].mxu0
    %v774 = vadd.f32 0.0, %v773
    %v775 = vpop.f32.mrb[0].mxu0
    %776 = vmatprep.mubr.f32.mxu0 0.0
    %777 = vmatmul.mubr.f32.gmra.mrb[0].mxu0 %v672
    %v778 = vpop.f32.mrb[0].mxu0
    %v779 = vadd.f32 0.0, %v778
    %v780 = vpop.f32.mrb[0].mxu0
    %781 = vmatprep.mubr.f32.mxu0 0.0
    %782 = vmatmul.mubr.f32.gmra.mrb[0].mxu0 %v673
    %v783 = vpop.f32.mrb[0].mxu0
    %v784 = vadd.f32 0.0, %v783
    %v785 = vpop.f32.mrb[0].mxu0
    %786 = vmatprep.mubr.f32.mxu0 0.0
    %787 = vmatmul.mubr.f32.gmra.mrb[0].mxu0 %v674
    %v788 = vpop.f32.mrb[0].mxu0
    %v789 = vadd.f32 0.0, %v788
    %v790 = vpop.f32.mrb[0].mxu0
    %791 = vmatprep.mubr.f32.mxu0 0.0
    %792 = vmatmul.mubr.f32.gmra.mrb[0].mxu0 %v675
    %v793 = vpop.f32.mrb[0].mxu0
    %v794 = vadd.f32 0.0, %v793
    %v795 = vpop.f32.mrb[0].mxu0
    %796 = vmatprep.mubr.f32.mxu0 0.0
    %797 = vmatmul.mubr.f32.gmra.mrb[0].mxu0 %v676
    %v798 = vpop.f32.mrb[0].mxu0
    %v799 = vadd.f32 0.0, %v798
    %v800 = vpop.f32.mrb[0].mxu0
    %801 = vmatprep.mubr.f32.mxu0 0.0
    %802 = vmatmul.mubr.f32.gmra.mrb[0].mxu0 %v677
    %v803 = vpop.f32.mrb[0].mxu0
    %v804 = vadd.f32 0.0, %v803
    %v805 = vpop.f32.mrb[0].mxu0
    %806 = vmatprep.mubr.f32.mxu0 0.0
    %807 = vmatmul.mubr.f32.gmra.mrb[0].mxu0 %v678
    %v808 = vpop.f32.mrb[0].mxu0
    %v809 = vadd.f32 0.0, %v808
    %v810 = vpop.f32.mrb[0].mxu0
    %811 = vmatprep.mubr.f32.mxu0 0.0
    %812 = vmatmul.mubr.f32.gmra.mrb[0].mxu0 %v679
    %v813 = vpop.f32.mrb[0].mxu0
    %v814 = vadd.f32 0.0, %v813
    %v815 = vpop.f32.mrb[0].mxu0
    %816 = vmatprep.mubr.f32.mxu0 0.0
    %817 = vmatmul.mubr.f32.gmra.mrb[0].mxu0 %v680
    %v818 = vpop.f32.mrb[0].mxu0
    %v819 = vadd.f32 0.0, %v818
    %v820 = vpop.f32.mrb[0].mxu0
    %821 = vmatprep.mubr.f32.mxu0 0.0
    %822 = vmatmul.mubr.f32.gmra.mrb[0].mxu0 %v681
    %v823 = vpop.f32.mrb[0].mxu0
    %v824 = vadd.f32 0.0, %v823
    %v825 = vpop.f32.mrb[0].mxu0
    %826 = vmatprep.mubr.f32.mxu0 0.0
    %827 = vmatmul.mubr.f32.gmra.mrb[0].mxu0 %v682
    %v828 = vpop.f32.mrb[0].mxu0
    %v829 = vadd.f32 0.0, %v828
    %v830 = vpop.f32.mrb[0].mxu0
    %831 = vmatprep.mubr.f32.mxu0 0.0
    %832 = vmatmul.mubr.f32.gmra.mrb[0].mxu0 %v683
    %v833 = vpop.f32.mrb[0].mxu0
    %v834 = vadd.f32 0.0, %v833
    %v835 = vpop.f32.mrb[0].mxu0
    %836 = vmatprep.mubr.f32.mxu0 0.0
    %837 = vmatmul.mubr.f32.gmra.mrb[0].mxu0 %v684
    %v838 = vpop.f32.mrb[0].mxu0
    %v839 = vadd.f32 0.0, %v838
    %v840 = vpop.f32.mrb[0].mxu0
    %841 = vmatprep.mubr.f32.mxu0 0.0
    %842 = vmatmul.mubr.f32.gmra.mrb[0].mxu0 %v685
    %v843 = vpop.f32.mrb[0].mxu0
    %v844 = vadd.f32 0.0, %v843
    %v845 = vpop.f32.mrb[0].mxu0
    %846 = vdwg.mxu0
    %v847 = vadd.f32 %v512, %v769
    %v848 = vadd.f32 %v517, %v774
    %v849 = vadd.f32 %v522, %v779
    %v850 = vadd.f32 %v527, %v784
    %v851 = vadd.f32 %v532, %v789
    %v852 = vadd.f32 %v537, %v794
    %v853 = vadd.f32 %v542, %v799
    %v854 = vadd.f32 %v547, %v804
    %v855 = vadd.f32 %v552, %v809
    %v856 = vadd.f32 %v557, %v814
    %v857 = vadd.f32 %v562, %v819
    %v858 = vadd.f32 %v567, %v824
    %v859 = vadd.f32 %v572, %v829
    %v860 = vadd.f32 %v577, %v834
    %v861 = vadd.f32 %v582, %v839
    %v862 = vadd.f32 %v587, %v844
    %863 = vset.pattern.permute.xlu0 3
    %864 = vperm.xlu0 %863, %v58
    %v865 = vpop.permute.xlu0 %864
    %866 = vset.pattern.permute.xlu0 3
    %867 = vperm.xlu0 %866, %v59
    %v868 = vpop.permute.xlu0 %867
    %869 = vset.pattern.permute.xlu0 3
    %870 = vperm.xlu0 %869, %v60
    %v871 = vpop.permute.xlu0 %870
    %872 = vset.pattern.permute.xlu0 3
    %873 = vperm.xlu0 %872, %v61
    %v874 = vpop.permute.xlu0 %873
    %875 = vset.pattern.permute.xlu0 3
    %876 = vperm.xlu0 %875, %v62
    %v877 = vpop.permute.xlu0 %876
    %878 = vset.pattern.permute.xlu0 3
    %879 = vperm.xlu0 %878, %v63
    %v880 = vpop.permute.xlu0 %879
    %881 = vset.pattern.permute.xlu0 3
    %882 = vperm.xlu0 %881, %v64
    %v883 = vpop.permute.xlu0 %882
    %884 = vset.pattern.permute.xlu0 3
    %885 = vperm.xlu0 %884, %v65
    %v886 = vpop.permute.xlu0 %885
    %887 = vset.pattern.permute.xlu0 3
    %888 = vperm.xlu0 %887, %v66
    %v889 = vpop.permute.xlu0 %888
    %890 = vset.pattern.permute.xlu0 3
    %891 = vperm.xlu0 %890, %v67
    %v892 = vpop.permute.xlu0 %891
    %893 = vset.pattern.permute.xlu0 3
    %894 = vperm.xlu0 %893, %v68
    %v895 = vpop.permute.xlu0 %894
    %896 = vset.pattern.permute.xlu0 3
    %897 = vperm.xlu0 %896, %v69
    %v898 = vpop.permute.xlu0 %897
    %899 = vset.pattern.permute.xlu0 3
    %900 = vperm.xlu0 %899, %v70
    %v901 = vpop.permute.xlu0 %900
    %902 = vset.pattern.permute.xlu0 3
    %903 = vperm.xlu0 %902, %v71
    %v904 = vpop.permute.xlu0 %903
    %905 = vset.pattern.permute.xlu0 3
    %906 = vperm.xlu0 %905, %v72
    %v907 = vpop.permute.xlu0 %906
    %908 = vset.pattern.permute.xlu0 3
    %909 = vperm.xlu0 %908, %v73
    %v910 = vpop.permute.xlu0 %909
    %vm911 = vcmp.eq.s32.totalorder %v75, %v865
    %vm912 = vcmp.eq.s32.totalorder %v75, %v868
    %vm913 = vcmp.eq.s32.totalorder %v75, %v871
    %vm914 = vcmp.eq.s32.totalorder %v75, %v874
    %vm915 = vcmp.eq.s32.totalorder %v75, %v877
    %vm916 = vcmp.eq.s32.totalorder %v75, %v880
    %vm917 = vcmp.eq.s32.totalorder %v75, %v883
    %vm918 = vcmp.eq.s32.totalorder %v75, %v886
    %vm919 = vcmp.eq.s32.totalorder %v75, %v889
    %vm920 = vcmp.eq.s32.totalorder %v75, %v892
    %vm921 = vcmp.eq.s32.totalorder %v75, %v895
    %vm922 = vcmp.eq.s32.totalorder %v75, %v898
    %vm923 = vcmp.eq.s32.totalorder %v75, %v901
    %vm924 = vcmp.eq.s32.totalorder %v75, %v904
    %vm925 = vcmp.eq.s32.totalorder %v75, %v907
    %vm926 = vcmp.eq.s32.totalorder %v75, %v910
    %v927 = vsel %vm911, 1, 0
    %v928 = vsel %vm912, 1, 0
    %v929 = vsel %vm913, 1, 0
    %v930 = vsel %vm914, 1, 0
    %v931 = vsel %vm915, 1, 0
    %v932 = vsel %vm916, 1, 0
    %v933 = vsel %vm917, 1, 0
    %v934 = vsel %vm918, 1, 0
    %v935 = vsel %vm919, 1, 0
    %v936 = vsel %vm920, 1, 0
    %v937 = vsel %vm921, 1, 0
    %v938 = vsel %vm922, 1, 0
    %v939 = vsel %vm923, 1, 0
    %v940 = vsel %vm924, 1, 0
    %v941 = vsel %vm925, 1, 0
    %v942 = vsel %vm926, 1, 0
    %v943 = vcvt.s32.f32 %v927
    %v944 = vcvt.s32.f32 %v928
    %v945 = vcvt.s32.f32 %v929
    %v946 = vcvt.s32.f32 %v930
    %v947 = vcvt.s32.f32 %v931
    %v948 = vcvt.s32.f32 %v932
    %v949 = vcvt.s32.f32 %v933
    %v950 = vcvt.s32.f32 %v934
    %v951 = vcvt.s32.f32 %v935
    %v952 = vcvt.s32.f32 %v936
    %v953 = vcvt.s32.f32 %v937
    %v954 = vcvt.s32.f32 %v938
    %v955 = vcvt.s32.f32 %v939
    %v956 = vcvt.s32.f32 %v940
    %v957 = vcvt.s32.f32 %v941
    %v958 = vcvt.s32.f32 %v942
    %v959 = vld [vmem:[#allocation3 + $0x180] sm:$0xff]
    %v960 = vld [vmem:[#allocation3 + $0x188] sm:$0xff]
    %v961 = vld [vmem:[#allocation3 + $0x190] sm:$0xff]
    %v962 = vld [vmem:[#allocation3 + $0x198] sm:$0xff]
    %v963 = vld [vmem:[#allocation3 + $0x1a0] sm:$0xff]
    %v964 = vld [vmem:[#allocation3 + $0x1a8] sm:$0xff]
    %v965 = vld [vmem:[#allocation3 + $0x1b0] sm:$0xff]
    %v966 = vld [vmem:[#allocation3 + $0x1b8] sm:$0xff]
    %v967 = vld [vmem:[#allocation3 + $0x1c0] sm:$0xff]
    %v968 = vld [vmem:[#allocation3 + $0x1c8] sm:$0xff]
    %v969 = vld [vmem:[#allocation3 + $0x1d0] sm:$0xff]
    %v970 = vld [vmem:[#allocation3 + $0x1d8] sm:$0xff]
    %v971 = vld [vmem:[#allocation3 + $0x1e0] sm:$0xff]
    %v972 = vld [vmem:[#allocation3 + $0x1e8] sm:$0xff]
    %v973 = vld [vmem:[#allocation3 + $0x1f0] sm:$0xff]
    %v974 = vld [vmem:[#allocation3 + $0x1f8] sm:$0xff]
    %975 = vmatprep.subr.mxu0 0.0
    %976 = vmatpush1.msra.mxu0 %v959
    %977 = vmatprep.subr.mxu0 0.0
    %978 = vmatpush1.msra.mxu0 %v960
    %979 = vmatprep.subr.mxu0 0.0
    %980 = vmatpush1.msra.mxu0 %v961
    %981 = vmatprep.subr.mxu0 0.0
    %982 = vmatpush1.msra.mxu0 %v962
    %983 = vmatprep.subr.mxu0 0.0
    %984 = vmatpush1.msra.mxu0 %v963
    %985 = vmatprep.subr.mxu0 0.0
    %986 = vmatpush1.msra.mxu0 %v964
    %987 = vmatprep.subr.mxu0 0.0
    %988 = vmatpush1.msra.mxu0 %v965
    %989 = vmatprep.subr.mxu0 0.0
    %990 = vmatpush1.msra.mxu0 %v966
    %991 = vmatprep.subr.mxu0 0.0
    %992 = vmatpush1.msra.mxu0 %v967
    %993 = vmatprep.subr.mxu0 0.0
    %994 = vmatpush1.msra.mxu0 %v968
    %995 = vmatprep.subr.mxu0 0.0
    %996 = vmatpush1.msra.mxu0 %v969
    %997 = vmatprep.subr.mxu0 0.0
    %998 = vmatpush1.msra.mxu0 %v970
    %999 = vmatprep.subr.mxu0 0.0
    %1000 = vmatpush1.msra.mxu0 %v971
    %1001 = vmatprep.subr.mxu0 0.0
    %1002 = vmatpush1.msra.mxu0 %v972
    %1003 = vmatprep.subr.mxu0 0.0
    %1004 = vmatpush1.msra.mxu0 %v973
    %1005 = vmatprep.subr.mxu0 0.0
    %1006 = vmatpush1.msra.mxu0 %v974
    %1007 = vmatprep.subr.mxu0 0.0
    %1008 = vmatpush1.msra.mxu0 0.0
    %1009 = vmatprep.subr.mxu0 0.0
    %1010 = vmatpush1.msra.mxu0 0.0
    %1011 = vmatprep.subr.mxu0 0.0
    %1012 = vmatpush1.msra.mxu0 0.0
    %1013 = vmatprep.subr.mxu0 0.0
    %1014 = vmatpush1.msra.mxu0 0.0
    %1015 = vmatprep.subr.mxu0 0.0
    %1016 = vmatpush1.msra.mxu0 0.0
    %1017 = vmatprep.subr.mxu0 0.0
    %1018 = vmatpush1.msra.mxu0 0.0
    %1019 = vmatprep.subr.mxu0 0.0
    %1020 = vmatpush1.msra.mxu0 0.0
    %1021 = vmatprep.subr.mxu0 0.0
    %1022 = vmatpush1.msra.mxu0 0.0
    %1023 = vmatprep.subr.mxu0 0.0
    %1024 = vmatpush1.msra.mxu0 0.0
    %1025 = vmatprep.subr.mxu0 0.0
    %1026 = vmatpush1.msra.mxu0 0.0
    %1027 = vmatprep.subr.mxu0 0.0
    %1028 = vmatpush1.msra.mxu0 0.0
    %1029 = vmatprep.subr.mxu0 0.0
    %1030 = vmatpush1.msra.mxu0 0.0
    %1031 = vmatprep.subr.mxu0 0.0
    %1032 = vmatpush1.msra.mxu0 0.0
    %1033 = vmatprep.subr.mxu0 0.0
    %1034 = vmatpush1.msra.mxu0 0.0
    %1035 = vmatprep.subr.mxu0 0.0
    %1036 = vmatpush1.msra.mxu0 0.0
    %1037 = vmatprep.subr.mxu0 0.0
    %1038 = vmatpush1.msra.mxu0 0.0
    %1039 = vmatprep.mubr.f32.mxu0 0.0
    %1040 = vmatmul.mubr.f32.gmra.mrb[0].mxu0 %v943
    %v1041 = vpop.f32.mrb[0].mxu0
    %v1042 = vadd.f32 0.0, %v1041
    %v1043 = vpop.f32.mrb[0].mxu0
    %1044 = vmatprep.mubr.f32.mxu0 0.0
    %1045 = vmatmul.mubr.f32.gmra.mrb[0].mxu0 %v944
    %v1046 = vpop.f32.mrb[0].mxu0
    %v1047 = vadd.f32 0.0, %v1046
    %v1048 = vpop.f32.mrb[0].mxu0
    %1049 = vmatprep.mubr.f32.mxu0 0.0
    %1050 = vmatmul.mubr.f32.gmra.mrb[0].mxu0 %v945
    %v1051 = vpop.f32.mrb[0].mxu0
    %v1052 = vadd.f32 0.0, %v1051
    %v1053 = vpop.f32.mrb[0].mxu0
    %1054 = vmatprep.mubr.f32.mxu0 0.0
    %1055 = vmatmul.mubr.f32.gmra.mrb[0].mxu0 %v946
    %v1056 = vpop.f32.mrb[0].mxu0
    %v1057 = vadd.f32 0.0, %v1056
    %v1058 = vpop.f32.mrb[0].mxu0
    %1059 = vmatprep.mubr.f32.mxu0 0.0
    %1060 = vmatmul.mubr.f32.gmra.mrb[0].mxu0 %v947
    %v1061 = vpop.f32.mrb[0].mxu0
    %v1062 = vadd.f32 0.0, %v1061
    %v1063 = vpop.f32.mrb[0].mxu0
    %1064 = vmatprep.mubr.f32.mxu0 0.0
    %1065 = vmatmul.mubr.f32.gmra.mrb[0].mxu0 %v948
    %v1066 = vpop.f32.mrb[0].mxu0
    %v1067 = vadd.f32 0.0, %v1066
    %v1068 = vpop.f32.mrb[0].mxu0
    %1069 = vmatprep.mubr.f32.mxu0 0.0
    %1070 = vmatmul.mubr.f32.gmra.mrb[0].mxu0 %v949
    %v1071 = vpop.f32.mrb[0].mxu0
    %v1072 = vadd.f32 0.0, %v1071
    %v1073 = vpop.f32.mrb[0].mxu0
    %1074 = vmatprep.mubr.f32.mxu0 0.0
    %1075 = vmatmul.mubr.f32.gmra.mrb[0].mxu0 %v950
    %v1076 = vpop.f32.mrb[0].mxu0
    %v1077 = vadd.f32 0.0, %v1076
    %v1078 = vpop.f32.mrb[0].mxu0
    %1079 = vmatprep.mubr.f32.mxu0 0.0
    %1080 = vmatmul.mubr.f32.gmra.mrb[0].mxu0 %v951
    %v1081 = vpop.f32.mrb[0].mxu0
    %v1082 = vadd.f32 0.0, %v1081
    %v1083 = vpop.f32.mrb[0].mxu0
    %1084 = vmatprep.mubr.f32.mxu0 0.0
    %1085 = vmatmul.mubr.f32.gmra.mrb[0].mxu0 %v952
    %v1086 = vpop.f32.mrb[0].mxu0
    %v1087 = vadd.f32 0.0, %v1086
    %v1088 = vpop.f32.mrb[0].mxu0
    %1089 = vmatprep.mubr.f32.mxu0 0.0
    %1090 = vmatmul.mubr.f32.gmra.mrb[0].mxu0 %v953
    %v1091 = vpop.f32.mrb[0].mxu0
    %v1092 = vadd.f32 0.0, %v1091
    %v1093 = vpop.f32.mrb[0].mxu0
    %1094 = vmatprep.mubr.f32.mxu0 0.0
    %1095 = vmatmul.mubr.f32.gmra.mrb[0].mxu0 %v954
    %v1096 = vpop.f32.mrb[0].mxu0
    %v1097 = vadd.f32 0.0, %v1096
    %v1098 = vpop.f32.mrb[0].mxu0
    %1099 = vmatprep.mubr.f32.mxu0 0.0
    %1100 = vmatmul.mubr.f32.gmra.mrb[0].mxu0 %v955
    %v1101 = vpop.f32.mrb[0].mxu0
    %v1102 = vadd.f32 0.0, %v1101
    %v1103 = vpop.f32.mrb[0].mxu0
    %1104 = vmatprep.mubr.f32.mxu0 0.0
    %1105 = vmatmul.mubr.f32.gmra.mrb[0].mxu0 %v956
    %v1106 = vpop.f32.mrb[0].mxu0
    %v1107 = vadd.f32 0.0, %v1106
    %v1108 = vpop.f32.mrb[0].mxu0
    %1109 = vmatprep.mubr.f32.mxu0 0.0
    %1110 = vmatmul.mubr.f32.gmra.mrb[0].mxu0 %v957
    %v1111 = vpop.f32.mrb[0].mxu0
    %v1112 = vadd.f32 0.0, %v1111
    %v1113 = vpop.f32.mrb[0].mxu0
    %1114 = vmatprep.mubr.f32.mxu0 0.0
    %1115 = vmatmul.mubr.f32.gmra.mrb[0].mxu0 %v958
    %v1116 = vpop.f32.mrb[0].mxu0
    %v1117 = vadd.f32 0.0, %v1116
    %v1118 = vpop.f32.mrb[0].mxu0
    %1119 = vdwg.mxu0
    %v1120 = vadd.f32 %v847, %v1042
    %v1121 = vadd.f32 %v848, %v1047
    %v1122 = vadd.f32 %v849, %v1052
    %v1123 = vadd.f32 %v850, %v1057
    %v1124 = vadd.f32 %v851, %v1062
    %v1125 = vadd.f32 %v852, %v1067
    %v1126 = vadd.f32 %v853, %v1072
    %v1127 = vadd.f32 %v854, %v1077
    %v1128 = vadd.f32 %v855, %v1082
    %v1129 = vadd.f32 %v856, %v1087
    %v1130 = vadd.f32 %v857, %v1092
    %v1131 = vadd.f32 %v858, %v1097
    %v1132 = vadd.f32 %v859, %v1102
    %v1133 = vadd.f32 %v860, %v1107
    %v1134 = vadd.f32 %v861, %v1112
    %v1135 = vadd.f32 %v862, %v1117
    %1136 = vset.pattern.permute.xlu0 4
    %1137 = vperm.xlu0 %1136, %v58
    %v1138 = vpop.permute.xlu0 %1137
    %1139 = vset.pattern.permute.xlu0 4
    %1140 = vperm.xlu0 %1139, %v59
    %v1141 = vpop.permute.xlu0 %1140
    %1142 = vset.pattern.permute.xlu0 4
    %1143 = vperm.xlu0 %1142, %v60
    %v1144 = vpop.permute.xlu0 %1143
    %1145 = vset.pattern.permute.xlu0 4
    %1146 = vperm.xlu0 %1145, %v61
    %v1147 = vpop.permute.xlu0 %1146
    %1148 = vset.pattern.permute.xlu0 4
    %1149 = vperm.xlu0 %1148, %v62
    %v1150 = vpop.permute.xlu0 %1149
    %1151 = vset.pattern.permute.xlu0 4
    %1152 = vperm.xlu0 %1151, %v63
    %v1153 = vpop.permute.xlu0 %1152
    %1154 = vset.pattern.permute.xlu0 4
    %1155 = vperm.xlu0 %1154, %v64
    %v1156 = vpop.permute.xlu0 %1155
    %1157 = vset.pattern.permute.xlu0 4
    %1158 = vperm.xlu0 %1157, %v65
    %v1159 = vpop.permute.xlu0 %1158
    %1160 = vset.pattern.permute.xlu0 4
    %1161 = vperm.xlu0 %1160, %v66
    %v1162 = vpop.permute.xlu0 %1161
    %1163 = vset.pattern.permute.xlu0 4
    %1164 = vperm.xlu0 %1163, %v67
    %v1165 = vpop.permute.xlu0 %1164
    %1166 = vset.pattern.permute.xlu0 4
    %1167 = vperm.xlu0 %1166, %v68
    %v1168 = vpop.permute.xlu0 %1167
    %1169 = vset.pattern.permute.xlu0 4
    %1170 = vperm.xlu0 %1169, %v69
    %v1171 = vpop.permute.xlu0 %1170
    %1172 = vset.pattern.permute.xlu0 4
    %1173 = vperm.xlu0 %1172, %v70
    %v1174 = vpop.permute.xlu0 %1173
    %1175 = vset.pattern.permute.xlu0 4
    %1176 = vperm.xlu0 %1175, %v71
    %v1177 = vpop.permute.xlu0 %1176
    %1178 = vset.pattern.permute.xlu0 4
    %1179 = vperm.xlu0 %1178, %v72
    %v1180 = vpop.permute.xlu0 %1179
    %1181 = vset.pattern.permute.xlu0 4
    %1182 = vperm.xlu0 %1181, %v73
    %v1183 = vpop.permute.xlu0 %1182
    %vm1184 = vcmp.eq.s32.totalorder %v75, %v1138
    %vm1185 = vcmp.eq.s32.totalorder %v75, %v1141
    %vm1186 = vcmp.eq.s32.totalorder %v75, %v1144
    %vm1187 = vcmp.eq.s32.totalorder %v75, %v1147
    %vm1188 = vcmp.eq.s32.totalorder %v75, %v1150
    %vm1189 = vcmp.eq.s32.totalorder %v75, %v1153
    %vm1190 = vcmp.eq.s32.totalorder %v75, %v1156
    %vm1191 = vcmp.eq.s32.totalorder %v75, %v1159
    %vm1192 = vcmp.eq.s32.totalorder %v75, %v1162
    %vm1193 = vcmp.eq.s32.totalorder %v75, %v1165
    %vm1194 = vcmp.eq.s32.totalorder %v75, %v1168
    %vm1195 = vcmp.eq.s32.totalorder %v75, %v1171
    %vm1196 = vcmp.eq.s32.totalorder %v75, %v1174
    %vm1197 = vcmp.eq.s32.totalorder %v75, %v1177
    %vm1198 = vcmp.eq.s32.totalorder %v75, %v1180
    %vm1199 = vcmp.eq.s32.totalorder %v75, %v1183
    %v1200 = vsel %vm1184, 1, 0
    %v1201 = vsel %vm1185, 1, 0
    %v1202 = vsel %vm1186, 1, 0
    %v1203 = vsel %vm1187, 1, 0
    %v1204 = vsel %vm1188, 1, 0
    %v1205 = vsel %vm1189, 1, 0
    %v1206 = vsel %vm1190, 1, 0
    %v1207 = vsel %vm1191, 1, 0
    %v1208 = vsel %vm1192, 1, 0
    %v1209 = vsel %vm1193, 1, 0
    %v1210 = vsel %vm1194, 1, 0
    %v1211 = vsel %vm1195, 1, 0
    %v1212 = vsel %vm1196, 1, 0
    %v1213 = vsel %vm1197, 1, 0
    %v1214 = vsel %vm1198, 1, 0
    %v1215 = vsel %vm1199, 1, 0
    %v1216 = vcvt.s32.f32 %v1200
    %v1217 = vcvt.s32.f32 %v1201
    %v1218 = vcvt.s32.f32 %v1202
    %v1219 = vcvt.s32.f32 %v1203
    %v1220 = vcvt.s32.f32 %v1204
    %v1221 = vcvt.s32.f32 %v1205
    %v1222 = vcvt.s32.f32 %v1206
    %v1223 = vcvt.s32.f32 %v1207
    %v1224 = vcvt.s32.f32 %v1208
    %v1225 = vcvt.s32.f32 %v1209
    %v1226 = vcvt.s32.f32 %v1210
    %v1227 = vcvt.s32.f32 %v1211
    %v1228 = vcvt.s32.f32 %v1212
    %v1229 = vcvt.s32.f32 %v1213
    %v1230 = vcvt.s32.f32 %v1214
    %v1231 = vcvt.s32.f32 %v1215
    %v1232 = vld [vmem:[#allocation3 + $0x200] sm:$0xff]
    %v1233 = vld [vmem:[#allocation3 + $0x208] sm:$0xff]
    %v1234 = vld [vmem:[#allocation3 + $0x210] sm:$0xff]
    %v1235 = vld [vmem:[#allocation3 + $0x218] sm:$0xff]
    %v1236 = vld [vmem:[#allocation3 + $0x220] sm:$0xff]
    %v1237 = vld [vmem:[#allocation3 + $0x228] sm:$0xff]
    %v1238 = vld [vmem:[#allocation3 + $0x230] sm:$0xff]
    %v1239 = vld [vmem:[#allocation3 + $0x238] sm:$0xff]
    %v1240 = vld [vmem:[#allocation3 + $0x240] sm:$0xff]
    %v1241 = vld [vmem:[#allocation3 + $0x248] sm:$0xff]
    %v1242 = vld [vmem:[#allocation3 + $0x250] sm:$0xff]
    %v1243 = vld [vmem:[#allocation3 + $0x258] sm:$0xff]
    %v1244 = vld [vmem:[#allocation3 + $0x260] sm:$0xff]
    %v1245 = vld [vmem:[#allocation3 + $0x268] sm:$0xff]
    %v1246 = vld [vmem:[#allocation3 + $0x270] sm:$0xff]
    %v1247 = vld [vmem:[#allocation3 + $0x278] sm:$0xff]
    %1248 = vmatprep.subr.mxu0 0.0
    %1249 = vmatpush1.msra.mxu0 %v1232
    %1250 = vmatprep.subr.mxu0 0.0
    %1251 = vmatpush1.msra.mxu0 %v1233
    %1252 = vmatprep.subr.mxu0 0.0
    %1253 = vmatpush1.msra.mxu0 %v1234
    %1254 = vmatprep.subr.mxu0 0.0
    %1255 = vmatpush1.msra.mxu0 %v1235
    %1256 = vmatprep.subr.mxu0 0.0
    %1257 = vmatpush1.msra.mxu0 %v1236
    %1258 = vmatprep.subr.mxu0 0.0
    %1259 = vmatpush1.msra.mxu0 %v1237
    %1260 = vmatprep.subr.mxu0 0.0
    %1261 = vmatpush1.msra.mxu0 %v1238
    %1262 = vmatprep.subr.mxu0 0.0
    %1263 = vmatpush1.msra.mxu0 %v1239
    %1264 = vmatprep.subr.mxu0 0.0
    %1265 = vmatpush1.msra.mxu0 %v1240
    %1266 = vmatprep.subr.mxu0 0.0
    %1267 = vmatpush1.msra.mxu0 %v1241
    %1268 = vmatprep.subr.mxu0 0.0
    %1269 = vmatpush1.msra.mxu0 %v1242
    %1270 = vmatprep.subr.mxu0 0.0
    %1271 = vmatpush1.msra.mxu0 %v1243
    %1272 = vmatprep.subr.mxu0 0.0
    %1273 = vmatpush1.msra.mxu0 %v1244
    %1274 = vmatprep.subr.mxu0 0.0
    %1275 = vmatpush1.msra.mxu0 %v1245
    %1276 = vmatprep.subr.mxu0 0.0
    %1277 = vmatpush1.msra.mxu0 %v1246
    %1278 = vmatprep.subr.mxu0 0.0
    %1279 = vmatpush1.msra.mxu0 %v1247
    %1280 = vmatprep.subr.mxu0 0.0
    %1281 = vmatpush1.msra.mxu0 0.0
    %1282 = vmatprep.subr.mxu0 0.0
    %1283 = vmatpush1.msra.mxu0 0.0
    %1284 = vmatprep.subr.mxu0 0.0
    %1285 = vmatpush1.msra.mxu0 0.0
    %1286 = vmatprep.subr.mxu0 0.0
    %1287 = vmatpush1.msra.mxu0 0.0
    %1288 = vmatprep.subr.mxu0 0.0
    %1289 = vmatpush1.msra.mxu0 0.0
    %1290 = vmatprep.subr.mxu0 0.0
    %1291 = vmatpush1.msra.mxu0 0.0
    %1292 = vmatprep.subr.mxu0 0.0
    %1293 = vmatpush1.msra.mxu0 0.0
    %1294 = vmatprep.subr.mxu0 0.0
    %1295 = vmatpush1.msra.mxu0 0.0
    %1296 = vmatprep.subr.mxu0 0.0
    %1297 = vmatpush1.msra.mxu0 0.0
    %1298 = vmatprep.subr.mxu0 0.0
    %1299 = vmatpush1.msra.mxu0 0.0
    %1300 = vmatprep.subr.mxu0 0.0
    %1301 = vmatpush1.msra.mxu0 0.0
    %1302 = vmatprep.subr.mxu0 0.0
    %1303 = vmatpush1.msra.mxu0 0.0
    %1304 = vmatprep.subr.mxu0 0.0
    %1305 = vmatpush1.msra.mxu0 0.0
    %1306 = vmatprep.subr.mxu0 0.0
    %1307 = vmatpush1.msra.mxu0 0.0
    %1308 = vmatprep.subr.mxu0 0.0
    %1309 = vmatpush1.msra.mxu0 0.0
    %1310 = vmatprep.subr.mxu0 0.0
    %1311 = vmatpush1.msra.mxu0 0.0
    %1312 = vmatprep.mubr.f32.mxu0 0.0
    %1313 = vmatmul.mubr.f32.gmra.mrb[0].mxu0 %v1216
    %v1314 = vpop.f32.mrb[0].mxu0
    %v1315 = vadd.f32 0.0, %v1314
    %v1316 = vpop.f32.mrb[0].mxu0
    %1317 = vmatprep.mubr.f32.mxu0 0.0
    %1318 = vmatmul.mubr.f32.gmra.mrb[0].mxu0 %v1217
    %v1319 = vpop.f32.mrb[0].mxu0
    %v1320 = vadd.f32 0.0, %v1319
    %v1321 = vpop.f32.mrb[0].mxu0
    %1322 = vmatprep.mubr.f32.mxu0 0.0
    %1323 = vmatmul.mubr.f32.gmra.mrb[0].mxu0 %v1218
    %v1324 = vpop.f32.mrb[0].mxu0
    %v1325 = vadd.f32 0.0, %v1324
    %v1326 = vpop.f32.mrb[0].mxu0
    %1327 = vmatprep.mubr.f32.mxu0 0.0
    %1328 = vmatmul.mubr.f32.gmra.mrb[0].mxu0 %v1219
    %v1329 = vpop.f32.mrb[0].mxu0
    %v1330 = vadd.f32 0.0, %v1329
    %v1331 = vpop.f32.mrb[0].mxu0
    %1332 = vmatprep.mubr.f32.mxu0 0.0
    %1333 = vmatmul.mubr.f32.gmra.mrb[0].mxu0 %v1220
    %v1334 = vpop.f32.mrb[0].mxu0
    %v1335 = vadd.f32 0.0, %v1334
    %v1336 = vpop.f32.mrb[0].mxu0
    %1337 = vmatprep.mubr.f32.mxu0 0.0
    %1338 = vmatmul.mubr.f32.gmra.mrb[0].mxu0 %v1221
    %v1339 = vpop.f32.mrb[0].mxu0
    %v1340 = vadd.f32 0.0, %v1339
    %v1341 = vpop.f32.mrb[0].mxu0
    %1342 = vmatprep.mubr.f32.mxu0 0.0
    %1343 = vmatmul.mubr.f32.gmra.mrb[0].mxu0 %v1222
    %v1344 = vpop.f32.mrb[0].mxu0
    %v1345 = vadd.f32 0.0, %v1344
    %v1346 = vpop.f32.mrb[0].mxu0
    %1347 = vmatprep.mubr.f32.mxu0 0.0
    %1348 = vmatmul.mubr.f32.gmra.mrb[0].mxu0 %v1223
    %v1349 = vpop.f32.mrb[0].mxu0
    %v1350 = vadd.f32 0.0, %v1349
    %v1351 = vpop.f32.mrb[0].mxu0
    %1352 = vmatprep.mubr.f32.mxu0 0.0
    %1353 = vmatmul.mubr.f32.gmra.mrb[0].mxu0 %v1224
    %v1354 = vpop.f32.mrb[0].mxu0
    %v1355 = vadd.f32 0.0, %v1354
    %v1356 = vpop.f32.mrb[0].mxu0
    %1357 = vmatprep.mubr.f32.mxu0 0.0
    %1358 = vmatmul.mubr.f32.gmra.mrb[0].mxu0 %v1225
    %v1359 = vpop.f32.mrb[0].mxu0
    %v1360 = vadd.f32 0.0, %v1359
    %v1361 = vpop.f32.mrb[0].mxu0
    %1362 = vmatprep.mubr.f32.mxu0 0.0
    %1363 = vmatmul.mubr.f32.gmra.mrb[0].mxu0 %v1226
    %v1364 = vpop.f32.mrb[0].mxu0
    %v1365 = vadd.f32 0.0, %v1364
    %v1366 = vpop.f32.mrb[0].mxu0
    %1367 = vmatprep.mubr.f32.mxu0 0.0
    %1368 = vmatmul.mubr.f32.gmra.mrb[0].mxu0 %v1227
    %v1369 = vpop.f32.mrb[0].mxu0
    %v1370 = vadd.f32 0.0, %v1369
    %v1371 = vpop.f32.mrb[0].mxu0
    %1372 = vmatprep.mubr.f32.mxu0 0.0
    %1373 = vmatmul.mubr.f32.gmra.mrb[0].mxu0 %v1228
    %v1374 = vpop.f32.mrb[0].mxu0
    %v1375 = vadd.f32 0.0, %v1374
    %v1376 = vpop.f32.mrb[0].mxu0
    %1377 = vmatprep.mubr.f32.mxu0 0.0
    %1378 = vmatmul.mubr.f32.gmra.mrb[0].mxu0 %v1229
    %v1379 = vpop.f32.mrb[0].mxu0
    %v1380 = vadd.f32 0.0, %v1379
    %v1381 = vpop.f32.mrb[0].mxu0
    %1382 = vmatprep.mubr.f32.mxu0 0.0
    %1383 = vmatmul.mubr.f32.gmra.mrb[0].mxu0 %v1230
    %v1384 = vpop.f32.mrb[0].mxu0
    %v1385 = vadd.f32 0.0, %v1384
    %v1386 = vpop.f32.mrb[0].mxu0
    %1387 = vmatprep.mubr.f32.mxu0 0.0
    %1388 = vmatmul.mubr.f32.gmra.mrb[0].mxu0 %v1231
    %v1389 = vpop.f32.mrb[0].mxu0
    %v1390 = vadd.f32 0.0, %v1389
    %v1391 = vpop.f32.mrb[0].mxu0
    %1392 = vdwg.mxu0
    %v1393 = vadd.f32 %v1120, %v1315
    %v1394 = vadd.f32 %v1121, %v1320
    %v1395 = vadd.f32 %v1122, %v1325
    %v1396 = vadd.f32 %v1123, %v1330
    %v1397 = vadd.f32 %v1124, %v1335
    %v1398 = vadd.f32 %v1125, %v1340
    %v1399 = vadd.f32 %v1126, %v1345
    %v1400 = vadd.f32 %v1127, %v1350
    %v1401 = vadd.f32 %v1128, %v1355
    %v1402 = vadd.f32 %v1129, %v1360
    %v1403 = vadd.f32 %v1130, %v1365
    %v1404 = vadd.f32 %v1131, %v1370
    %v1405 = vadd.f32 %v1132, %v1375
    %v1406 = vadd.f32 %v1133, %v1380
    %v1407 = vadd.f32 %v1134, %v1385
    %v1408 = vadd.f32 %v1135, %v1390
    %1409 = vset.pattern.permute.xlu0 5
    %1410 = vperm.xlu0 %1409, %v58
    %v1411 = vpop.permute.xlu0 %1410
    %1412 = vset.pattern.permute.xlu0 5
    %1413 = vperm.xlu0 %1412, %v59
    %v1414 = vpop.permute.xlu0 %1413
    %1415 = vset.pattern.permute.xlu0 5
    %1416 = vperm.xlu0 %1415, %v60
    %v1417 = vpop.permute.xlu0 %1416
    %1418 = vset.pattern.permute.xlu0 5
    %1419 = vperm.xlu0 %1418, %v61
    %v1420 = vpop.permute.xlu0 %1419
    %1421 = vset.pattern.permute.xlu0 5
    %1422 = vperm.xlu0 %1421, %v62
    %v1423 = vpop.permute.xlu0 %1422
    %1424 = vset.pattern.permute.xlu0 5
    %1425 = vperm.xlu0 %1424, %v63
    %v1426 = vpop.permute.xlu0 %1425
    %1427 = vset.pattern.permute.xlu0 5
    %1428 = vperm.xlu0 %1427, %v64
    %v1429 = vpop.permute.xlu0 %1428
    %1430 = vset.pattern.permute.xlu0 5
    %1431 = vperm.xlu0 %1430, %v65
    %v1432 = vpop.permute.xlu0 %1431
    %1433 = vset.pattern.permute.xlu0 5
    %1434 = vperm.xlu0 %1433, %v66
    %v1435 = vpop.permute.xlu0 %1434
    %1436 = vset.pattern.permute.xlu0 5
    %1437 = vperm.xlu0 %1436, %v67
    %v1438 = vpop.permute.xlu0 %1437
    %1439 = vset.pattern.permute.xlu0 5
    %1440 = vperm.xlu0 %1439, %v68
    %v1441 = vpop.permute.xlu0 %1440
    %1442 = vset.pattern.permute.xlu0 5
    %1443 = vperm.xlu0 %1442, %v69
    %v1444 = vpop.permute.xlu0 %1443
    %1445 = vset.pattern.permute.xlu0 5
    %1446 = vperm.xlu0 %1445, %v70
    %v1447 = vpop.permute.xlu0 %1446
    %1448 = vset.pattern.permute.xlu0 5
    %1449 = vperm.xlu0 %1448, %v71
    %v1450 = vpop.permute.xlu0 %1449
    %1451 = vset.pattern.permute.xlu0 5
    %1452 = vperm.xlu0 %1451, %v72
    %v1453 = vpop.permute.xlu0 %1452
    %1454 = vset.pattern.permute.xlu0 5
    %1455 = vperm.xlu0 %1454, %v73
    %v1456 = vpop.permute.xlu0 %1455
    %vm1457 = vcmp.eq.s32.totalorder %v75, %v1411
    %vm1458 = vcmp.eq.s32.totalorder %v75, %v1414
    %vm1459 = vcmp.eq.s32.totalorder %v75, %v1417
    %vm1460 = vcmp.eq.s32.totalorder %v75, %v1420
    %vm1461 = vcmp.eq.s32.totalorder %v75, %v1423
    %vm1462 = vcmp.eq.s32.totalorder %v75, %v1426
    %vm1463 = vcmp.eq.s32.totalorder %v75, %v1429
    %vm1464 = vcmp.eq.s32.totalorder %v75, %v1432
    %vm1465 = vcmp.eq.s32.totalorder %v75, %v1435
    %vm1466 = vcmp.eq.s32.totalorder %v75, %v1438
    %vm1467 = vcmp.eq.s32.totalorder %v75, %v1441
    %vm1468 = vcmp.eq.s32.totalorder %v75, %v1444
    %vm1469 = vcmp.eq.s32.totalorder %v75, %v1447
    %vm1470 = vcmp.eq.s32.totalorder %v75, %v1450
    %vm1471 = vcmp.eq.s32.totalorder %v75, %v1453
    %vm1472 = vcmp.eq.s32.totalorder %v75, %v1456
    %v1473 = vsel %vm1457, 1, 0
    %v1474 = vsel %vm1458, 1, 0
    %v1475 = vsel %vm1459, 1, 0
    %v1476 = vsel %vm1460, 1, 0
    %v1477 = vsel %vm1461, 1, 0
    %v1478 = vsel %vm1462, 1, 0
    %v1479 = vsel %vm1463, 1, 0
    %v1480 = vsel %vm1464, 1, 0
    %v1481 = vsel %vm1465, 1, 0
    %v1482 = vsel %vm1466, 1, 0
    %v1483 = vsel %vm1467, 1, 0
    %v1484 = vsel %vm1468, 1, 0
    %v1485 = vsel %vm1469, 1, 0
    %v1486 = vsel %vm1470, 1, 0
    %v1487 = vsel %vm1471, 1, 0
    %v1488 = vsel %vm1472, 1, 0
    %v1489 = vcvt.s32.f32 %v1473
    %v1490 = vcvt.s32.f32 %v1474
    %v1491 = vcvt.s32.f32 %v1475
    %v1492 = vcvt.s32.f32 %v1476
    %v1493 = vcvt.s32.f32 %v1477
    %v1494 = vcvt.s32.f32 %v1478
    %v1495 = vcvt.s32.f32 %v1479
    %v1496 = vcvt.s32.f32 %v1480
    %v1497 = vcvt.s32.f32 %v1481
    %v1498 = vcvt.s32.f32 %v1482
    %v1499 = vcvt.s32.f32 %v1483
    %v1500 = vcvt.s32.f32 %v1484
    %v1501 = vcvt.s32.f32 %v1485
    %v1502 = vcvt.s32.f32 %v1486
    %v1503 = vcvt.s32.f32 %v1487
    %v1504 = vcvt.s32.f32 %v1488
    %v1505 = vld [vmem:[#allocation3 + $0x280] sm:$0xff]
    %v1506 = vld [vmem:[#allocation3 + $0x288] sm:$0xff]
    %v1507 = vld [vmem:[#allocation3 + $0x290] sm:$0xff]
    %v1508 = vld [vmem:[#allocation3 + $0x298] sm:$0xff]
    %v1509 = vld [vmem:[#allocation3 + $0x2a0] sm:$0xff]
    %v1510 = vld [vmem:[#allocation3 + $0x2a8] sm:$0xff]
    %v1511 = vld [vmem:[#allocation3 + $0x2b0] sm:$0xff]
    %v1512 = vld [vmem:[#allocation3 + $0x2b8] sm:$0xff]
    %v1513 = vld [vmem:[#allocation3 + $0x2c0] sm:$0xff]
    %v1514 = vld [vmem:[#allocation3 + $0x2c8] sm:$0xff]
    %v1515 = vld [vmem:[#allocation3 + $0x2d0] sm:$0xff]
    %v1516 = vld [vmem:[#allocation3 + $0x2d8] sm:$0xff]
    %v1517 = vld [vmem:[#allocation3 + $0x2e0] sm:$0xff]
    %v1518 = vld [vmem:[#allocation3 + $0x2e8] sm:$0xff]
    %v1519 = vld [vmem:[#allocation3 + $0x2f0] sm:$0xff]
    %v1520 = vld [vmem:[#allocation3 + $0x2f8] sm:$0xff]
    %1521 = vmatprep.subr.mxu0 0.0
    %1522 = vmatpush1.msra.mxu0 %v1505
    %1523 = vmatprep.subr.mxu0 0.0
    %1524 = vmatpush1.msra.mxu0 %v1506
    %1525 = vmatprep.subr.mxu0 0.0
    %1526 = vmatpush1.msra.mxu0 %v1507
    %1527 = vmatprep.subr.mxu0 0.0
    %1528 = vmatpush1.msra.mxu0 %v1508
    %1529 = vmatprep.subr.mxu0 0.0
    %1530 = vmatpush1.msra.mxu0 %v1509
    %1531 = vmatprep.subr.mxu0 0.0
    %1532 = vmatpush1.msra.mxu0 %v1510
    %1533 = vmatprep.subr.mxu0 0.0
    %1534 = vmatpush1.msra.mxu0 %v1511
    %1535 = vmatprep.subr.mxu0 0.0
    %1536 = vmatpush1.msra.mxu0 %v1512
    %1537 = vmatprep.subr.mxu0 0.0
    %1538 = vmatpush1.msra.mxu0 %v1513
    %1539 = vmatprep.subr.mxu0 0.0
    %1540 = vmatpush1.msra.mxu0 %v1514
    %1541 = vmatprep.subr.mxu0 0.0
    %1542 = vmatpush1.msra.mxu0 %v1515
    %1543 = vmatprep.subr.mxu0 0.0
    %1544 = vmatpush1.msra.mxu0 %v1516
    %1545 = vmatprep.subr.mxu0 0.0
    %1546 = vmatpush1.msra.mxu0 %v1517
    %1547 = vmatprep.subr.mxu0 0.0
    %1548 = vmatpush1.msra.mxu0 %v1518
    %1549 = vmatprep.subr.mxu0 0.0
    %1550 = vmatpush1.msra.mxu0 %v1519
    %1551 = vmatprep.subr.mxu0 0.0
    %1552 = vmatpush1.msra.mxu0 %v1520
    %1553 = vmatprep.subr.mxu0 0.0
    %1554 = vmatpush1.msra.mxu0 0.0
    %1555 = vmatprep.subr.mxu0 0.0
    %1556 = vmatpush1.msra.mxu0 0.0
    %1557 = vmatprep.subr.mxu0 0.0
    %1558 = vmatpush1.msra.mxu0 0.0
    %1559 = vmatprep.subr.mxu0 0.0
    %1560 = vmatpush1.msra.mxu0 0.0
    %1561 = vmatprep.subr.mxu0 0.0
    %1562 = vmatpush1.msra.mxu0 0.0
    %1563 = vmatprep.subr.mxu0 0.0
    %1564 = vmatpush1.msra.mxu0 0.0
    %1565 = vmatprep.subr.mxu0 0.0
    %1566 = vmatpush1.msra.mxu0 0.0
    %1567 = vmatprep.subr.mxu0 0.0
    %1568 = vmatpush1.msra.mxu0 0.0
    %1569 = vmatprep.subr.mxu0 0.0
    %1570 = vmatpush1.msra.mxu0 0.0
    %1571 = vmatprep.subr.mxu0 0.0
    %1572 = vmatpush1.msra.mxu0 0.0
    %1573 = vmatprep.subr.mxu0 0.0
    %1574 = vmatpush1.msra.mxu0 0.0
    %1575 = vmatprep.subr.mxu0 0.0
    %1576 = vmatpush1.msra.mxu0 0.0
    %1577 = vmatprep.subr.mxu0 0.0
    %1578 = vmatpush1.msra.mxu0 0.0
    %1579 = vmatprep.subr.mxu0 0.0
    %1580 = vmatpush1.msra.mxu0 0.0
    %1581 = vmatprep.subr.mxu0 0.0
    %1582 = vmatpush1.msra.mxu0 0.0
    %1583 = vmatprep.subr.mxu0 0.0
    %1584 = vmatpush1.msra.mxu0 0.0
    %1585 = vmatprep.mubr.f32.mxu0 0.0
    %1586 = vmatmul.mubr.f32.gmra.mrb[0].mxu0 %v1489
    %v1587 = vpop.f32.mrb[0].mxu0
    %v1588 = vadd.f32 0.0, %v1587
    %v1589 = vpop.f32.mrb[0].mxu0
    %1590 = vmatprep.mubr.f32.mxu0 0.0
    %1591 = vmatmul.mubr.f32.gmra.mrb[0].mxu0 %v1490
    %v1592 = vpop.f32.mrb[0].mxu0
    %v1593 = vadd.f32 0.0, %v1592
    %v1594 = vpop.f32.mrb[0].mxu0
    %1595 = vmatprep.mubr.f32.mxu0 0.0
    %1596 = vmatmul.mubr.f32.gmra.mrb[0].mxu0 %v1491
    %v1597 = vpop.f32.mrb[0].mxu0
    %v1598 = vadd.f32 0.0, %v1597
    %v1599 = vpop.f32.mrb[0].mxu0
    %1600 = vmatprep.mubr.f32.mxu0 0.0
    %1601 = vmatmul.mubr.f32.gmra.mrb[0].mxu0 %v1492
    %v1602 = vpop.f32.mrb[0].mxu0
    %v1603 = vadd.f32 0.0, %v1602
    %v1604 = vpop.f32.mrb[0].mxu0
    %1605 = vmatprep.mubr.f32.mxu0 0.0
    %1606 = vmatmul.mubr.f32.gmra.mrb[0].mxu0 %v1493
    %v1607 = vpop.f32.mrb[0].mxu0
    %v1608 = vadd.f32 0.0, %v1607
    %v1609 = vpop.f32.mrb[0].mxu0
    %1610 = vmatprep.mubr.f32.mxu0 0.0
    %1611 = vmatmul.mubr.f32.gmra.mrb[0].mxu0 %v1494
    %v1612 = vpop.f32.mrb[0].mxu0
    %v1613 = vadd.f32 0.0, %v1612
    %v1614 = vpop.f32.mrb[0].mxu0
    %1615 = vmatprep.mubr.f32.mxu0 0.0
    %1616 = vmatmul.mubr.f32.gmra.mrb[0].mxu0 %v1495
    %v1617 = vpop.f32.mrb[0].mxu0
    %v1618 = vadd.f32 0.0, %v1617
    %v1619 = vpop.f32.mrb[0].mxu0
    %1620 = vmatprep.mubr.f32.mxu0 0.0
    %1621 = vmatmul.mubr.f32.gmra.mrb[0].mxu0 %v1496
    %v1622 = vpop.f32.mrb[0].mxu0
    %v1623 = vadd.f32 0.0, %v1622
    %v1624 = vpop.f32.mrb[0].mxu0
    %1625 = vmatprep.mubr.f32.mxu0 0.0
    %1626 = vmatmul.mubr.f32.gmra.mrb[0].mxu0 %v1497
    %v1627 = vpop.f32.mrb[0].mxu0
    %v1628 = vadd.f32 0.0, %v1627
    %v1629 = vpop.f32.mrb[0].mxu0
    %1630 = vmatprep.mubr.f32.mxu0 0.0
    %1631 = vmatmul.mubr.f32.gmra.mrb[0].mxu0 %v1498
    %v1632 = vpop.f32.mrb[0].mxu0
    %v1633 = vadd.f32 0.0, %v1632
    %v1634 = vpop.f32.mrb[0].mxu0
    %1635 = vmatprep.mubr.f32.mxu0 0.0
    %1636 = vmatmul.mubr.f32.gmra.mrb[0].mxu0 %v1499
    %v1637 = vpop.f32.mrb[0].mxu0
    %v1638 = vadd.f32 0.0, %v1637
    %v1639 = vpop.f32.mrb[0].mxu0
    %1640 = vmatprep.mubr.f32.mxu0 0.0
    %1641 = vmatmul.mubr.f32.gmra.mrb[0].mxu0 %v1500
    %v1642 = vpop.f32.mrb[0].mxu0
    %v1643 = vadd.f32 0.0, %v1642
    %v1644 = vpop.f32.mrb[0].mxu0
    %1645 = vmatprep.mubr.f32.mxu0 0.0
    %1646 = vmatmul.mubr.f32.gmra.mrb[0].mxu0 %v1501
    %v1647 = vpop.f32.mrb[0].mxu0
    %v1648 = vadd.f32 0.0, %v1647
    %v1649 = vpop.f32.mrb[0].mxu0
    %1650 = vmatprep.mubr.f32.mxu0 0.0
    %1651 = vmatmul.mubr.f32.gmra.mrb[0].mxu0 %v1502
    %v1652 = vpop.f32.mrb[0].mxu0
    %v1653 = vadd.f32 0.0, %v1652
    %v1654 = vpop.f32.mrb[0].mxu0
    %1655 = vmatprep.mubr.f32.mxu0 0.0
    %1656 = vmatmul.mubr.f32.gmra.mrb[0].mxu0 %v1503
    %v1657 = vpop.f32.mrb[0].mxu0
    %v1658 = vadd.f32 0.0, %v1657
    %v1659 = vpop.f32.mrb[0].mxu0
    %1660 = vmatprep.mubr.f32.mxu0 0.0
    %1661 = vmatmul.mubr.f32.gmra.mrb[0].mxu0 %v1504
    %v1662 = vpop.f32.mrb[0].mxu0
    %v1663 = vadd.f32 0.0, %v1662
    %v1664 = vpop.f32.mrb[0].mxu0
    %1665 = vdwg.mxu0
    %v1666 = vadd.f32 %v1393, %v1588
    %v1667 = vadd.f32 %v1394, %v1593
    %v1668 = vadd.f32 %v1395, %v1598
    %v1669 = vadd.f32 %v1396, %v1603
    %v1670 = vadd.f32 %v1397, %v1608
    %v1671 = vadd.f32 %v1398, %v1613
    %v1672 = vadd.f32 %v1399, %v1618
    %v1673 = vadd.f32 %v1400, %v1623
    %v1674 = vadd.f32 %v1401, %v1628
    %v1675 = vadd.f32 %v1402, %v1633
    %v1676 = vadd.f32 %v1403, %v1638
    %v1677 = vadd.f32 %v1404, %v1643
    %v1678 = vadd.f32 %v1405, %v1648
    %v1679 = vadd.f32 %v1406, %v1653
    %v1680 = vadd.f32 %v1407, %v1658
    %v1681 = vadd.f32 %v1408, %v1663
    %1682 = vset.pattern.permute.xlu0 6
    %1683 = vperm.xlu0 %1682, %v58
    %v1684 = vpop.permute.xlu0 %1683
    %1685 = vset.pattern.permute.xlu0 6
    %1686 = vperm.xlu0 %1685, %v59
    %v1687 = vpop.permute.xlu0 %1686
    %1688 = vset.pattern.permute.xlu0 6
    %1689 = vperm.xlu0 %1688, %v60
    %v1690 = vpop.permute.xlu0 %1689
    %1691 = vset.pattern.permute.xlu0 6
    %1692 = vperm.xlu0 %1691, %v61
    %v1693 = vpop.permute.xlu0 %1692
    %1694 = vset.pattern.permute.xlu0 6
    %1695 = vperm.xlu0 %1694, %v62
    %v1696 = vpop.permute.xlu0 %1695
    %1697 = vset.pattern.permute.xlu0 6
    %1698 = vperm.xlu0 %1697, %v63
    %v1699 = vpop.permute.xlu0 %1698
    %1700 = vset.pattern.permute.xlu0 6
    %1701 = vperm.xlu0 %1700, %v64
    %v1702 = vpop.permute.xlu0 %1701
    %1703 = vset.pattern.permute.xlu0 6
    %1704 = vperm.xlu0 %1703, %v65
    %v1705 = vpop.permute.xlu0 %1704
    %1706 = vset.pattern.permute.xlu0 6
    %1707 = vperm.xlu0 %1706, %v66
    %v1708 = vpop.permute.xlu0 %1707
    %1709 = vset.pattern.permute.xlu0 6
    %1710 = vperm.xlu0 %1709, %v67
    %v1711 = vpop.permute.xlu0 %1710
    %1712 = vset.pattern.permute.xlu0 6
    %1713 = vperm.xlu0 %1712, %v68
    %v1714 = vpop.permute.xlu0 %1713
    %1715 = vset.pattern.permute.xlu0 6
    %1716 = vperm.xlu0 %1715, %v69
    %v1717 = vpop.permute.xlu0 %1716
    %1718 = vset.pattern.permute.xlu0 6
    %1719 = vperm.xlu0 %1718, %v70
    %v1720 = vpop.permute.xlu0 %1719
    %1721 = vset.pattern.permute.xlu0 6
    %1722 = vperm.xlu0 %1721, %v71
    %v1723 = vpop.permute.xlu0 %1722
    %1724 = vset.pattern.permute.xlu0 6
    %1725 = vperm.xlu0 %1724, %v72
    %v1726 = vpop.permute.xlu0 %1725
    %1727 = vset.pattern.permute.xlu0 6
    %1728 = vperm.xlu0 %1727, %v73
    %v1729 = vpop.permute.xlu0 %1728
    %vm1730 = vcmp.eq.s32.totalorder %v75, %v1684
    %vm1731 = vcmp.eq.s32.totalorder %v75, %v1687
    %vm1732 = vcmp.eq.s32.totalorder %v75, %v1690
    %vm1733 = vcmp.eq.s32.totalorder %v75, %v1693
    %vm1734 = vcmp.eq.s32.totalorder %v75, %v1696
    %vm1735 = vcmp.eq.s32.totalorder %v75, %v1699
    %vm1736 = vcmp.eq.s32.totalorder %v75, %v1702
    %vm1737 = vcmp.eq.s32.totalorder %v75, %v1705
    %vm1738 = vcmp.eq.s32.totalorder %v75, %v1708
    %vm1739 = vcmp.eq.s32.totalorder %v75, %v1711
    %vm1740 = vcmp.eq.s32.totalorder %v75, %v1714
    %vm1741 = vcmp.eq.s32.totalorder %v75, %v1717
    %vm1742 = vcmp.eq.s32.totalorder %v75, %v1720
    %vm1743 = vcmp.eq.s32.totalorder %v75, %v1723
    %vm1744 = vcmp.eq.s32.totalorder %v75, %v1726
    %vm1745 = vcmp.eq.s32.totalorder %v75, %v1729
    %v1746 = vsel %vm1730, 1, 0
    %v1747 = vsel %vm1731, 1, 0
    %v1748 = vsel %vm1732, 1, 0
    %v1749 = vsel %vm1733, 1, 0
    %v1750 = vsel %vm1734, 1, 0
    %v1751 = vsel %vm1735, 1, 0
    %v1752 = vsel %vm1736, 1, 0
    %v1753 = vsel %vm1737, 1, 0
    %v1754 = vsel %vm1738, 1, 0
    %v1755 = vsel %vm1739, 1, 0
    %v1756 = vsel %vm1740, 1, 0
    %v1757 = vsel %vm1741, 1, 0
    %v1758 = vsel %vm1742, 1, 0
    %v1759 = vsel %vm1743, 1, 0
    %v1760 = vsel %vm1744, 1, 0
    %v1761 = vsel %vm1745, 1, 0
    %v1762 = vcvt.s32.f32 %v1746
    %v1763 = vcvt.s32.f32 %v1747
    %v1764 = vcvt.s32.f32 %v1748
    %v1765 = vcvt.s32.f32 %v1749
    %v1766 = vcvt.s32.f32 %v1750
    %v1767 = vcvt.s32.f32 %v1751
    %v1768 = vcvt.s32.f32 %v1752
    %v1769 = vcvt.s32.f32 %v1753
    %v1770 = vcvt.s32.f32 %v1754
    %v1771 = vcvt.s32.f32 %v1755
    %v1772 = vcvt.s32.f32 %v1756
    %v1773 = vcvt.s32.f32 %v1757
    %v1774 = vcvt.s32.f32 %v1758
    %v1775 = vcvt.s32.f32 %v1759
    %v1776 = vcvt.s32.f32 %v1760
    %v1777 = vcvt.s32.f32 %v1761
    %v1778 = vld [vmem:[#allocation3 + $0x300] sm:$0xff]
    %v1779 = vld [vmem:[#allocation3 + $0x308] sm:$0xff]
    %v1780 = vld [vmem:[#allocation3 + $0x310] sm:$0xff]
    %v1781 = vld [vmem:[#allocation3 + $0x318] sm:$0xff]
    %v1782 = vld [vmem:[#allocation3 + $0x320] sm:$0xff]
    %v1783 = vld [vmem:[#allocation3 + $0x328] sm:$0xff]
    %v1784 = vld [vmem:[#allocation3 + $0x330] sm:$0xff]
    %v1785 = vld [vmem:[#allocation3 + $0x338] sm:$0xff]
    %v1786 = vld [vmem:[#allocation3 + $0x340] sm:$0xff]
    %v1787 = vld [vmem:[#allocation3 + $0x348] sm:$0xff]
    %v1788 = vld [vmem:[#allocation3 + $0x350] sm:$0xff]
    %v1789 = vld [vmem:[#allocation3 + $0x358] sm:$0xff]
    %v1790 = vld [vmem:[#allocation3 + $0x360] sm:$0xff]
    %v1791 = vld [vmem:[#allocation3 + $0x368] sm:$0xff]
    %v1792 = vld [vmem:[#allocation3 + $0x370] sm:$0xff]
    %v1793 = vld [vmem:[#allocation3 + $0x378] sm:$0xff]
    %1794 = vmatprep.subr.mxu0 0.0
    %1795 = vmatpush1.msra.mxu0 %v1778
    %1796 = vmatprep.subr.mxu0 0.0
    %1797 = vmatpush1.msra.mxu0 %v1779
    %1798 = vmatprep.subr.mxu0 0.0
    %1799 = vmatpush1.msra.mxu0 %v1780
    %1800 = vmatprep.subr.mxu0 0.0
    %1801 = vmatpush1.msra.mxu0 %v1781
    %1802 = vmatprep.subr.mxu0 0.0
    %1803 = vmatpush1.msra.mxu0 %v1782
    %1804 = vmatprep.subr.mxu0 0.0
    %1805 = vmatpush1.msra.mxu0 %v1783
    %1806 = vmatprep.subr.mxu0 0.0
    %1807 = vmatpush1.msra.mxu0 %v1784
    %1808 = vmatprep.subr.mxu0 0.0
    %1809 = vmatpush1.msra.mxu0 %v1785
    %1810 = vmatprep.subr.mxu0 0.0
    %1811 = vmatpush1.msra.mxu0 %v1786
    %1812 = vmatprep.subr.mxu0 0.0
    %1813 = vmatpush1.msra.mxu0 %v1787
    %1814 = vmatprep.subr.mxu0 0.0
    %1815 = vmatpush1.msra.mxu0 %v1788
    %1816 = vmatprep.subr.mxu0 0.0
    %1817 = vmatpush1.msra.mxu0 %v1789
    %1818 = vmatprep.subr.mxu0 0.0
    %1819 = vmatpush1.msra.mxu0 %v1790
    %1820 = vmatprep.subr.mxu0 0.0
    %1821 = vmatpush1.msra.mxu0 %v1791
    %1822 = vmatprep.subr.mxu0 0.0
    %1823 = vmatpush1.msra.mxu0 %v1792
    %1824 = vmatprep.subr.mxu0 0.0
    %1825 = vmatpush1.msra.mxu0 %v1793
    %1826 = vmatprep.subr.mxu0 0.0
    %1827 = vmatpush1.msra.mxu0 0.0
    %1828 = vmatprep.subr.mxu0 0.0
    %1829 = vmatpush1.msra.mxu0 0.0
    %1830 = vmatprep.subr.mxu0 0.0
    %1831 = vmatpush1.msra.mxu0 0.0
    %1832 = vmatprep.subr.mxu0 0.0
    %1833 = vmatpush1.msra.mxu0 0.0
    %1834 = vmatprep.subr.mxu0 0.0
    %1835 = vmatpush1.msra.mxu0 0.0
    %1836 = vmatprep.subr.mxu0 0.0
    %1837 = vmatpush1.msra.mxu0 0.0
    %1838 = vmatprep.subr.mxu0 0.0
    %1839 = vmatpush1.msra.mxu0 0.0
    %1840 = vmatprep.subr.mxu0 0.0
    %1841 = vmatpush1.msra.mxu0 0.0
    %1842 = vmatprep.subr.mxu0 0.0
    %1843 = vmatpush1.msra.mxu0 0.0
    %1844 = vmatprep.subr.mxu0 0.0
    %1845 = vmatpush1.msra.mxu0 0.0
    %1846 = vmatprep.subr.mxu0 0.0
    %1847 = vmatpush1.msra.mxu0 0.0
    %1848 = vmatprep.subr.mxu0 0.0
    %1849 = vmatpush1.msra.mxu0 0.0
    %1850 = vmatprep.subr.mxu0 0.0
    %1851 = vmatpush1.msra.mxu0 0.0
    %1852 = vmatprep.subr.mxu0 0.0
    %1853 = vmatpush1.msra.mxu0 0.0
    %1854 = vmatprep.subr.mxu0 0.0
    %1855 = vmatpush1.msra.mxu0 0.0
    %1856 = vmatprep.subr.mxu0 0.0
    %1857 = vmatpush1.msra.mxu0 0.0
    %1858 = vmatprep.mubr.f32.mxu0 0.0
    %1859 = vmatmul.mubr.f32.gmra.mrb[0].mxu0 %v1762
    %v1860 = vpop.f32.mrb[0].mxu0
    %v1861 = vadd.f32 0.0, %v1860
    %v1862 = vpop.f32.mrb[0].mxu0
    %1863 = vmatprep.mubr.f32.mxu0 0.0
    %1864 = vmatmul.mubr.f32.gmra.mrb[0].mxu0 %v1763
    %v1865 = vpop.f32.mrb[0].mxu0
    %v1866 = vadd.f32 0.0, %v1865
    %v1867 = vpop.f32.mrb[0].mxu0
    %1868 = vmatprep.mubr.f32.mxu0 0.0
    %1869 = vmatmul.mubr.f32.gmra.mrb[0].mxu0 %v1764
    %v1870 = vpop.f32.mrb[0].mxu0
    %v1871 = vadd.f32 0.0, %v1870
    %v1872 = vpop.f32.mrb[0].mxu0
    %1873 = vmatprep.mubr.f32.mxu0 0.0
    %1874 = vmatmul.mubr.f32.gmra.mrb[0].mxu0 %v1765
    %v1875 = vpop.f32.mrb[0].mxu0
    %v1876 = vadd.f32 0.0, %v1875
    %v1877 = vpop.f32.mrb[0].mxu0
    %1878 = vmatprep.mubr.f32.mxu0 0.0
    %1879 = vmatmul.mubr.f32.gmra.mrb[0].mxu0 %v1766
    %v1880 = vpop.f32.mrb[0].mxu0
    %v1881 = vadd.f32 0.0, %v1880
    %v1882 = vpop.f32.mrb[0].mxu0
    %1883 = vmatprep.mubr.f32.mxu0 0.0
    %1884 = vmatmul.mubr.f32.gmra.mrb[0].mxu0 %v1767
    %v1885 = vpop.f32.mrb[0].mxu0
    %v1886 = vadd.f32 0.0, %v1885
    %v1887 = vpop.f32.mrb[0].mxu0
    %1888 = vmatprep.mubr.f32.mxu0 0.0
    %1889 = vmatmul.mubr.f32.gmra.mrb[0].mxu0 %v1768
    %v1890 = vpop.f32.mrb[0].mxu0
    %v1891 = vadd.f32 0.0, %v1890
    %v1892 = vpop.f32.mrb[0].mxu0
    %1893 = vmatprep.mubr.f32.mxu0 0.0
    %1894 = vmatmul.mubr.f32.gmra.mrb[0].mxu0 %v1769
    %v1895 = vpop.f32.mrb[0].mxu0
    %v1896 = vadd.f32 0.0, %v1895
    %v1897 = vpop.f32.mrb[0].mxu0
    %1898 = vmatprep.mubr.f32.mxu0 0.0
    %1899 = vmatmul.mubr.f32.gmra.mrb[0].mxu0 %v1770
    %v1900 = vpop.f32.mrb[0].mxu0
    %v1901 = vadd.f32 0.0, %v1900
    %v1902 = vpop.f32.mrb[0].mxu0
    %1903 = vmatprep.mubr.f32.mxu0 0.0
    %1904 = vmatmul.mubr.f32.gmra.mrb[0].mxu0 %v1771
    %v1905 = vpop.f32.mrb[0].mxu0
    %v1906 = vadd.f32 0.0, %v1905
    %v1907 = vpop.f32.mrb[0].mxu0
    %1908 = vmatprep.mubr.f32.mxu0 0.0
    %1909 = vmatmul.mubr.f32.gmra.mrb[0].mxu0 %v1772
    %v1910 = vpop.f32.mrb[0].mxu0
    %v1911 = vadd.f32 0.0, %v1910
    %v1912 = vpop.f32.mrb[0].mxu0
    %1913 = vmatprep.mubr.f32.mxu0 0.0
    %1914 = vmatmul.mubr.f32.gmra.mrb[0].mxu0 %v1773
    %v1915 = vpop.f32.mrb[0].mxu0
    %v1916 = vadd.f32 0.0, %v1915
    %v1917 = vpop.f32.mrb[0].mxu0
    %1918 = vmatprep.mubr.f32.mxu0 0.0
    %1919 = vmatmul.mubr.f32.gmra.mrb[0].mxu0 %v1774
    %v1920 = vpop.f32.mrb[0].mxu0
    %v1921 = vadd.f32 0.0, %v1920
    %v1922 = vpop.f32.mrb[0].mxu0
    %1923 = vmatprep.mubr.f32.mxu0 0.0
    %1924 = vmatmul.mubr.f32.gmra.mrb[0].mxu0 %v1775
    %v1925 = vpop.f32.mrb[0].mxu0
    %v1926 = vadd.f32 0.0, %v1925
    %v1927 = vpop.f32.mrb[0].mxu0
    %1928 = vmatprep.mubr.f32.mxu0 0.0
    %1929 = vmatmul.mubr.f32.gmra.mrb[0].mxu0 %v1776
    %v1930 = vpop.f32.mrb[0].mxu0
    %v1931 = vadd.f32 0.0, %v1930
    %v1932 = vpop.f32.mrb[0].mxu0
    %1933 = vmatprep.mubr.f32.mxu0 0.0
    %1934 = vmatmul.mubr.f32.gmra.mrb[0].mxu0 %v1777
    %v1935 = vpop.f32.mrb[0].mxu0
    %v1936 = vadd.f32 0.0, %v1935
    %v1937 = vpop.f32.mrb[0].mxu0
    %1938 = vdwg.mxu0
    %v1939 = vadd.f32 %v1666, %v1861
    %v1940 = vadd.f32 %v1667, %v1866
    %v1941 = vadd.f32 %v1668, %v1871
    %v1942 = vadd.f32 %v1669, %v1876
    %v1943 = vadd.f32 %v1670, %v1881
    %v1944 = vadd.f32 %v1671, %v1886
    %v1945 = vadd.f32 %v1672, %v1891
    %v1946 = vadd.f32 %v1673, %v1896
    %v1947 = vadd.f32 %v1674, %v1901
    %v1948 = vadd.f32 %v1675, %v1906
    %v1949 = vadd.f32 %v1676, %v1911
    %v1950 = vadd.f32 %v1677, %v1916
    %v1951 = vadd.f32 %v1678, %v1921
    %v1952 = vadd.f32 %v1679, %v1926
    %v1953 = vadd.f32 %v1680, %v1931
    %v1954 = vadd.f32 %v1681, %v1936
    %1955 = vset.pattern.permute.xlu0 7
    %1956 = vperm.xlu0 %1955, %v58
    %v1957 = vpop.permute.xlu0 %1956
    %1958 = vset.pattern.permute.xlu0 7
    %1959 = vperm.xlu0 %1958, %v59
    %v1960 = vpop.permute.xlu0 %1959
    %1961 = vset.pattern.permute.xlu0 7
    %1962 = vperm.xlu0 %1961, %v60
    %v1963 = vpop.permute.xlu0 %1962
    %1964 = vset.pattern.permute.xlu0 7
    %1965 = vperm.xlu0 %1964, %v61
    %v1966 = vpop.permute.xlu0 %1965
    %1967 = vset.pattern.permute.xlu0 7
    %1968 = vperm.xlu0 %1967, %v62
    %v1969 = vpop.permute.xlu0 %1968
    %1970 = vset.pattern.permute.xlu0 7
    %1971 = vperm.xlu0 %1970, %v63
    %v1972 = vpop.permute.xlu0 %1971
    %1973 = vset.pattern.permute.xlu0 7
    %1974 = vperm.xlu0 %1973, %v64
    %v1975 = vpop.permute.xlu0 %1974
    %1976 = vset.pattern.permute.xlu0 7
    %1977 = vperm.xlu0 %1976, %v65
    %v1978 = vpop.permute.xlu0 %1977
    %1979 = vset.pattern.permute.xlu0 7
    %1980 = vperm.xlu0 %1979, %v66
    %v1981 = vpop.permute.xlu0 %1980
    %1982 = vset.pattern.permute.xlu0 7
    %1983 = vperm.xlu0 %1982, %v67
    %v1984 = vpop.permute.xlu0 %1983
    %1985 = vset.pattern.permute.xlu0 7
    %1986 = vperm.xlu0 %1985, %v68
    %v1987 = vpop.permute.xlu0 %1986
    %1988 = vset.pattern.permute.xlu0 7
    %1989 = vperm.xlu0 %1988, %v69
    %v1990 = vpop.permute.xlu0 %1989
    %1991 = vset.pattern.permute.xlu0 7
    %1992 = vperm.xlu0 %1991, %v70
    %v1993 = vpop.permute.xlu0 %1992
    %1994 = vset.pattern.permute.xlu0 7
    %1995 = vperm.xlu0 %1994, %v71
    %v1996 = vpop.permute.xlu0 %1995
    %1997 = vset.pattern.permute.xlu0 7
    %1998 = vperm.xlu0 %1997, %v72
    %v1999 = vpop.permute.xlu0 %1998
    %2000 = vset.pattern.permute.xlu0 7
    %2001 = vperm.xlu0 %2000, %v73
    %v2002 = vpop.permute.xlu0 %2001
    %vm2003 = vcmp.eq.s32.totalorder %v75, %v1957
    %vm2004 = vcmp.eq.s32.totalorder %v75, %v1960
    %vm2005 = vcmp.eq.s32.totalorder %v75, %v1963
    %vm2006 = vcmp.eq.s32.totalorder %v75, %v1966
    %vm2007 = vcmp.eq.s32.totalorder %v75, %v1969
    %vm2008 = vcmp.eq.s32.totalorder %v75, %v1972
    %vm2009 = vcmp.eq.s32.totalorder %v75, %v1975
    %vm2010 = vcmp.eq.s32.totalorder %v75, %v1978
    %vm2011 = vcmp.eq.s32.totalorder %v75, %v1981
    %vm2012 = vcmp.eq.s32.totalorder %v75, %v1984
    %vm2013 = vcmp.eq.s32.totalorder %v75, %v1987
    %vm2014 = vcmp.eq.s32.totalorder %v75, %v1990
    %vm2015 = vcmp.eq.s32.totalorder %v75, %v1993
    %vm2016 = vcmp.eq.s32.totalorder %v75, %v1996
    %vm2017 = vcmp.eq.s32.totalorder %v75, %v1999
    %vm2018 = vcmp.eq.s32.totalorder %v75, %v2002
    %v2019 = vsel %vm2003, 1, 0
    %v2020 = vsel %vm2004, 1, 0
    %v2021 = vsel %vm2005, 1, 0
    %v2022 = vsel %vm2006, 1, 0
    %v2023 = vsel %vm2007, 1, 0
    %v2024 = vsel %vm2008, 1, 0
    %v2025 = vsel %vm2009, 1, 0
    %v2026 = vsel %vm2010, 1, 0
    %v2027 = vsel %vm2011, 1, 0
    %v2028 = vsel %vm2012, 1, 0
    %v2029 = vsel %vm2013, 1, 0
    %v2030 = vsel %vm2014, 1, 0
    %v2031 = vsel %vm2015, 1, 0
    %v2032 = vsel %vm2016, 1, 0
    %v2033 = vsel %vm2017, 1, 0
    %v2034 = vsel %vm2018, 1, 0
    %v2035 = vcvt.s32.f32 %v2019
    %v2036 = vcvt.s32.f32 %v2020
    %v2037 = vcvt.s32.f32 %v2021
    %v2038 = vcvt.s32.f32 %v2022
    %v2039 = vcvt.s32.f32 %v2023
    %v2040 = vcvt.s32.f32 %v2024
    %v2041 = vcvt.s32.f32 %v2025
    %v2042 = vcvt.s32.f32 %v2026
    %v2043 = vcvt.s32.f32 %v2027
    %v2044 = vcvt.s32.f32 %v2028
    %v2045 = vcvt.s32.f32 %v2029
    %v2046 = vcvt.s32.f32 %v2030
    %v2047 = vcvt.s32.f32 %v2031
    %v2048 = vcvt.s32.f32 %v2032
    %v2049 = vcvt.s32.f32 %v2033
    %v2050 = vcvt.s32.f32 %v2034
    %v2051 = vld [vmem:[#allocation3 + $0x380] sm:$0xff]
    %v2052 = vld [vmem:[#allocation3 + $0x388] sm:$0xff]
    %v2053 = vld [vmem:[#allocation3 + $0x390] sm:$0xff]
    %v2054 = vld [vmem:[#allocation3 + $0x398] sm:$0xff]
    %v2055 = vld [vmem:[#allocation3 + $0x3a0] sm:$0xff]
    %v2056 = vld [vmem:[#allocation3 + $0x3a8] sm:$0xff]
    %v2057 = vld [vmem:[#allocation3 + $0x3b0] sm:$0xff]
    %v2058 = vld [vmem:[#allocation3 + $0x3b8] sm:$0xff]
    %v2059 = vld [vmem:[#allocation3 + $0x3c0] sm:$0xff]
    %v2060 = vld [vmem:[#allocation3 + $0x3c8] sm:$0xff]
    %v2061 = vld [vmem:[#allocation3 + $0x3d0] sm:$0xff]
    %v2062 = vld [vmem:[#allocation3 + $0x3d8] sm:$0xff]
    %v2063 = vld [vmem:[#allocation3 + $0x3e0] sm:$0xff]
    %v2064 = vld [vmem:[#allocation3 + $0x3e8] sm:$0xff]
    %v2065 = vld [vmem:[#allocation3 + $0x3f0] sm:$0xff]
    %v2066 = vld [vmem:[#allocation3 + $0x3f8] sm:$0xff]
    %2067 = vmatprep.subr.mxu0 0.0
    %2068 = vmatpush1.msra.mxu0 %v2051
    %2069 = vmatprep.subr.mxu0 0.0
    %2070 = vmatpush1.msra.mxu0 %v2052
    %2071 = vmatprep.subr.mxu0 0.0
    %2072 = vmatpush1.msra.mxu0 %v2053
    %2073 = vmatprep.subr.mxu0 0.0
    %2074 = vmatpush1.msra.mxu0 %v2054
    %2075 = vmatprep.subr.mxu0 0.0
    %2076 = vmatpush1.msra.mxu0 %v2055
    %2077 = vmatprep.subr.mxu0 0.0
    %2078 = vmatpush1.msra.mxu0 %v2056
    %2079 = vmatprep.subr.mxu0 0.0
    %2080 = vmatpush1.msra.mxu0 %v2057
    %2081 = vmatprep.subr.mxu0 0.0
    %2082 = vmatpush1.msra.mxu0 %v2058
    %2083 = vmatprep.subr.mxu0 0.0
    %2084 = vmatpush1.msra.mxu0 %v2059
    %2085 = vmatprep.subr.mxu0 0.0
    %2086 = vmatpush1.msra.mxu0 %v2060
    %2087 = vmatprep.subr.mxu0 0.0
    %2088 = vmatpush1.msra.mxu0 %v2061
    %2089 = vmatprep.subr.mxu0 0.0
    %2090 = vmatpush1.msra.mxu0 %v2062
    %2091 = vmatprep.subr.mxu0 0.0
    %2092 = vmatpush1.msra.mxu0 %v2063
    %2093 = vmatprep.subr.mxu0 0.0
    %2094 = vmatpush1.msra.mxu0 %v2064
    %2095 = vmatprep.subr.mxu0 0.0
    %2096 = vmatpush1.msra.mxu0 %v2065
    %2097 = vmatprep.subr.mxu0 0.0
    %2098 = vmatpush1.msra.mxu0 %v2066
    %2099 = vmatprep.subr.mxu0 0.0
    %2100 = vmatpush1.msra.mxu0 0.0
    %2101 = vmatprep.subr.mxu0 0.0
    %2102 = vmatpush1.msra.mxu0 0.0
    %2103 = vmatprep.subr.mxu0 0.0
    %2104 = vmatpush1.msra.mxu0 0.0
    %2105 = vmatprep.subr.mxu0 0.0
    %2106 = vmatpush1.msra.mxu0 0.0
    %2107 = vmatprep.subr.mxu0 0.0
    %2108 = vmatpush1.msra.mxu0 0.0
    %2109 = vmatprep.subr.mxu0 0.0
    %2110 = vmatpush1.msra.mxu0 0.0
    %2111 = vmatprep.subr.mxu0 0.0
    %2112 = vmatpush1.msra.mxu0 0.0
    %2113 = vmatprep.subr.mxu0 0.0
    %2114 = vmatpush1.msra.mxu0 0.0
    %2115 = vmatprep.subr.mxu0 0.0
    %2116 = vmatpush1.msra.mxu0 0.0
    %2117 = vmatprep.subr.mxu0 0.0
    %2118 = vmatpush1.msra.mxu0 0.0
    %2119 = vmatprep.subr.mxu0 0.0
    %2120 = vmatpush1.msra.mxu0 0.0
    %2121 = vmatprep.subr.mxu0 0.0
    %2122 = vmatpush1.msra.mxu0 0.0
    %2123 = vmatprep.subr.mxu0 0.0
    %2124 = vmatpush1.msra.mxu0 0.0
    %2125 = vmatprep.subr.mxu0 0.0
    %2126 = vmatpush1.msra.mxu0 0.0
    %2127 = vmatprep.subr.mxu0 0.0
    %2128 = vmatpush1.msra.mxu0 0.0
    %2129 = vmatprep.subr.mxu0 0.0
    %2130 = vmatpush1.msra.mxu0 0.0
    %2131 = vmatprep.mubr.f32.mxu0 0.0
    %2132 = vmatmul.mubr.f32.gmra.mrb[0].mxu0 %v2035
    %v2133 = vpop.f32.mrb[0].mxu0
    %v2134 = vadd.f32 0.0, %v2133
    %v2135 = vpop.f32.mrb[0].mxu0
    %2136 = vmatprep.mubr.f32.mxu0 0.0
    %2137 = vmatmul.mubr.f32.gmra.mrb[0].mxu0 %v2036
    %v2138 = vpop.f32.mrb[0].mxu0
    %v2139 = vadd.f32 0.0, %v2138
    %v2140 = vpop.f32.mrb[0].mxu0
    %2141 = vmatprep.mubr.f32.mxu0 0.0
    %2142 = vmatmul.mubr.f32.gmra.mrb[0].mxu0 %v2037
    %v2143 = vpop.f32.mrb[0].mxu0
    %v2144 = vadd.f32 0.0, %v2143
    %v2145 = vpop.f32.mrb[0].mxu0
    %2146 = vmatprep.mubr.f32.mxu0 0.0
    %2147 = vmatmul.mubr.f32.gmra.mrb[0].mxu0 %v2038
    %v2148 = vpop.f32.mrb[0].mxu0
    %v2149 = vadd.f32 0.0, %v2148
    %v2150 = vpop.f32.mrb[0].mxu0
    %2151 = vmatprep.mubr.f32.mxu0 0.0
    %2152 = vmatmul.mubr.f32.gmra.mrb[0].mxu0 %v2039
    %v2153 = vpop.f32.mrb[0].mxu0
    %v2154 = vadd.f32 0.0, %v2153
    %v2155 = vpop.f32.mrb[0].mxu0
    %2156 = vmatprep.mubr.f32.mxu0 0.0
    %2157 = vmatmul.mubr.f32.gmra.mrb[0].mxu0 %v2040
    %v2158 = vpop.f32.mrb[0].mxu0
    %v2159 = vadd.f32 0.0, %v2158
    %v2160 = vpop.f32.mrb[0].mxu0
    %2161 = vmatprep.mubr.f32.mxu0 0.0
    %2162 = vmatmul.mubr.f32.gmra.mrb[0].mxu0 %v2041
    %v2163 = vpop.f32.mrb[0].mxu0
    %v2164 = vadd.f32 0.0, %v2163
    %v2165 = vpop.f32.mrb[0].mxu0
    %2166 = vmatprep.mubr.f32.mxu0 0.0
    %2167 = vmatmul.mubr.f32.gmra.mrb[0].mxu0 %v2042
    %v2168 = vpop.f32.mrb[0].mxu0
    %v2169 = vadd.f32 0.0, %v2168
    %v2170 = vpop.f32.mrb[0].mxu0
    %2171 = vmatprep.mubr.f32.mxu0 0.0
    %2172 = vmatmul.mubr.f32.gmra.mrb[0].mxu0 %v2043
    %v2173 = vpop.f32.mrb[0].mxu0
    %v2174 = vadd.f32 0.0, %v2173
    %v2175 = vpop.f32.mrb[0].mxu0
    %2176 = vmatprep.mubr.f32.mxu0 0.0
    %2177 = vmatmul.mubr.f32.gmra.mrb[0].mxu0 %v2044
    %v2178 = vpop.f32.mrb[0].mxu0
    %v2179 = vadd.f32 0.0, %v2178
    %v2180 = vpop.f32.mrb[0].mxu0
    %2181 = vmatprep.mubr.f32.mxu0 0.0
    %2182 = vmatmul.mubr.f32.gmra.mrb[0].mxu0 %v2045
    %v2183 = vpop.f32.mrb[0].mxu0
    %v2184 = vadd.f32 0.0, %v2183
    %v2185 = vpop.f32.mrb[0].mxu0
    %2186 = vmatprep.mubr.f32.mxu0 0.0
    %2187 = vmatmul.mubr.f32.gmra.mrb[0].mxu0 %v2046
    %v2188 = vpop.f32.mrb[0].mxu0
    %v2189 = vadd.f32 0.0, %v2188
    %v2190 = vpop.f32.mrb[0].mxu0
    %2191 = vmatprep.mubr.f32.mxu0 0.0
    %2192 = vmatmul.mubr.f32.gmra.mrb[0].mxu0 %v2047
    %v2193 = vpop.f32.mrb[0].mxu0
    %v2194 = vadd.f32 0.0, %v2193
    %v2195 = vpop.f32.mrb[0].mxu0
    %2196 = vmatprep.mubr.f32.mxu0 0.0
    %2197 = vmatmul.mubr.f32.gmra.mrb[0].mxu0 %v2048
    %v2198 = vpop.f32.mrb[0].mxu0
    %v2199 = vadd.f32 0.0, %v2198
    %v2200 = vpop.f32.mrb[0].mxu0
    %2201 = vmatprep.mubr.f32.mxu0 0.0
    %2202 = vmatmul.mubr.f32.gmra.mrb[0].mxu0 %v2049
    %v2203 = vpop.f32.mrb[0].mxu0
    %v2204 = vadd.f32 0.0, %v2203
    %v2205 = vpop.f32.mrb[0].mxu0
    %2206 = vmatprep.mubr.f32.mxu0 0.0
    %2207 = vmatmul.mubr.f32.gmra.mrb[0].mxu0 %v2050
    %v2208 = vpop.f32.mrb[0].mxu0
    %v2209 = vadd.f32 0.0, %v2208
    %v2210 = vpop.f32.mrb[0].mxu0
    %2211 = vdwg.mxu0
    %v2212 = vadd.f32 %v1939, %v2134
    %v2213 = vadd.f32 %v1940, %v2139
    %v2214 = vadd.f32 %v1941, %v2144
    %v2215 = vadd.f32 %v1942, %v2149
    %v2216 = vadd.f32 %v1943, %v2154
    %v2217 = vadd.f32 %v1944, %v2159
    %v2218 = vadd.f32 %v1945, %v2164
    %v2219 = vadd.f32 %v1946, %v2169
    %v2220 = vadd.f32 %v1947, %v2174
    %v2221 = vadd.f32 %v1948, %v2179
    %v2222 = vadd.f32 %v1949, %v2184
    %v2223 = vadd.f32 %v1950, %v2189
    %v2224 = vadd.f32 %v1951, %v2194
    %v2225 = vadd.f32 %v1952, %v2199
    %v2226 = vadd.f32 %v1953, %v2204
    %v2227 = vadd.f32 %v1954, %v2209
    %v2228 = vld [vmem:[#allocation6] sm:$0xff]
    %v2229 = vld [vmem:[#allocation6 + $0x8] sm:$0xff]
    %v2230 = vld [vmem:[#allocation6 + $0x10] sm:$0xff]
    %v2231 = vld [vmem:[#allocation6 + $0x18] sm:$0xff]
    %v2232 = vld [vmem:[#allocation6 + $0x20] sm:$0xff]
    %v2233 = vld [vmem:[#allocation6 + $0x28] sm:$0xff]
    %v2234 = vld [vmem:[#allocation6 + $0x30] sm:$0xff]
    %v2235 = vld [vmem:[#allocation6 + $0x38] sm:$0xff]
    %v2236 = vld [vmem:[#allocation6 + $0x40] sm:$0xff]
    %v2237 = vld [vmem:[#allocation6 + $0x48] sm:$0xff]
    %v2238 = vld [vmem:[#allocation6 + $0x50] sm:$0xff]
    %v2239 = vld [vmem:[#allocation6 + $0x58] sm:$0xff]
    %v2240 = vld [vmem:[#allocation6 + $0x60] sm:$0xff]
    %v2241 = vld [vmem:[#allocation6 + $0x68] sm:$0xff]
    %v2242 = vld [vmem:[#allocation6 + $0x70] sm:$0xff]
    %v2243 = vld [vmem:[#allocation6 + $0x78] sm:$0xff]
    %v2244 = vld [vmem:[#allocation6 + $0x80] sm:$0xff]
    %v2245 = vld [vmem:[#allocation6 + $0x88] sm:$0xff]
    %v2246 = vld [vmem:[#allocation6 + $0x90] sm:$0xff]
    %v2247 = vld [vmem:[#allocation6 + $0x98] sm:$0xff]
    %v2248 = vld [vmem:[#allocation6 + $0xa0] sm:$0xff]
    %v2249 = vld [vmem:[#allocation6 + $0xa8] sm:$0xff]
    %v2250 = vld [vmem:[#allocation6 + $0xb0] sm:$0xff]
    %v2251 = vld [vmem:[#allocation6 + $0xb8] sm:$0xff]
    %v2252 = vld [vmem:[#allocation6 + $0xc0] sm:$0xff]
    %v2253 = vld [vmem:[#allocation6 + $0xc8] sm:$0xff]
    %v2254 = vld [vmem:[#allocation6 + $0xd0] sm:$0xff]
    %v2255 = vld [vmem:[#allocation6 + $0xd8] sm:$0xff]
    %v2256 = vld [vmem:[#allocation6 + $0xe0] sm:$0xff]
    %v2257 = vld [vmem:[#allocation6 + $0xe8] sm:$0xff]
    %v2258 = vld [vmem:[#allocation6 + $0xf0] sm:$0xff]
    %v2259 = vld [vmem:[#allocation6 + $0xf8] sm:$0xff]
    %v2260 = vld [vmem:[#allocation6 + $0x100] sm:$0xff]
    %v2261 = vld [vmem:[#allocation6 + $0x108] sm:$0xff]
    %v2262 = vld [vmem:[#allocation6 + $0x110] sm:$0xff]
    %v2263 = vld [vmem:[#allocation6 + $0x118] sm:$0xff]
    %v2264 = vld [vmem:[#allocation6 + $0x120] sm:$0xff]
    %v2265 = vld [vmem:[#allocation6 + $0x128] sm:$0xff]
    %v2266 = vld [vmem:[#allocation6 + $0x130] sm:$0xff]
    %v2267 = vld [vmem:[#allocation6 + $0x138] sm:$0xff]
    %v2268 = vld [vmem:[#allocation6 + $0x140] sm:$0xff]
    %v2269 = vld [vmem:[#allocation6 + $0x148] sm:$0xff]
    %v2270 = vld [vmem:[#allocation6 + $0x150] sm:$0xff]
    %v2271 = vld [vmem:[#allocation6 + $0x158] sm:$0xff]
    %v2272 = vld [vmem:[#allocation6 + $0x160] sm:$0xff]
    %v2273 = vld [vmem:[#allocation6 + $0x168] sm:$0xff]
    %v2274 = vld [vmem:[#allocation6 + $0x170] sm:$0xff]
    %v2275 = vld [vmem:[#allocation6 + $0x178] sm:$0xff]
    %v2276 = vld [vmem:[%s3] sm:$0x1]
    %v2277 = vlaneseq
    %v2278 = vshrl.u32 %v2277, 7
    %v2279 = vadd.s32 %v2278, 8
    %v2280 = vadd.s32 %v2278, 16
    %v2281 = vadd.s32 %v2278, 24
    %v2282 = vadd.s32 %v2278, 32
    %v2283 = vadd.s32 %v2278, 40
    %v2284 = vadd.s32 %v2278, 48
    %v2285 = vadd.s32 %v2278, 56
    %v2286 = vadd.s32 %v2278, 64
    %v2287 = vadd.s32 %v2278, 72
    %v2288 = vadd.s32 %v2278, 80
    %v2289 = vadd.s32 %v2278, 88
    %v2290 = vadd.s32 %v2278, 96
    %v2291 = vadd.s32 %v2278, 104
    %v2292 = vadd.s32 %v2278, 112
    %v2293 = vadd.s32 %v2278, 120
    %vm2294 = vcmp.lt.s32.totalorder %v2278, 0
    %v2295 = vsub.s32 0, %v2278
    %v2296 = vsel %vm2294, %v2295, %v2278
    %v2297 = vshrl.u32 %v2296, 6
    %v2298 = vand.u32 %v2296, 63
    %v2299 = vsub.s32 0, %v2298
    %v2300 = vsel %vm2294, %v2299, %v2298
    %vm2301 = vcmp.lt.s32.totalorder %v2279, 0
    %v2302 = vsub.s32 0, %v2279
    %v2303 = vsel %vm2301, %v2302, %v2279
    %v2304 = vshrl.u32 %v2303, 6
    %v2305 = vand.u32 %v2303, 63
    %v2306 = vsub.s32 0, %v2305
    %v2307 = vsel %vm2301, %v2306, %v2305
    %vm2308 = vcmp.lt.s32.totalorder %v2280, 0
    %v2309 = vsub.s32 0, %v2280
    %v2310 = vsel %vm2308, %v2309, %v2280
    %v2311 = vshrl.u32 %v2310, 6
    %v2312 = vand.u32 %v2310, 63
    %v2313 = vsub.s32 0, %v2312
    %v2314 = vsel %vm2308, %v2313, %v2312
    %vm2315 = vcmp.lt.s32.totalorder %v2281, 0
    %v2316 = vsub.s32 0, %v2281
    %v2317 = vsel %vm2315, %v2316, %v2281
    %v2318 = vshrl.u32 %v2317, 6
    %v2319 = vand.u32 %v2317, 63
    %v2320 = vsub.s32 0, %v2319
    %v2321 = vsel %vm2315, %v2320, %v2319
    %vm2322 = vcmp.lt.s32.totalorder %v2282, 0
    %v2323 = vsub.s32 0, %v2282
    %v2324 = vsel %vm2322, %v2323, %v2282
    %v2325 = vshrl.u32 %v2324, 6
    %v2326 = vand.u32 %v2324, 63
    %v2327 = vsub.s32 0, %v2326
    %v2328 = vsel %vm2322, %v2327, %v2326
    %vm2329 = vcmp.lt.s32.totalorder %v2283, 0
    %v2330 = vsub.s32 0, %v2283
    %v2331 = vsel %vm2329, %v2330, %v2283
    %v2332 = vshrl.u32 %v2331, 6
    %v2333 = vand.u32 %v2331, 63
    %v2334 = vsub.s32 0, %v2333
    %v2335 = vsel %vm2329, %v2334, %v2333
    %vm2336 = vcmp.lt.s32.totalorder %v2284, 0
    %v2337 = vsub.s32 0, %v2284
    %v2338 = vsel %vm2336, %v2337, %v2284
    %v2339 = vshrl.u32 %v2338, 6
    %v2340 = vand.u32 %v2338, 63
    %v2341 = vsub.s32 0, %v2340
    %v2342 = vsel %vm2336, %v2341, %v2340
    %vm2343 = vcmp.lt.s32.totalorder %v2285, 0
    %v2344 = vsub.s32 0, %v2285
    %v2345 = vsel %vm2343, %v2344, %v2285
    %v2346 = vshrl.u32 %v2345, 6
    %v2347 = vand.u32 %v2345, 63
    %v2348 = vsub.s32 0, %v2347
    %v2349 = vsel %vm2343, %v2348, %v2347
    %vm2350 = vcmp.lt.s32.totalorder %v2286, 0
    %v2351 = vsub.s32 0, %v2286
    %v2352 = vsel %vm2350, %v2351, %v2286
    %v2353 = vshrl.u32 %v2352, 6
    %v2354 = vand.u32 %v2352, 63
    %v2355 = vsub.s32 0, %v2354
    %v2356 = vsel %vm2350, %v2355, %v2354
    %vm2357 = vcmp.lt.s32.totalorder %v2287, 0
    %v2358 = vsub.s32 0, %v2287
    %v2359 = vsel %vm2357, %v2358, %v2287
    %v2360 = vshrl.u32 %v2359, 6
    %v2361 = vand.u32 %v2359, 63
    %v2362 = vsub.s32 0, %v2361
    %v2363 = vsel %vm2357, %v2362, %v2361
    %vm2364 = vcmp.lt.s32.totalorder %v2288, 0
    %v2365 = vsub.s32 0, %v2288
    %v2366 = vsel %vm2364, %v2365, %v2288
    %v2367 = vshrl.u32 %v2366, 6
    %v2368 = vand.u32 %v2366, 63
    %v2369 = vsub.s32 0, %v2368
    %v2370 = vsel %vm2364, %v2369, %v2368
    %vm2371 = vcmp.lt.s32.totalorder %v2289, 0
    %v2372 = vsub.s32 0, %v2289
    %v2373 = vsel %vm2371, %v2372, %v2289
    %v2374 = vshrl.u32 %v2373, 6
    %v2375 = vand.u32 %v2373, 63
    %v2376 = vsub.s32 0, %v2375
    %v2377 = vsel %vm2371, %v2376, %v2375
    %vm2378 = vcmp.lt.s32.totalorder %v2290, 0
    %v2379 = vsub.s32 0, %v2290
    %v2380 = vsel %vm2378, %v2379, %v2290
    %v2381 = vshrl.u32 %v2380, 6
    %v2382 = vand.u32 %v2380, 63
    %v2383 = vsub.s32 0, %v2382
    %v2384 = vsel %vm2378, %v2383, %v2382
    %vm2385 = vcmp.lt.s32.totalorder %v2291, 0
    %v2386 = vsub.s32 0, %v2291
    %v2387 = vsel %vm2385, %v2386, %v2291
    %v2388 = vshrl.u32 %v2387, 6
    %v2389 = vand.u32 %v2387, 63
    %v2390 = vsub.s32 0, %v2389
    %v2391 = vsel %vm2385, %v2390, %v2389
    %vm2392 = vcmp.lt.s32.totalorder %v2292, 0
    %v2393 = vsub.s32 0, %v2292
    %v2394 = vsel %vm2392, %v2393, %v2292
    %v2395 = vshrl.u32 %v2394, 6
    %v2396 = vand.u32 %v2394, 63
    %v2397 = vsub.s32 0, %v2396
    %v2398 = vsel %vm2392, %v2397, %v2396
    %vm2399 = vcmp.lt.s32.totalorder %v2293, 0
    %v2400 = vsub.s32 0, %v2293
    %v2401 = vsel %vm2399, %v2400, %v2293
    %v2402 = vshrl.u32 %v2401, 6
    %v2403 = vand.u32 %v2401, 63
    %v2404 = vsub.s32 0, %v2403
    %v2405 = vsel %vm2399, %v2404, %v2403
    %vm2406 = vcmp.ne.s32.totalorder %v2300, 0
    %vm2407 = vcmp.ne.s32.totalorder %v2307, 0
    %vm2408 = vcmp.ne.s32.totalorder %v2314, 0
    %vm2409 = vcmp.ne.s32.totalorder %v2321, 0
    %vm2410 = vcmp.ne.s32.totalorder %v2328, 0
    %vm2411 = vcmp.ne.s32.totalorder %v2335, 0
    %vm2412 = vcmp.ne.s32.totalorder %v2342, 0
    %vm2413 = vcmp.ne.s32.totalorder %v2349, 0
    %vm2414 = vcmp.ne.s32.totalorder %v2356, 0
    %vm2415 = vcmp.ne.s32.totalorder %v2363, 0
    %vm2416 = vcmp.ne.s32.totalorder %v2370, 0
    %vm2417 = vcmp.ne.s32.totalorder %v2377, 0
    %vm2418 = vcmp.ne.s32.totalorder %v2384, 0
    %vm2419 = vcmp.ne.s32.totalorder %v2391, 0
    %vm2420 = vcmp.ne.s32.totalorder %v2398, 0
    %vm2421 = vcmp.ne.s32.totalorder %v2405, 0
    %vm2422 = vcmp.lt.s32.totalorder %v2300, 0
    %vm2423 = vcmp.lt.s32.totalorder %v2307, 0
    %vm2424 = vcmp.lt.s32.totalorder %v2314, 0
    %vm2425 = vcmp.lt.s32.totalorder %v2321, 0
    %vm2426 = vcmp.lt.s32.totalorder %v2328, 0
    %vm2427 = vcmp.lt.s32.totalorder %v2335, 0
    %vm2428 = vcmp.lt.s32.totalorder %v2342, 0
    %vm2429 = vcmp.lt.s32.totalorder %v2349, 0
    %vm2430 = vcmp.lt.s32.totalorder %v2356, 0
    %vm2431 = vcmp.lt.s32.totalorder %v2363, 0
    %vm2432 = vcmp.lt.s32.totalorder %v2370, 0
    %vm2433 = vcmp.lt.s32.totalorder %v2377, 0
    %vm2434 = vcmp.lt.s32.totalorder %v2384, 0
    %vm2435 = vcmp.lt.s32.totalorder %v2391, 0
    %vm2436 = vcmp.lt.s32.totalorder %v2398, 0
    %vm2437 = vcmp.lt.s32.totalorder %v2405, 0
    %vm2438 = vmand %vm2422, %vm2406
    %vm2439 = vmand %vm2423, %vm2407
    %vm2440 = vmand %vm2424, %vm2408
    %vm2441 = vmand %vm2425, %vm2409
    %vm2442 = vmand %vm2426, %vm2410
    %vm2443 = vmand %vm2427, %vm2411
    %vm2444 = vmand %vm2428, %vm2412
    %vm2445 = vmand %vm2429, %vm2413
    %vm2446 = vmand %vm2430, %vm2414
    %vm2447 = vmand %vm2431, %vm2415
    %vm2448 = vmand %vm2432, %vm2416
    %vm2449 = vmand %vm2433, %vm2417
    %vm2450 = vmand %vm2434, %vm2418
    %vm2451 = vmand %vm2435, %vm2419
    %vm2452 = vmand %vm2436, %vm2420
    %vm2453 = vmand %vm2437, %vm2421
    %v2454 = vadd.s32 %v2300, 64
    %v2455 = vadd.s32 %v2307, 64
    %v2456 = vadd.s32 %v2314, 64
    %v2457 = vadd.s32 %v2321, 64
    %v2458 = vadd.s32 %v2328, 64
    %v2459 = vadd.s32 %v2335, 64
    %v2460 = vadd.s32 %v2342, 64
    %v2461 = vadd.s32 %v2349, 64
    %v2462 = vadd.s32 %v2356, 64
    %v2463 = vadd.s32 %v2363, 64
    %v2464 = vadd.s32 %v2370, 64
    %v2465 = vadd.s32 %v2377, 64
    %v2466 = vadd.s32 %v2384, 64
    %v2467 = vadd.s32 %v2391, 64
    %v2468 = vadd.s32 %v2398, 64
    %v2469 = vadd.s32 %v2405, 64
    %v2470 = vsel %vm2438, %v2454, %v2300
    %v2471 = vsel %vm2439, %v2455, %v2307
    %v2472 = vsel %vm2440, %v2456, %v2314
    %v2473 = vsel %vm2441, %v2457, %v2321
    %v2474 = vsel %vm2442, %v2458, %v2328
    %v2475 = vsel %vm2443, %v2459, %v2335
    %v2476 = vsel %vm2444, %v2460, %v2342
    %v2477 = vsel %vm2445, %v2461, %v2349
    %v2478 = vsel %vm2446, %v2462, %v2356
    %v2479 = vsel %vm2447, %v2463, %v2363
    %v2480 = vsel %vm2448, %v2464, %v2370
    %v2481 = vsel %vm2449, %v2465, %v2377
    %v2482 = vsel %vm2450, %v2466, %v2384
    %v2483 = vsel %vm2451, %v2467, %v2391
    %v2484 = vsel %vm2452, %v2468, %v2398
    %v2485 = vsel %vm2453, %v2469, %v2405
    %vm2486 = vcmp.eq.s32.totalorder %v2470, 0
    %vm2487 = vcmp.eq.s32.totalorder %v2471, 0
    %vm2488 = vcmp.eq.s32.totalorder %v2472, 0
    %vm2489 = vcmp.eq.s32.totalorder %v2473, 0
    %vm2490 = vcmp.eq.s32.totalorder %v2474, 0
    %vm2491 = vcmp.eq.s32.totalorder %v2475, 0
    %vm2492 = vcmp.eq.s32.totalorder %v2476, 0
    %vm2493 = vcmp.eq.s32.totalorder %v2477, 0
    %vm2494 = vcmp.eq.s32.totalorder %v2478, 0
    %vm2495 = vcmp.eq.s32.totalorder %v2479, 0
    %vm2496 = vcmp.eq.s32.totalorder %v2480, 0
    %vm2497 = vcmp.eq.s32.totalorder %v2481, 0
    %vm2498 = vcmp.eq.s32.totalorder %v2482, 0
    %vm2499 = vcmp.eq.s32.totalorder %v2483, 0
    %vm2500 = vcmp.eq.s32.totalorder %v2484, 0
    %vm2501 = vcmp.eq.s32.totalorder %v2485, 0
    %v2502 = vrot.slane %v2212, 7
    %v2503 = vrot.slane %v2213, 7
    %v2504 = vrot.slane %v2214, 7
    %v2505 = vrot.slane %v2215, 7
    %v2506 = vrot.slane %v2216, 7
    %v2507 = vrot.slane %v2217, 7
    %v2508 = vrot.slane %v2218, 7
    %v2509 = vrot.slane %v2219, 7
    %v2510 = vrot.slane %v2220, 7
    %v2511 = vrot.slane %v2221, 7
    %v2512 = vrot.slane %v2222, 7
    %v2513 = vrot.slane %v2223, 7
    %v2514 = vrot.slane %v2224, 7
    %v2515 = vrot.slane %v2225, 7
    %v2516 = vrot.slane %v2226, 7
    %v2517 = vrot.slane %v2227, 7
    %vm2518 = vcmp.lt.s32.totalorder %v2278, 1
    %v2519 = vsel %vm2518, %v2516, %v2517
    %v2520 = vsel %vm2518, %v2515, %v2516
    %v2521 = vsel %vm2518, %v2514, %v2515
    %v2522 = vsel %vm2518, %v2513, %v2514
    %v2523 = vsel %vm2518, %v2512, %v2513
    %v2524 = vsel %vm2518, %v2511, %v2512
    %v2525 = vsel %vm2518, %v2510, %v2511
    %v2526 = vsel %vm2518, %v2509, %v2510
    %v2527 = vsel %vm2518, %v2508, %v2509
    %v2528 = vsel %vm2518, %v2507, %v2508
    %v2529 = vsel %vm2518, %v2506, %v2507
    %v2530 = vsel %vm2518, %v2505, %v2506
    %v2531 = vsel %vm2518, %v2504, %v2505
    %v2532 = vsel %vm2518, %v2503, %v2504
    %v2533 = vsel %vm2518, %v2502, %v2503
    %v2534 = vsel %vm2518, %v2517, %v2502
    %v2535 = vsel %vm2486, 1, 0
    %v2536 = vsel %vm2487, 1, 0
    %v2537 = vsel %vm2488, 1, 0
    %v2538 = vsel %vm2489, 1, 0
    %v2539 = vsel %vm2490, 1, 0
    %v2540 = vsel %vm2491, 1, 0
    %v2541 = vsel %vm2492, 1, 0
    %v2542 = vsel %vm2493, 1, 0
    %v2543 = vsel %vm2494, 1, 0
    %v2544 = vsel %vm2495, 1, 0
    %v2545 = vsel %vm2496, 1, 0
    %v2546 = vsel %vm2497, 1, 0
    %v2547 = vsel %vm2498, 1, 0
    %v2548 = vsel %vm2499, 1, 0
    %v2549 = vsel %vm2500, 1, 0
    %v2550 = vsel %vm2501, 1, 0
    %vm2551 = vcmp.eq.s32.totalorder %v2535, 1
    %vm2552 = vcmp.eq.s32.totalorder %v2536, 1
    %vm2553 = vcmp.eq.s32.totalorder %v2537, 1
    %vm2554 = vcmp.eq.s32.totalorder %v2538, 1
    %vm2555 = vcmp.eq.s32.totalorder %v2539, 1
    %vm2556 = vcmp.eq.s32.totalorder %v2540, 1
    %vm2557 = vcmp.eq.s32.totalorder %v2541, 1
    %vm2558 = vcmp.eq.s32.totalorder %v2542, 1
    %vm2559 = vcmp.eq.s32.totalorder %v2543, 1
    %vm2560 = vcmp.eq.s32.totalorder %v2544, 1
    %vm2561 = vcmp.eq.s32.totalorder %v2545, 1
    %vm2562 = vcmp.eq.s32.totalorder %v2546, 1
    %vm2563 = vcmp.eq.s32.totalorder %v2547, 1
    %vm2564 = vcmp.eq.s32.totalorder %v2548, 1
    %vm2565 = vcmp.eq.s32.totalorder %v2549, 1
    %vm2566 = vcmp.eq.s32.totalorder %v2550, 1
    %v2567 = vsel %vm2551, 0.0, %v2534
    %v2568 = vsel %vm2552, 0.0, %v2533
    %v2569 = vsel %vm2553, 0.0, %v2532
    %v2570 = vsel %vm2554, 0.0, %v2531
    %v2571 = vsel %vm2555, 0.0, %v2530
    %v2572 = vsel %vm2556, 0.0, %v2529
    %v2573 = vsel %vm2557, 0.0, %v2528
    %v2574 = vsel %vm2558, 0.0, %v2527
    %v2575 = vsel %vm2559, 0.0, %v2526
    %v2576 = vsel %vm2560, 0.0, %v2525
    %v2577 = vsel %vm2561, 0.0, %v2524
    %v2578 = vsel %vm2562, 0.0, %v2523
    %v2579 = vsel %vm2563, 0.0, %v2522
    %v2580 = vsel %vm2564, 0.0, %v2521
    %v2581 = vsel %vm2565, 0.0, %v2520
    %v2582 = vsel %vm2566, 0.0, %v2519
    %vm2583 = vcmp.eq.s32.totalorder %v2470, 63
    %vm2584 = vcmp.eq.s32.totalorder %v2471, 63
    %vm2585 = vcmp.eq.s32.totalorder %v2472, 63
    %vm2586 = vcmp.eq.s32.totalorder %v2473, 63
    %vm2587 = vcmp.eq.s32.totalorder %v2474, 63
    %vm2588 = vcmp.eq.s32.totalorder %v2475, 63
    %vm2589 = vcmp.eq.s32.totalorder %v2476, 63
    %vm2590 = vcmp.eq.s32.totalorder %v2477, 63
    %vm2591 = vcmp.eq.s32.totalorder %v2478, 63
    %vm2592 = vcmp.eq.s32.totalorder %v2479, 63
    %vm2593 = vcmp.eq.s32.totalorder %v2480, 63
    %vm2594 = vcmp.eq.s32.totalorder %v2481, 63
    %vm2595 = vcmp.eq.s32.totalorder %v2482, 63
    %vm2596 = vcmp.eq.s32.totalorder %v2483, 63
    %vm2597 = vcmp.eq.s32.totalorder %v2484, 63
    %vm2598 = vcmp.eq.s32.totalorder %v2485, 63
    %v2599 = vrot.slane %v2212, 1
    %v2600 = vrot.slane %v2213, 1
    %v2601 = vrot.slane %v2214, 1
    %v2602 = vrot.slane %v2215, 1
    %v2603 = vrot.slane %v2216, 1
    %v2604 = vrot.slane %v2217, 1
    %v2605 = vrot.slane %v2218, 1
    %v2606 = vrot.slane %v2219, 1
    %v2607 = vrot.slane %v2220, 1
    %v2608 = vrot.slane %v2221, 1
    %v2609 = vrot.slane %v2222, 1
    %v2610 = vrot.slane %v2223, 1
    %v2611 = vrot.slane %v2224, 1
    %v2612 = vrot.slane %v2225, 1
    %v2613 = vrot.slane %v2226, 1
    %v2614 = vrot.slane %v2227, 1
    %vm2615 = vcmp.lt.s32.totalorder %v2278, 7
    %v2616 = vsel %vm2615, %v2613, %v2614
    %v2617 = vsel %vm2615, %v2612, %v2613
    %v2618 = vsel %vm2615, %v2611, %v2612
    %v2619 = vsel %vm2615, %v2610, %v2611
    %v2620 = vsel %vm2615, %v2609, %v2610
    %v2621 = vsel %vm2615, %v2608, %v2609
    %v2622 = vsel %vm2615, %v2607, %v2608
    %v2623 = vsel %vm2615, %v2606, %v2607
    %v2624 = vsel %vm2615, %v2605, %v2606
    %v2625 = vsel %vm2615, %v2604, %v2605
    %v2626 = vsel %vm2615, %v2603, %v2604
    %v2627 = vsel %vm2615, %v2602, %v2603
    %v2628 = vsel %vm2615, %v2601, %v2602
    %v2629 = vsel %vm2615, %v2600, %v2601
    %v2630 = vsel %vm2615, %v2599, %v2600
    %v2631 = vsel %vm2615, %v2614, %v2599
    %v2632 = vsel %vm2583, 1, 0
    %v2633 = vsel %vm2584, 1, 0
    %v2634 = vsel %vm2585, 1, 0
    %v2635 = vsel %vm2586, 1, 0
    %v2636 = vsel %vm2587, 1, 0
    %v2637 = vsel %vm2588, 1, 0
    %v2638 = vsel %vm2589, 1, 0
    %v2639 = vsel %vm2590, 1, 0
    %v2640 = vsel %vm2591, 1, 0
    %v2641 = vsel %vm2592, 1, 0
    %v2642 = vsel %vm2593, 1, 0
    %v2643 = vsel %vm2594, 1, 0
    %v2644 = vsel %vm2595, 1, 0
    %v2645 = vsel %vm2596, 1, 0
    %v2646 = vsel %vm2597, 1, 0
    %v2647 = vsel %vm2598, 1, 0
    %vm2648 = vcmp.eq.s32.totalorder %v2632, 1
    %vm2649 = vcmp.eq.s32.totalorder %v2633, 1
    %vm2650 = vcmp.eq.s32.totalorder %v2634, 1
    %vm2651 = vcmp.eq.s32.totalorder %v2635, 1
    %vm2652 = vcmp.eq.s32.totalorder %v2636, 1
    %vm2653 = vcmp.eq.s32.totalorder %v2637, 1
    %vm2654 = vcmp.eq.s32.totalorder %v2638, 1
    %vm2655 = vcmp.eq.s32.totalorder %v2639, 1
    %vm2656 = vcmp.eq.s32.totalorder %v2640, 1
    %vm2657 = vcmp.eq.s32.totalorder %v2641, 1
    %vm2658 = vcmp.eq.s32.totalorder %v2642, 1
    %vm2659 = vcmp.eq.s32.totalorder %v2643, 1
    %vm2660 = vcmp.eq.s32.totalorder %v2644, 1
    %vm2661 = vcmp.eq.s32.totalorder %v2645, 1
    %vm2662 = vcmp.eq.s32.totalorder %v2646, 1
    %vm2663 = vcmp.eq.s32.totalorder %v2647, 1
    %v2664 = vsel %vm2648, 0.0, %v2630
    %v2665 = vsel %vm2649, 0.0, %v2629
    %v2666 = vsel %vm2650, 0.0, %v2628
    %v2667 = vsel %vm2651, 0.0, %v2627
    %v2668 = vsel %vm2652, 0.0, %v2626
    %v2669 = vsel %vm2653, 0.0, %v2625
    %v2670 = vsel %vm2654, 0.0, %v2624
    %v2671 = vsel %vm2655, 0.0, %v2623
    %v2672 = vsel %vm2656, 0.0, %v2622
    %v2673 = vsel %vm2657, 0.0, %v2621
    %v2674 = vsel %vm2658, 0.0, %v2620
    %v2675 = vsel %vm2659, 0.0, %v2619
    %v2676 = vsel %vm2660, 0.0, %v2618
    %v2677 = vsel %vm2661, 0.0, %v2617
    %v2678 = vsel %vm2662, 0.0, %v2616
    %v2679 = vsel %vm2663, 0.0, %v2631
    %v2680 = vlaneseq
    %v2681 = vshrl.u32 %v2680, 7
    %v2682 = vsub.s32 0, %v2681
    %v2683 = vrot.slane %v2276, %v2682
    %2684 = vmatprep.subr.mxu0 0.0
    %2685 = vmatpush1.msra.mxu0 %v2228
    %2686 = vmatprep.subr.mxu0 0.0
    %2687 = vmatpush1.msra.mxu0 %v2229
    %2688 = vmatprep.subr.mxu0 0.0
    %2689 = vmatpush1.msra.mxu0 %v2230
    %2690 = vmatprep.subr.mxu0 0.0
    %2691 = vmatpush1.msra.mxu0 %v2231
    %2692 = vmatprep.subr.mxu0 0.0
    %2693 = vmatpush1.msra.mxu0 %v2232
    %2694 = vmatprep.subr.mxu0 0.0
    %2695 = vmatpush1.msra.mxu0 %v2233
    %2696 = vmatprep.subr.mxu0 0.0
    %2697 = vmatpush1.msra.mxu0 %v2234
    %2698 = vmatprep.subr.mxu0 0.0
    %2699 = vmatpush1.msra.mxu0 %v2235
    %2700 = vmatprep.subr.mxu0 0.0
    %2701 = vmatpush1.msra.mxu0 %v2236
    %2702 = vmatprep.subr.mxu0 0.0
    %2703 = vmatpush1.msra.mxu0 %v2237
    %2704 = vmatprep.subr.mxu0 0.0
    %2705 = vmatpush1.msra.mxu0 %v2238
    %2706 = vmatprep.subr.mxu0 0.0
    %2707 = vmatpush1.msra.mxu0 %v2239
    %2708 = vmatprep.subr.mxu0 0.0
    %2709 = vmatpush1.msra.mxu0 %v2240
    %2710 = vmatprep.subr.mxu0 0.0
    %2711 = vmatpush1.msra.mxu0 %v2241
    %2712 = vmatprep.subr.mxu0 0.0
    %2713 = vmatpush1.msra.mxu0 %v2242
    %2714 = vmatprep.subr.mxu0 0.0
    %2715 = vmatpush1.msra.mxu0 %v2243
    %2716 = vmatprep.subr.mxu0 0.0
    %2717 = vmatpush1.msra.mxu0 %v2244
    %2718 = vmatprep.subr.mxu0 0.0
    %2719 = vmatpush1.msra.mxu0 %v2245
    %2720 = vmatprep.subr.mxu0 0.0
    %2721 = vmatpush1.msra.mxu0 %v2246
    %2722 = vmatprep.subr.mxu0 0.0
    %2723 = vmatpush1.msra.mxu0 %v2247
    %2724 = vmatprep.subr.mxu0 0.0
    %2725 = vmatpush1.msra.mxu0 %v2248
    %2726 = vmatprep.subr.mxu0 0.0
    %2727 = vmatpush1.msra.mxu0 %v2249
    %2728 = vmatprep.subr.mxu0 0.0
    %2729 = vmatpush1.msra.mxu0 %v2250
    %2730 = vmatprep.subr.mxu0 0.0
    %2731 = vmatpush1.msra.mxu0 %v2251
    %2732 = vmatprep.subr.mxu0 0.0
    %2733 = vmatpush1.msra.mxu0 %v2252
    %2734 = vmatprep.subr.mxu0 0.0
    %2735 = vmatpush1.msra.mxu0 %v2253
    %2736 = vmatprep.subr.mxu0 0.0
    %2737 = vmatpush1.msra.mxu0 %v2254
    %2738 = vmatprep.subr.mxu0 0.0
    %2739 = vmatpush1.msra.mxu0 %v2255
    %2740 = vmatprep.subr.mxu0 0.0
    %2741 = vmatpush1.msra.mxu0 %v2256
    %2742 = vmatprep.subr.mxu0 0.0
    %2743 = vmatpush1.msra.mxu0 %v2257
    %2744 = vmatprep.subr.mxu0 0.0
    %2745 = vmatpush1.msra.mxu0 %v2258
    %2746 = vmatprep.subr.mxu0 0.0
    %2747 = vmatpush1.msra.mxu0 %v2259
    %2748 = vmatprep.mubr.f32.mxu0 %v2212
    %2749 = vmatmul.mubr.f32.gmra.mrb[0].mxu0 %v2567
    %v2750 = vpop.f32.mrb[0].mxu0
    %v2751 = vadd.f32 %v2683, %v2750
    %v2752 = vpop.f32.mrb[0].mxu0
    %2753 = vmatprep.mubr.f32.mxu0 %v2213
    %2754 = vmatmul.mubr.f32.gmra.mrb[0].mxu0 %v2568
    %v2755 = vpop.f32.mrb[0].mxu0
    %v2756 = vadd.f32 %v2683, %v2755
    %v2757 = vpop.f32.mrb[0].mxu0
    %2758 = vmatprep.mubr.f32.mxu0 %v2214
    %2759 = vmatmul.mubr.f32.gmra.mrb[0].mxu0 %v2569
    %v2760 = vpop.f32.mrb[0].mxu0
    %v2761 = vadd.f32 %v2683, %v2760
    %v2762 = vpop.f32.mrb[0].mxu0
    %2763 = vmatprep.mubr.f32.mxu0 %v2215
    %2764 = vmatmul.mubr.f32.gmra.mrb[0].mxu0 %v2570
    %v2765 = vpop.f32.mrb[0].mxu0
    %v2766 = vadd.f32 %v2683, %v2765
    %v2767 = vpop.f32.mrb[0].mxu0
    %2768 = vmatprep.mubr.f32.mxu0 %v2216
    %2769 = vmatmul.mubr.f32.gmra.mrb[0].mxu0 %v2571
    %v2770 = vpop.f32.mrb[0].mxu0
    %v2771 = vadd.f32 %v2683, %v2770
    %v2772 = vpop.f32.mrb[0].mxu0
    %2773 = vmatprep.mubr.f32.mxu0 %v2217
    %2774 = vmatmul.mubr.f32.gmra.mrb[0].mxu0 %v2572
    %v2775 = vpop.f32.mrb[0].mxu0
    %v2776 = vadd.f32 %v2683, %v2775
    %v2777 = vpop.f32.mrb[0].mxu0
    %2778 = vmatprep.mubr.f32.mxu0 %v2218
    %2779 = vmatmul.mubr.f32.gmra.mrb[0].mxu0 %v2573
    %v2780 = vpop.f32.mrb[0].mxu0
    %v2781 = vadd.f32 %v2683, %v2780
    %v2782 = vpop.f32.mrb[0].mxu0
    %2783 = vmatprep.mubr.f32.mxu0 %v2219
    %2784 = vmatmul.mubr.f32.gmra.mrb[0].mxu0 %v2574
    %v2785 = vpop.f32.mrb[0].mxu0
    %v2786 = vadd.f32 %v2683, %v2785
    %v2787 = vpop.f32.mrb[0].mxu0
    %2788 = vmatprep.mubr.f32.mxu0 %v2220
    %2789 = vmatmul.mubr.f32.gmra.mrb[0].mxu0 %v2575
    %v2790 = vpop.f32.mrb[0].mxu0
    %v2791 = vadd.f32 %v2683, %v2790
    %v2792 = vpop.f32.mrb[0].mxu0
    %2793 = vmatprep.mubr.f32.mxu0 %v2221
    %2794 = vmatmul.mubr.f32.gmra.mrb[0].mxu0 %v2576
    %v2795 = vpop.f32.mrb[0].mxu0
    %v2796 = vadd.f32 %v2683, %v2795
    %v2797 = vpop.f32.mrb[0].mxu0
    %2798 = vmatprep.mubr.f32.mxu0 %v2222
    %2799 = vmatmul.mubr.f32.gmra.mrb[0].mxu0 %v2577
    %v2800 = vpop.f32.mrb[0].mxu0
    %v2801 = vadd.f32 %v2683, %v2800
    %v2802 = vpop.f32.mrb[0].mxu0
    %2803 = vmatprep.mubr.f32.mxu0 %v2223
    %2804 = vmatmul.mubr.f32.gmra.mrb[0].mxu0 %v2578
    %v2805 = vpop.f32.mrb[0].mxu0
    %v2806 = vadd.f32 %v2683, %v2805
    %v2807 = vpop.f32.mrb[0].mxu0
    %2808 = vmatprep.mubr.f32.mxu0 %v2224
    %2809 = vmatmul.mubr.f32.gmra.mrb[0].mxu0 %v2579
    %v2810 = vpop.f32.mrb[0].mxu0
    %v2811 = vadd.f32 %v2683, %v2810
    %v2812 = vpop.f32.mrb[0].mxu0
    %2813 = vmatprep.mubr.f32.mxu0 %v2225
    %2814 = vmatmul.mubr.f32.gmra.mrb[0].mxu0 %v2580
    %v2815 = vpop.f32.mrb[0].mxu0
    %v2816 = vadd.f32 %v2683, %v2815
    %v2817 = vpop.f32.mrb[0].mxu0
    %2818 = vmatprep.mubr.f32.mxu0 %v2226
    %2819 = vmatmul.mubr.f32.gmra.mrb[0].mxu0 %v2581
    %v2820 = vpop.f32.mrb[0].mxu0
    %v2821 = vadd.f32 %v2683, %v2820
    %v2822 = vpop.f32.mrb[0].mxu0
    %2823 = vmatprep.mubr.f32.mxu0 %v2227
    %2824 = vmatmul.mubr.f32.gmra.mrb[0].mxu0 %v2582
    %v2825 = vpop.f32.mrb[0].mxu0
    %v2826 = vadd.f32 %v2683, %v2825
    %v2827 = vpop.f32.mrb[0].mxu0
    %2828 = vdwg.mxu0
    %2829 = vmatprep.subr.mxu0 0.0
    %2830 = vmatpush1.msra.mxu0 %v2260
    %2831 = vmatprep.subr.mxu0 0.0
    %2832 = vmatpush1.msra.mxu0 %v2261
    %2833 = vmatprep.subr.mxu0 0.0
    %2834 = vmatpush1.msra.mxu0 %v2262
    %2835 = vmatprep.subr.mxu0 0.0
    %2836 = vmatpush1.msra.mxu0 %v2263
    %2837 = vmatprep.subr.mxu0 0.0
    %2838 = vmatpush1.msra.mxu0 %v2264
    %2839 = vmatprep.subr.mxu0 0.0
    %2840 = vmatpush1.msra.mxu0 %v2265
    %2841 = vmatprep.subr.mxu0 0.0
    %2842 = vmatpush1.msra.mxu0 %v2266
    %2843 = vmatprep.subr.mxu0 0.0
    %2844 = vmatpush1.msra.mxu0 %v2267
    %2845 = vmatprep.subr.mxu0 0.0
    %2846 = vmatpush1.msra.mxu0 %v2268
    %2847 = vmatprep.subr.mxu0 0.0
    %2848 = vmatpush1.msra.mxu0 %v2269
    %2849 = vmatprep.subr.mxu0 0.0
    %2850 = vmatpush1.msra.mxu0 %v2270
    %2851 = vmatprep.subr.mxu0 0.0
    %2852 = vmatpush1.msra.mxu0 %v2271
    %2853 = vmatprep.subr.mxu0 0.0
    %2854 = vmatpush1.msra.mxu0 %v2272
    %2855 = vmatprep.subr.mxu0 0.0
    %2856 = vmatpush1.msra.mxu0 %v2273
    %2857 = vmatprep.subr.mxu0 0.0
    %2858 = vmatpush1.msra.mxu0 %v2274
    %2859 = vmatprep.subr.mxu0 0.0
    %2860 = vmatpush1.msra.mxu0 %v2275
    %2861 = vmatprep.subr.mxu0 0.0
    %2862 = vmatpush1.msra.mxu0 0.0
    %2863 = vmatprep.subr.mxu0 0.0
    %2864 = vmatpush1.msra.mxu0 0.0
    %2865 = vmatprep.subr.mxu0 0.0
    %2866 = vmatpush1.msra.mxu0 0.0
    %2867 = vmatprep.subr.mxu0 0.0
    %2868 = vmatpush1.msra.mxu0 0.0
    %2869 = vmatprep.subr.mxu0 0.0
    %2870 = vmatpush1.msra.mxu0 0.0
    %2871 = vmatprep.subr.mxu0 0.0
    %2872 = vmatpush1.msra.mxu0 0.0
    %2873 = vmatprep.subr.mxu0 0.0
    %2874 = vmatpush1.msra.mxu0 0.0
    %2875 = vmatprep.subr.mxu0 0.0
    %2876 = vmatpush1.msra.mxu0 0.0
    %2877 = vmatprep.subr.mxu0 0.0
    %2878 = vmatpush1.msra.mxu0 0.0
    %2879 = vmatprep.subr.mxu0 0.0
    %2880 = vmatpush1.msra.mxu0 0.0
    %2881 = vmatprep.subr.mxu0 0.0
    %2882 = vmatpush1.msra.mxu0 0.0
    %2883 = vmatprep.subr.mxu0 0.0
    %2884 = vmatpush1.msra.mxu0 0.0
    %2885 = vmatprep.subr.mxu0 0.0
    %2886 = vmatpush1.msra.mxu0 0.0
    %2887 = vmatprep.subr.mxu0 0.0
    %2888 = vmatpush1.msra.mxu0 0.0
    %2889 = vmatprep.subr.mxu0 0.0
    %2890 = vmatpush1.msra.mxu0 0.0
    %2891 = vmatprep.subr.mxu0 0.0
    %2892 = vmatpush1.msra.mxu0 0.0
    %2893 = vmatprep.mubr.f32.mxu0 0.0
    %2894 = vmatmul.mubr.f32.gmra.mrb[0].mxu0 %v2664
    %v2895 = vpop.f32.mrb[0].mxu0
    %v2896 = vadd.f32 %v2751, %v2895
    %v2897 = vpop.f32.mrb[0].mxu0
    %2898 = vmatprep.mubr.f32.mxu0 0.0
    %2899 = vmatmul.mubr.f32.gmra.mrb[0].mxu0 %v2665
    %v2900 = vpop.f32.mrb[0].mxu0
    %v2901 = vadd.f32 %v2756, %v2900
    %v2902 = vpop.f32.mrb[0].mxu0
    %2903 = vmatprep.mubr.f32.mxu0 0.0
    %2904 = vmatmul.mubr.f32.gmra.mrb[0].mxu0 %v2666
    %v2905 = vpop.f32.mrb[0].mxu0
    %v2906 = vadd.f32 %v2761, %v2905
    %v2907 = vpop.f32.mrb[0].mxu0
    %2908 = vmatprep.mubr.f32.mxu0 0.0
    %2909 = vmatmul.mubr.f32.gmra.mrb[0].mxu0 %v2667
    %v2910 = vpop.f32.mrb[0].mxu0
    %v2911 = vadd.f32 %v2766, %v2910
    %v2912 = vpop.f32.mrb[0].mxu0
    %2913 = vmatprep.mubr.f32.mxu0 0.0
    %2914 = vmatmul.mubr.f32.gmra.mrb[0].mxu0 %v2668
    %v2915 = vpop.f32.mrb[0].mxu0
    %v2916 = vadd.f32 %v2771, %v2915
    %v2917 = vpop.f32.mrb[0].mxu0
    %2918 = vmatprep.mubr.f32.mxu0 0.0
    %2919 = vmatmul.mubr.f32.gmra.mrb[0].mxu0 %v2669
    %v2920 = vpop.f32.mrb[0].mxu0
    %v2921 = vadd.f32 %v2776, %v2920
    %v2922 = vpop.f32.mrb[0].mxu0
    %2923 = vmatprep.mubr.f32.mxu0 0.0
    %2924 = vmatmul.mubr.f32.gmra.mrb[0].mxu0 %v2670
    %v2925 = vpop.f32.mrb[0].mxu0
    %v2926 = vadd.f32 %v2781, %v2925
    %v2927 = vpop.f32.mrb[0].mxu0
    %2928 = vmatprep.mubr.f32.mxu0 0.0
    %2929 = vmatmul.mubr.f32.gmra.mrb[0].mxu0 %v2671
    %v2930 = vpop.f32.mrb[0].mxu0
    %v2931 = vadd.f32 %v2786, %v2930
    %v2932 = vpop.f32.mrb[0].mxu0
    %2933 = vmatprep.mubr.f32.mxu0 0.0
    %2934 = vmatmul.mubr.f32.gmra.mrb[0].mxu0 %v2672
    %v2935 = vpop.f32.mrb[0].mxu0
    %v2936 = vadd.f32 %v2791, %v2935
    %v2937 = vpop.f32.mrb[0].mxu0
    %2938 = vmatprep.mubr.f32.mxu0 0.0
    %2939 = vmatmul.mubr.f32.gmra.mrb[0].mxu0 %v2673
    %v2940 = vpop.f32.mrb[0].mxu0
    %v2941 = vadd.f32 %v2796, %v2940
    %v2942 = vpop.f32.mrb[0].mxu0
    %2943 = vmatprep.mubr.f32.mxu0 0.0
    %2944 = vmatmul.mubr.f32.gmra.mrb[0].mxu0 %v2674
    %v2945 = vpop.f32.mrb[0].mxu0
    %v2946 = vadd.f32 %v2801, %v2945
    %v2947 = vpop.f32.mrb[0].mxu0
    %2948 = vmatprep.mubr.f32.mxu0 0.0
    %2949 = vmatmul.mubr.f32.gmra.mrb[0].mxu0 %v2675
    %v2950 = vpop.f32.mrb[0].mxu0
    %v2951 = vadd.f32 %v2806, %v2950
    %v2952 = vpop.f32.mrb[0].mxu0
    %2953 = vmatprep.mubr.f32.mxu0 0.0
    %2954 = vmatmul.mubr.f32.gmra.mrb[0].mxu0 %v2676
    %v2955 = vpop.f32.mrb[0].mxu0
    %v2956 = vadd.f32 %v2811, %v2955
    %v2957 = vpop.f32.mrb[0].mxu0
    %2958 = vmatprep.mubr.f32.mxu0 0.0
    %2959 = vmatmul.mubr.f32.gmra.mrb[0].mxu0 %v2677
    %v2960 = vpop.f32.mrb[0].mxu0
    %v2961 = vadd.f32 %v2816, %v2960
    %v2962 = vpop.f32.mrb[0].mxu0
    %2963 = vmatprep.mubr.f32.mxu0 0.0
    %2964 = vmatmul.mubr.f32.gmra.mrb[0].mxu0 %v2678
    %v2965 = vpop.f32.mrb[0].mxu0
    %v2966 = vadd.f32 %v2821, %v2965
    %v2967 = vpop.f32.mrb[0].mxu0
    %2968 = vmatprep.mubr.f32.mxu0 0.0
    %2969 = vmatmul.mubr.f32.gmra.mrb[0].mxu0 %v2679
    %v2970 = vpop.f32.mrb[0].mxu0
    %v2971 = vadd.f32 %v2826, %v2970
    %v2972 = vpop.f32.mrb[0].mxu0
    %2973 = vdwg.mxu0
    %2974 = vst [vmem:[#allocation2] sm:$0xff] %v2896
    %2975 = vst [vmem:[#allocation2 + $0x8] sm:$0xff] %v2901
    %2976 = vst [vmem:[#allocation2 + $0x10] sm:$0xff] %v2906
    %2977 = vst [vmem:[#allocation2 + $0x18] sm:$0xff] %v2911
    %2978 = vst [vmem:[#allocation2 + $0x20] sm:$0xff] %v2916
    %2979 = vst [vmem:[#allocation2 + $0x28] sm:$0xff] %v2921
    %2980 = vst [vmem:[#allocation2 + $0x30] sm:$0xff] %v2926
    %2981 = vst [vmem:[#allocation2 + $0x38] sm:$0xff] %v2931
    %2982 = vst [vmem:[#allocation2 + $0x40] sm:$0xff] %v2936
    %2983 = vst [vmem:[#allocation2 + $0x48] sm:$0xff] %v2941
    %2984 = vst [vmem:[#allocation2 + $0x50] sm:$0xff] %v2946
    %2985 = vst [vmem:[#allocation2 + $0x58] sm:$0xff] %v2951
    %2986 = vst [vmem:[#allocation2 + $0x60] sm:$0xff] %v2956
    %2987 = vst [vmem:[#allocation2 + $0x68] sm:$0xff] %v2961
    %2988 = vst [vmem:[#allocation2 + $0x70] sm:$0xff] %v2966
    %2989 = vst [vmem:[#allocation2 + $0x78] sm:$0xff] %v2971
    %v2990 = vld [vmem:[#allocation2] ss:$2 sm:$0xff]
    %s2991 = scalar_lea.vmem [#allocation2], 16
    %v2992 = vld [vmem:[%s2991] ss:$2 sm:$0xff]
    %s2993 = scalar_lea.vmem [#allocation2], 32
    %v2994 = vld [vmem:[%s2993] ss:$2 sm:$0xff]
    %s2995 = scalar_lea.vmem [#allocation2], 48
    %v2996 = vld [vmem:[%s2995] ss:$2 sm:$0xff]
    %s2997 = scalar_lea.vmem [#allocation2], 64
    %v2998 = vld [vmem:[%s2997] ss:$2 sm:$0xff]
    %s2999 = scalar_lea.vmem [#allocation2], 80
    %v3000 = vld [vmem:[%s2999] ss:$2 sm:$0xff]
    %s3001 = scalar_lea.vmem [#allocation2], 96
    %v3002 = vld [vmem:[%s3001] ss:$2 sm:$0xff]
    %s3003 = scalar_lea.vmem [#allocation2], 112
    %v3004 = vld [vmem:[%s3003] ss:$2 sm:$0xff]
    %s3005 = scalar_lea.vmem [#allocation2], 1
    %v3006 = vld [vmem:[%s3005] ss:$2 sm:$0xff]
    %s3007 = scalar_lea.vmem [#allocation2], 17
    %v3008 = vld [vmem:[%s3007] ss:$2 sm:$0xff]
    %s3009 = scalar_lea.vmem [#allocation2], 33
    %v3010 = vld [vmem:[%s3009] ss:$2 sm:$0xff]
    %s3011 = scalar_lea.vmem [#allocation2], 49
    %v3012 = vld [vmem:[%s3011] ss:$2 sm:$0xff]
    %s3013 = scalar_lea.vmem [#allocation2], 65
    %v3014 = vld [vmem:[%s3013] ss:$2 sm:$0xff]
    %s3015 = scalar_lea.vmem [#allocation2], 81
    %v3016 = vld [vmem:[%s3015] ss:$2 sm:$0xff]
    %s3017 = scalar_lea.vmem [#allocation2], 97
    %v3018 = vld [vmem:[%s3017] ss:$2 sm:$0xff]
    %s3019 = scalar_lea.vmem [#allocation2], 113
    %v3020 = vld [vmem:[%s3019] ss:$2 sm:$0xff]
    %v3021 = vmax.f32 %v2990, %v3006
    %v3022 = vmax.f32 %v2992, %v3008
    %v3023 = vmax.f32 %v2994, %v3010
    %v3024 = vmax.f32 %v2996, %v3012
    %v3025 = vmax.f32 %v2998, %v3014
    %v3026 = vmax.f32 %v3000, %v3016
    %v3027 = vmax.f32 %v3002, %v3018
    %v3028 = vmax.f32 %v3004, %v3020
    %v3029 = vmax.f32 %v3021, 0.0
    %v3030 = vmax.f32 %v3022, 0.0
    %v3031 = vmax.f32 %v3023, 0.0
    %v3032 = vmax.f32 %v3024, 0.0
    %v3033 = vmax.f32 %v3025, 0.0
    %v3034 = vmax.f32 %v3026, 0.0
    %v3035 = vmax.f32 %v3027, 0.0
    %v3036 = vmax.f32 %v3028, 0.0
    %v3037 = vld [vmem:[#allocation6 + $0x180] sm:$0xff]
    %v3038 = vld [vmem:[#allocation6 + $0x188] sm:$0xff]
    %v3039 = vld [vmem:[#allocation6 + $0x190] sm:$0xff]
    %v3040 = vld [vmem:[#allocation6 + $0x198] sm:$0xff]
    %v3041 = vld [vmem:[#allocation6 + $0x1a0] sm:$0xff]
    %v3042 = vld [vmem:[#allocation6 + $0x1a8] sm:$0xff]
    %v3043 = vld [vmem:[#allocation6 + $0x1b0] sm:$0xff]
    %v3044 = vld [vmem:[#allocation6 + $0x1b8] sm:$0xff]
    %v3045 = vld [vmem:[#allocation6 + $0x1c0] sm:$0xff]
    %v3046 = vld [vmem:[#allocation6 + $0x1c8] sm:$0xff]
    %v3047 = vld [vmem:[#allocation6 + $0x1d0] sm:$0xff]
    %v3048 = vld [vmem:[#allocation6 + $0x1d8] sm:$0xff]
    %v3049 = vld [vmem:[#allocation6 + $0x1e0] sm:$0xff]
    %v3050 = vld [vmem:[#allocation6 + $0x1e8] sm:$0xff]
    %v3051 = vld [vmem:[#allocation6 + $0x1f0] sm:$0xff]
    %v3052 = vld [vmem:[#allocation6 + $0x1f8] sm:$0xff]
    %v3053 = vld [vmem:[#allocation6 + $0x200] sm:$0xff]
    %v3054 = vld [vmem:[#allocation6 + $0x208] sm:$0xff]
    %v3055 = vld [vmem:[#allocation6 + $0x210] sm:$0xff]
    %v3056 = vld [vmem:[#allocation6 + $0x218] sm:$0xff]
    %v3057 = vld [vmem:[#allocation6 + $0x220] sm:$0xff]
    %v3058 = vld [vmem:[#allocation6 + $0x228] sm:$0xff]
    %v3059 = vld [vmem:[#allocation6 + $0x230] sm:$0xff]
    %v3060 = vld [vmem:[#allocation6 + $0x238] sm:$0xff]
    %v3061 = vld [vmem:[#allocation6 + $0x240] sm:$0xff]
    %v3062 = vld [vmem:[#allocation6 + $0x248] sm:$0xff]
    %v3063 = vld [vmem:[#allocation6 + $0x250] sm:$0xff]
    %v3064 = vld [vmem:[#allocation6 + $0x258] sm:$0xff]
    %v3065 = vld [vmem:[#allocation6 + $0x260] sm:$0xff]
    %v3066 = vld [vmem:[#allocation6 + $0x268] sm:$0xff]
    %v3067 = vld [vmem:[#allocation6 + $0x270] sm:$0xff]
    %v3068 = vld [vmem:[#allocation6 + $0x278] sm:$0xff]
    %v3069 = vld [vmem:[#allocation6 + $0x280] sm:$0xff]
    %v3070 = vld [vmem:[#allocation6 + $0x288] sm:$0xff]
    %v3071 = vld [vmem:[#allocation6 + $0x290] sm:$0xff]
    %v3072 = vld [vmem:[#allocation6 + $0x298] sm:$0xff]
    %v3073 = vld [vmem:[#allocation6 + $0x2a0] sm:$0xff]
    %v3074 = vld [vmem:[#allocation6 + $0x2a8] sm:$0xff]
    %v3075 = vld [vmem:[#allocation6 + $0x2b0] sm:$0xff]
    %v3076 = vld [vmem:[#allocation6 + $0x2b8] sm:$0xff]
    %v3077 = vld [vmem:[#allocation6 + $0x2c0] sm:$0xff]
    %v3078 = vld [vmem:[#allocation6 + $0x2c8] sm:$0xff]
    %v3079 = vld [vmem:[#allocation6 + $0x2d0] sm:$0xff]
    %v3080 = vld [vmem:[#allocation6 + $0x2d8] sm:$0xff]
    %v3081 = vld [vmem:[#allocation6 + $0x2e0] sm:$0xff]
    %v3082 = vld [vmem:[#allocation6 + $0x2e8] sm:$0xff]
    %v3083 = vld [vmem:[#allocation6 + $0x2f0] sm:$0xff]
    %v3084 = vld [vmem:[#allocation6 + $0x2f8] sm:$0xff]
    %v3085 = vld [vmem:[%s3 + $0x1] sm:$0x1]
    %vm3086 = vcmp.lt.s32.totalorder %v2278, 0
    %v3087 = vsub.s32 0, %v2278
    %v3088 = vsel %vm3086, %v3087, %v2278
    %v3089 = vshrl.u32 %v3088, 5
    %v3090 = vand.u32 %v3088, 31
    %v3091 = vsub.s32 0, %v3090
    %v3092 = vsel %vm3086, %v3091, %v3090
    %vm3093 = vcmp.lt.s32.totalorder %v2279, 0
    %v3094 = vsub.s32 0, %v2279
    %v3095 = vsel %vm3093, %v3094, %v2279
    %v3096 = vshrl.u32 %v3095, 5
    %v3097 = vand.u32 %v3095, 31
    %v3098 = vsub.s32 0, %v3097
    %v3099 = vsel %vm3093, %v3098, %v3097
    %vm3100 = vcmp.lt.s32.totalorder %v2280, 0
    %v3101 = vsub.s32 0, %v2280
    %v3102 = vsel %vm3100, %v3101, %v2280
    %v3103 = vshrl.u32 %v3102, 5
    %v3104 = vand.u32 %v3102, 31
    %v3105 = vsub.s32 0, %v3104
    %v3106 = vsel %vm3100, %v3105, %v3104
    %vm3107 = vcmp.lt.s32.totalorder %v2281, 0
    %v3108 = vsub.s32 0, %v2281
    %v3109 = vsel %vm3107, %v3108, %v2281
    %v3110 = vshrl.u32 %v3109, 5
    %v3111 = vand.u32 %v3109, 31
    %v3112 = vsub.s32 0, %v3111
    %v3113 = vsel %vm3107, %v3112, %v3111
    %vm3114 = vcmp.lt.s32.totalorder %v2282, 0
    %v3115 = vsub.s32 0, %v2282
    %v3116 = vsel %vm3114, %v3115, %v2282
    %v3117 = vshrl.u32 %v3116, 5
    %v3118 = vand.u32 %v3116, 31
    %v3119 = vsub.s32 0, %v3118
    %v3120 = vsel %vm3114, %v3119, %v3118
    %vm3121 = vcmp.lt.s32.totalorder %v2283, 0
    %v3122 = vsub.s32 0, %v2283
    %v3123 = vsel %vm3121, %v3122, %v2283
    %v3124 = vshrl.u32 %v3123, 5
    %v3125 = vand.u32 %v3123, 31
    %v3126 = vsub.s32 0, %v3125
    %v3127 = vsel %vm3121, %v3126, %v3125
    %vm3128 = vcmp.lt.s32.totalorder %v2284, 0
    %v3129 = vsub.s32 0, %v2284
    %v3130 = vsel %vm3128, %v3129, %v2284
    %v3131 = vshrl.u32 %v3130, 5
    %v3132 = vand.u32 %v3130, 31
    %v3133 = vsub.s32 0, %v3132
    %v3134 = vsel %vm3128, %v3133, %v3132
    %vm3135 = vcmp.lt.s32.totalorder %v2285, 0
    %v3136 = vsub.s32 0, %v2285
    %v3137 = vsel %vm3135, %v3136, %v2285
    %v3138 = vshrl.u32 %v3137, 5
    %v3139 = vand.u32 %v3137, 31
    %v3140 = vsub.s32 0, %v3139
    %v3141 = vsel %vm3135, %v3140, %v3139
    %vm3142 = vcmp.ne.s32.totalorder %v3092, 0
    %vm3143 = vcmp.ne.s32.totalorder %v3099, 0
    %vm3144 = vcmp.ne.s32.totalorder %v3106, 0
    %vm3145 = vcmp.ne.s32.totalorder %v3113, 0
    %vm3146 = vcmp.ne.s32.totalorder %v3120, 0
    %vm3147 = vcmp.ne.s32.totalorder %v3127, 0
    %vm3148 = vcmp.ne.s32.totalorder %v3134, 0
    %vm3149 = vcmp.ne.s32.totalorder %v3141, 0
    %vm3150 = vcmp.lt.s32.totalorder %v3092, 0
    %vm3151 = vcmp.lt.s32.totalorder %v3099, 0
    %vm3152 = vcmp.lt.s32.totalorder %v3106, 0
    %vm3153 = vcmp.lt.s32.totalorder %v3113, 0
    %vm3154 = vcmp.lt.s32.totalorder %v3120, 0
    %vm3155 = vcmp.lt.s32.totalorder %v3127, 0
    %vm3156 = vcmp.lt.s32.totalorder %v3134, 0
    %vm3157 = vcmp.lt.s32.totalorder %v3141, 0
    %vm3158 = vmand %vm3150, %vm3142
    %vm3159 = vmand %vm3151, %vm3143
    %vm3160 = vmand %vm3152, %vm3144
    %vm3161 = vmand %vm3153, %vm3145
    %vm3162 = vmand %vm3154, %vm3146
    %vm3163 = vmand %vm3155, %vm3147
    %vm3164 = vmand %vm3156, %vm3148
    %vm3165 = vmand %vm3157, %vm3149
    %v3166 = vadd.s32 %v3092, 32
    %v3167 = vadd.s32 %v3099, 32
    %v3168 = vadd.s32 %v3106, 32
    %v3169 = vadd.s32 %v3113, 32
    %v3170 = vadd.s32 %v3120, 32
    %v3171 = vadd.s32 %v3127, 32
    %v3172 = vadd.s32 %v3134, 32
    %v3173 = vadd.s32 %v3141, 32
    %v3174 = vsel %vm3158, %v3166, %v3092
    %v3175 = vsel %vm3159, %v3167, %v3099
    %v3176 = vsel %vm3160, %v3168, %v3106
    %v3177 = vsel %vm3161, %v3169, %v3113
    %v3178 = vsel %vm3162, %v3170, %v3120
    %v3179 = vsel %vm3163, %v3171, %v3127
    %v3180 = vsel %vm3164, %v3172, %v3134
    %v3181 = vsel %vm3165, %v3173, %v3141
    %vm3182 = vcmp.eq.s32.totalorder %v3174, 0
    %vm3183 = vcmp.eq.s32.totalorder %v3175, 0
    %vm3184 = vcmp.eq.s32.totalorder %v3176, 0
    %vm3185 = vcmp.eq.s32.totalorder %v3177, 0
    %vm3186 = vcmp.eq.s32.totalorder %v3178, 0
    %vm3187 = vcmp.eq.s32.totalorder %v3179, 0
    %vm3188 = vcmp.eq.s32.totalorder %v3180, 0
    %vm3189 = vcmp.eq.s32.totalorder %v3181, 0
    %v3190 = vrot.slane %v3029, 7
    %v3191 = vrot.slane %v3030, 7
    %v3192 = vrot.slane %v3031, 7
    %v3193 = vrot.slane %v3032, 7
    %v3194 = vrot.slane %v3033, 7
    %v3195 = vrot.slane %v3034, 7
    %v3196 = vrot.slane %v3035, 7
    %v3197 = vrot.slane %v3036, 7
    %v3198 = vsel %vm2518, %v3196, %v3197
    %v3199 = vsel %vm2518, %v3195, %v3196
    %v3200 = vsel %vm2518, %v3194, %v3195
    %v3201 = vsel %vm2518, %v3193, %v3194
    %v3202 = vsel %vm2518, %v3192, %v3193
    %v3203 = vsel %vm2518, %v3191, %v3192
    %v3204 = vsel %vm2518, %v3190, %v3191
    %v3205 = vsel %vm2518, %v3197, %v3190
    %v3206 = vsel %vm3182, 1, 0
    %v3207 = vsel %vm3183, 1, 0
    %v3208 = vsel %vm3184, 1, 0
    %v3209 = vsel %vm3185, 1, 0
    %v3210 = vsel %vm3186, 1, 0
    %v3211 = vsel %vm3187, 1, 0
    %v3212 = vsel %vm3188, 1, 0
    %v3213 = vsel %vm3189, 1, 0
    %vm3214 = vcmp.eq.s32.totalorder %v3206, 1
    %vm3215 = vcmp.eq.s32.totalorder %v3207, 1
    %vm3216 = vcmp.eq.s32.totalorder %v3208, 1
    %vm3217 = vcmp.eq.s32.totalorder %v3209, 1
    %vm3218 = vcmp.eq.s32.totalorder %v3210, 1
    %vm3219 = vcmp.eq.s32.totalorder %v3211, 1
    %vm3220 = vcmp.eq.s32.totalorder %v3212, 1
    %vm3221 = vcmp.eq.s32.totalorder %v3213, 1
    %v3222 = vsel %vm3214, 0.0, %v3205
    %v3223 = vsel %vm3215, 0.0, %v3204
    %v3224 = vsel %vm3216, 0.0, %v3203
    %v3225 = vsel %vm3217, 0.0, %v3202
    %v3226 = vsel %vm3218, 0.0, %v3201
    %v3227 = vsel %vm3219, 0.0, %v3200
    %v3228 = vsel %vm3220, 0.0, %v3199
    %v3229 = vsel %vm3221, 0.0, %v3198
    %vm3230 = vcmp.eq.s32.totalorder %v3174, 31
    %vm3231 = vcmp.eq.s32.totalorder %v3175, 31
    %vm3232 = vcmp.eq.s32.totalorder %v3176, 31
    %vm3233 = vcmp.eq.s32.totalorder %v3177, 31
    %vm3234 = vcmp.eq.s32.totalorder %v3178, 31
    %vm3235 = vcmp.eq.s32.totalorder %v3179, 31
    %vm3236 = vcmp.eq.s32.totalorder %v3180, 31
    %vm3237 = vcmp.eq.s32.totalorder %v3181, 31
    %v3238 = vrot.slane %v3029, 1
    %v3239 = vrot.slane %v3030, 1
    %v3240 = vrot.slane %v3031, 1
    %v3241 = vrot.slane %v3032, 1
    %v3242 = vrot.slane %v3033, 1
    %v3243 = vrot.slane %v3034, 1
    %v3244 = vrot.slane %v3035, 1
    %v3245 = vrot.slane %v3036, 1
    %v3246 = vsel %vm2615, %v3244, %v3245
    %v3247 = vsel %vm2615, %v3243, %v3244
    %v3248 = vsel %vm2615, %v3242, %v3243
    %v3249 = vsel %vm2615, %v3241, %v3242
    %v3250 = vsel %vm2615, %v3240, %v3241
    %v3251 = vsel %vm2615, %v3239, %v3240
    %v3252 = vsel %vm2615, %v3238, %v3239
    %v3253 = vsel %vm2615, %v3245, %v3238
    %v3254 = vsel %vm3230, 1, 0
    %v3255 = vsel %vm3231, 1, 0
    %v3256 = vsel %vm3232, 1, 0
    %v3257 = vsel %vm3233, 1, 0
    %v3258 = vsel %vm3234, 1, 0
    %v3259 = vsel %vm3235, 1, 0
    %v3260 = vsel %vm3236, 1, 0
    %v3261 = vsel %vm3237, 1, 0
    %vm3262 = vcmp.eq.s32.totalorder %v3254, 1
    %vm3263 = vcmp.eq.s32.totalorder %v3255, 1
    %vm3264 = vcmp.eq.s32.totalorder %v3256, 1
    %vm3265 = vcmp.eq.s32.totalorder %v3257, 1
    %vm3266 = vcmp.eq.s32.totalorder %v3258, 1
    %vm3267 = vcmp.eq.s32.totalorder %v3259, 1
    %vm3268 = vcmp.eq.s32.totalorder %v3260, 1
    %vm3269 = vcmp.eq.s32.totalorder %v3261, 1
    %v3270 = vsel %vm3262, 0.0, %v3252
    %v3271 = vsel %vm3263, 0.0, %v3251
    %v3272 = vsel %vm3264, 0.0, %v3250
    %v3273 = vsel %vm3265, 0.0, %v3249
    %v3274 = vsel %vm3266, 0.0, %v3248
    %v3275 = vsel %vm3267, 0.0, %v3247
    %v3276 = vsel %vm3268, 0.0, %v3246
    %v3277 = vsel %vm3269, 0.0, %v3253
    %v3278 = vlaneseq
    %v3279 = vshrl.u32 %v3278, 7
    %v3280 = vsub.s32 0, %v3279
    %v3281 = vrot.slane %v3085, %v3280
    %3282 = vmatprep.subr.mxu0 0.0
    %3283 = vmatpush1.msra.mxu0 %v3037
    %3284 = vmatprep.subr.mxu0 0.0
    %3285 = vmatpush1.msra.mxu0 %v3038
    %3286 = vmatprep.subr.mxu0 0.0
    %3287 = vmatpush1.msra.mxu0 %v3039
    %3288 = vmatprep.subr.mxu0 0.0
    %3289 = vmatpush1.msra.mxu0 %v3040
    %3290 = vmatprep.subr.mxu0 0.0
    %3291 = vmatpush1.msra.mxu0 %v3041
    %3292 = vmatprep.subr.mxu0 0.0
    %3293 = vmatpush1.msra.mxu0 %v3042
    %3294 = vmatprep.subr.mxu0 0.0
    %3295 = vmatpush1.msra.mxu0 %v3043
    %3296 = vmatprep.subr.mxu0 0.0
    %3297 = vmatpush1.msra.mxu0 %v3044
    %3298 = vmatprep.subr.mxu0 0.0
    %3299 = vmatpush1.msra.mxu0 %v3045
    %3300 = vmatprep.subr.mxu0 0.0
    %3301 = vmatpush1.msra.mxu0 %v3046
    %3302 = vmatprep.subr.mxu0 0.0
    %3303 = vmatpush1.msra.mxu0 %v3047
    %3304 = vmatprep.subr.mxu0 0.0
    %3305 = vmatpush1.msra.mxu0 %v3048
    %3306 = vmatprep.subr.mxu0 0.0
    %3307 = vmatpush1.msra.mxu0 %v3049
    %3308 = vmatprep.subr.mxu0 0.0
    %3309 = vmatpush1.msra.mxu0 %v3050
    %3310 = vmatprep.subr.mxu0 0.0
    %3311 = vmatpush1.msra.mxu0 %v3051
    %3312 = vmatprep.subr.mxu0 0.0
    %3313 = vmatpush1.msra.mxu0 %v3052
    %3314 = vmatprep.subr.mxu0 0.0
    %3315 = vmatpush1.msra.mxu0 %v3053
    %3316 = vmatprep.subr.mxu0 0.0
    %3317 = vmatpush1.msra.mxu0 %v3054
    %3318 = vmatprep.subr.mxu0 0.0
    %3319 = vmatpush1.msra.mxu0 %v3055
    %3320 = vmatprep.subr.mxu0 0.0
    %3321 = vmatpush1.msra.mxu0 %v3056
    %3322 = vmatprep.subr.mxu0 0.0
    %3323 = vmatpush1.msra.mxu0 %v3057
    %3324 = vmatprep.subr.mxu0 0.0
    %3325 = vmatpush1.msra.mxu0 %v3058
    %3326 = vmatprep.subr.mxu0 0.0
    %3327 = vmatpush1.msra.mxu0 %v3059
    %3328 = vmatprep.subr.mxu0 0.0
    %3329 = vmatpush1.msra.mxu0 %v3060
    %3330 = vmatprep.subr.mxu0 0.0
    %3331 = vmatpush1.msra.mxu0 %v3061
    %3332 = vmatprep.subr.mxu0 0.0
    %3333 = vmatpush1.msra.mxu0 %v3062
    %3334 = vmatprep.subr.mxu0 0.0
    %3335 = vmatpush1.msra.mxu0 %v3063
    %3336 = vmatprep.subr.mxu0 0.0
    %3337 = vmatpush1.msra.mxu0 %v3064
    %3338 = vmatprep.subr.mxu0 0.0
    %3339 = vmatpush1.msra.mxu0 %v3065
    %3340 = vmatprep.subr.mxu0 0.0
    %3341 = vmatpush1.msra.mxu0 %v3066
    %3342 = vmatprep.subr.mxu0 0.0
    %3343 = vmatpush1.msra.mxu0 %v3067
    %3344 = vmatprep.subr.mxu0 0.0
    %3345 = vmatpush1.msra.mxu0 %v3068
    %3346 = vmatprep.mubr.f32.mxu0 %v3029
    %3347 = vmatmul.mubr.f32.gmra.mrb[0].mxu0 %v3222
    %v3348 = vpop.f32.mrb[0].mxu0
    %v3349 = vadd.f32 %v3281, %v3348
    %v3350 = vpop.f32.mrb[0].mxu0
    %3351 = vmatprep.mubr.f32.mxu0 %v3030
    %3352 = vmatmul.mubr.f32.gmra.mrb[0].mxu0 %v3223
    %v3353 = vpop.f32.mrb[0].mxu0
    %v3354 = vadd.f32 %v3281, %v3353
    %v3355 = vpop.f32.mrb[0].mxu0
    %3356 = vmatprep.mubr.f32.mxu0 %v3031
    %3357 = vmatmul.mubr.f32.gmra.mrb[0].mxu0 %v3224
    %v3358 = vpop.f32.mrb[0].mxu0
    %v3359 = vadd.f32 %v3281, %v3358
    %v3360 = vpop.f32.mrb[0].mxu0
    %3361 = vmatprep.mubr.f32.mxu0 %v3032
    %3362 = vmatmul.mubr.f32.gmra.mrb[0].mxu0 %v3225
    %v3363 = vpop.f32.mrb[0].mxu0
    %v3364 = vadd.f32 %v3281, %v3363
    %v3365 = vpop.f32.mrb[0].mxu0
    %3366 = vmatprep.mubr.f32.mxu0 %v3033
    %3367 = vmatmul.mubr.f32.gmra.mrb[0].mxu0 %v3226
    %v3368 = vpop.f32.mrb[0].mxu0
    %v3369 = vadd.f32 %v3281, %v3368
    %v3370 = vpop.f32.mrb[0].mxu0
    %3371 = vmatprep.mubr.f32.mxu0 %v3034
    %3372 = vmatmul.mubr.f32.gmra.mrb[0].mxu0 %v3227
    %v3373 = vpop.f32.mrb[0].mxu0
    %v3374 = vadd.f32 %v3281, %v3373
    %v3375 = vpop.f32.mrb[0].mxu0
    %3376 = vmatprep.mubr.f32.mxu0 %v3035
    %3377 = vmatmul.mubr.f32.gmra.mrb[0].mxu0 %v3228
    %v3378 = vpop.f32.mrb[0].mxu0
    %v3379 = vadd.f32 %v3281, %v3378
    %v3380 = vpop.f32.mrb[0].mxu0
    %3381 = vmatprep.mubr.f32.mxu0 %v3036
    %3382 = vmatmul.mubr.f32.gmra.mrb[0].mxu0 %v3229
    %v3383 = vpop.f32.mrb[0].mxu0
    %v3384 = vadd.f32 %v3281, %v3383
    %v3385 = vpop.f32.mrb[0].mxu0
    %3386 = vdwg.mxu0
    %3387 = vmatprep.subr.mxu0 0.0
    %3388 = vmatpush1.msra.mxu0 %v3069
    %3389 = vmatprep.subr.mxu0 0.0
    %3390 = vmatpush1.msra.mxu0 %v3070
    %3391 = vmatprep.subr.mxu0 0.0
    %3392 = vmatpush1.msra.mxu0 %v3071
    %3393 = vmatprep.subr.mxu0 0.0
    %3394 = vmatpush1.msra.mxu0 %v3072
    %3395 = vmatprep.subr.mxu0 0.0
    %3396 = vmatpush1.msra.mxu0 %v3073
    %3397 = vmatprep.subr.mxu0 0.0
    %3398 = vmatpush1.msra.mxu0 %v3074
    %3399 = vmatprep.subr.mxu0 0.0
    %3400 = vmatpush1.msra.mxu0 %v3075
    %3401 = vmatprep.subr.mxu0 0.0
    %3402 = vmatpush1.msra.mxu0 %v3076
    %3403 = vmatprep.subr.mxu0 0.0
    %3404 = vmatpush1.msra.mxu0 %v3077
    %3405 = vmatprep.subr.mxu0 0.0
    %3406 = vmatpush1.msra.mxu0 %v3078
    %3407 = vmatprep.subr.mxu0 0.0
    %3408 = vmatpush1.msra.mxu0 %v3079
    %3409 = vmatprep.subr.mxu0 0.0
    %3410 = vmatpush1.msra.mxu0 %v3080
    %3411 = vmatprep.subr.mxu0 0.0
    %3412 = vmatpush1.msra.mxu0 %v3081
    %3413 = vmatprep.subr.mxu0 0.0
    %3414 = vmatpush1.msra.mxu0 %v3082
    %3415 = vmatprep.subr.mxu0 0.0
    %3416 = vmatpush1.msra.mxu0 %v3083
    %3417 = vmatprep.subr.mxu0 0.0
    %3418 = vmatpush1.msra.mxu0 %v3084
    %3419 = vmatprep.subr.mxu0 0.0
    %3420 = vmatpush1.msra.mxu0 0.0
    %3421 = vmatprep.subr.mxu0 0.0
    %3422 = vmatpush1.msra.mxu0 0.0
    %3423 = vmatprep.subr.mxu0 0.0
    %3424 = vmatpush1.msra.mxu0 0.0
    %3425 = vmatprep.subr.mxu0 0.0
    %3426 = vmatpush1.msra.mxu0 0.0
    %3427 = vmatprep.subr.mxu0 0.0
    %3428 = vmatpush1.msra.mxu0 0.0
    %3429 = vmatprep.subr.mxu0 0.0
    %3430 = vmatpush1.msra.mxu0 0.0
    %3431 = vmatprep.subr.mxu0 0.0
    %3432 = vmatpush1.msra.mxu0 0.0
    %3433 = vmatprep.subr.mxu0 0.0
    %3434 = vmatpush1.msra.mxu0 0.0
    %3435 = vmatprep.subr.mxu0 0.0
    %3436 = vmatpush1.msra.mxu0 0.0
    %3437 = vmatprep.subr.mxu0 0.0
    %3438 = vmatpush1.msra.mxu0 0.0
    %3439 = vmatprep.subr.mxu0 0.0
    %3440 = vmatpush1.msra.mxu0 0.0
    %3441 = vmatprep.subr.mxu0 0.0
    %3442 = vmatpush1.msra.mxu0 0.0
    %3443 = vmatprep.subr.mxu0 0.0
    %3444 = vmatpush1.msra.mxu0 0.0
    %3445 = vmatprep.subr.mxu0 0.0
    %3446 = vmatpush1.msra.mxu0 0.0
    %3447 = vmatprep.subr.mxu0 0.0
    %3448 = vmatpush1.msra.mxu0 0.0
    %3449 = vmatprep.subr.mxu0 0.0
    %3450 = vmatpush1.msra.mxu0 0.0
    %3451 = vmatprep.mubr.f32.mxu0 0.0
    %3452 = vmatmul.mubr.f32.gmra.mrb[0].mxu0 %v3270
    %v3453 = vpop.f32.mrb[0].mxu0
    %v3454 = vadd.f32 %v3349, %v3453
    %v3455 = vpop.f32.mrb[0].mxu0
    %3456 = vmatprep.mubr.f32.mxu0 0.0
    %3457 = vmatmul.mubr.f32.gmra.mrb[0].mxu0 %v3271
    %v3458 = vpop.f32.mrb[0].mxu0
    %v3459 = vadd.f32 %v3354, %v3458
    %v3460 = vpop.f32.mrb[0].mxu0
    %3461 = vmatprep.mubr.f32.mxu0 0.0
    %3462 = vmatmul.mubr.f32.gmra.mrb[0].mxu0 %v3272
    %v3463 = vpop.f32.mrb[0].mxu0
    %v3464 = vadd.f32 %v3359, %v3463
    %v3465 = vpop.f32.mrb[0].mxu0
    %3466 = vmatprep.mubr.f32.mxu0 0.0
    %3467 = vmatmul.mubr.f32.gmra.mrb[0].mxu0 %v3273
    %v3468 = vpop.f32.mrb[0].mxu0
    %v3469 = vadd.f32 %v3364, %v3468
    %v3470 = vpop.f32.mrb[0].mxu0
    %3471 = vmatprep.mubr.f32.mxu0 0.0
    %3472 = vmatmul.mubr.f32.gmra.mrb[0].mxu0 %v3274
    %v3473 = vpop.f32.mrb[0].mxu0
    %v3474 = vadd.f32 %v3369, %v3473
    %v3475 = vpop.f32.mrb[0].mxu0
    %3476 = vmatprep.mubr.f32.mxu0 0.0
    %3477 = vmatmul.mubr.f32.gmra.mrb[0].mxu0 %v3275
    %v3478 = vpop.f32.mrb[0].mxu0
    %v3479 = vadd.f32 %v3374, %v3478
    %v3480 = vpop.f32.mrb[0].mxu0
    %3481 = vmatprep.mubr.f32.mxu0 0.0
    %3482 = vmatmul.mubr.f32.gmra.mrb[0].mxu0 %v3276
    %v3483 = vpop.f32.mrb[0].mxu0
    %v3484 = vadd.f32 %v3379, %v3483
    %v3485 = vpop.f32.mrb[0].mxu0
    %3486 = vmatprep.mubr.f32.mxu0 0.0
    %3487 = vmatmul.mubr.f32.gmra.mrb[0].mxu0 %v3277
    %v3488 = vpop.f32.mrb[0].mxu0
    %v3489 = vadd.f32 %v3384, %v3488
    %v3490 = vpop.f32.mrb[0].mxu0
    %3491 = vdwg.mxu0
    %3492 = vst [vmem:[#allocation2] sm:$0xff] %v3454
    %3493 = vst [vmem:[#allocation2 + $0x8] sm:$0xff] %v3459
    %3494 = vst [vmem:[#allocation2 + $0x10] sm:$0xff] %v3464
    %3495 = vst [vmem:[#allocation2 + $0x18] sm:$0xff] %v3469
    %3496 = vst [vmem:[#allocation2 + $0x20] sm:$0xff] %v3474
    %3497 = vst [vmem:[#allocation2 + $0x28] sm:$0xff] %v3479
    %3498 = vst [vmem:[#allocation2 + $0x30] sm:$0xff] %v3484
    %3499 = vst [vmem:[#allocation2 + $0x38] sm:$0xff] %v3489
    %v3500 = vld [vmem:[#allocation2] ss:$2 sm:$0xff]
    %s3501 = scalar_lea.vmem [#allocation2], 16
    %v3502 = vld [vmem:[%s3501] ss:$2 sm:$0xff]
    %s3503 = scalar_lea.vmem [#allocation2], 32
    %v3504 = vld [vmem:[%s3503] ss:$2 sm:$0xff]
    %s3505 = scalar_lea.vmem [#allocation2], 48
    %v3506 = vld [vmem:[%s3505] ss:$2 sm:$0xff]
    %v3507 = vld [vmem:[%s3005] ss:$2 sm:$0xff]
    %v3508 = vld [vmem:[%s3007] ss:$2 sm:$0xff]
    %v3509 = vld [vmem:[%s3009] ss:$2 sm:$0xff]
    %v3510 = vld [vmem:[%s3011] ss:$2 sm:$0xff]
    %v3511 = vmax.f32 %v3500, %v3507
    %v3512 = vmax.f32 %v3502, %v3508
    %v3513 = vmax.f32 %v3504, %v3509
    %v3514 = vmax.f32 %v3506, %v3510
    %v3515 = vmax.f32 %v3511, 0.0
    %v3516 = vmax.f32 %v3512, 0.0
    %v3517 = vmax.f32 %v3513, 0.0
    %v3518 = vmax.f32 %v3514, 0.0
    %v3519 = vld [vmem:[#allocation6 + $0x300] sm:$0xff]
    %v3520 = vld [vmem:[#allocation6 + $0x308] sm:$0xff]
    %v3521 = vld [vmem:[#allocation6 + $0x310] sm:$0xff]
    %v3522 = vld [vmem:[#allocation6 + $0x318] sm:$0xff]
    %v3523 = vld [vmem:[#allocation6 + $0x320] sm:$0xff]
    %v3524 = vld [vmem:[#allocation6 + $0x328] sm:$0xff]
    %v3525 = vld [vmem:[#allocation6 + $0x330] sm:$0xff]
    %v3526 = vld [vmem:[#allocation6 + $0x338] sm:$0xff]
    %v3527 = vld [vmem:[#allocation6 + $0x340] sm:$0xff]
    %v3528 = vld [vmem:[#allocation6 + $0x348] sm:$0xff]
    %v3529 = vld [vmem:[#allocation6 + $0x350] sm:$0xff]
    %v3530 = vld [vmem:[#allocation6 + $0x358] sm:$0xff]
    %v3531 = vld [vmem:[#allocation6 + $0x360] sm:$0xff]
    %v3532 = vld [vmem:[#allocation6 + $0x368] sm:$0xff]
    %v3533 = vld [vmem:[#allocation6 + $0x370] sm:$0xff]
    %v3534 = vld [vmem:[#allocation6 + $0x378] sm:$0xff]
    %v3535 = vld [vmem:[#allocation6 + $0x380] sm:$0xff]
    %v3536 = vld [vmem:[#allocation6 + $0x388] sm:$0xff]
    %v3537 = vld [vmem:[#allocation6 + $0x390] sm:$0xff]
    %v3538 = vld [vmem:[#allocation6 + $0x398] sm:$0xff]
    %v3539 = vld [vmem:[#allocation6 + $0x3a0] sm:$0xff]
    %v3540 = vld [vmem:[#allocation6 + $0x3a8] sm:$0xff]
    %v3541 = vld [vmem:[#allocation6 + $0x3b0] sm:$0xff]
    %v3542 = vld [vmem:[#allocation6 + $0x3b8] sm:$0xff]
    %v3543 = vld [vmem:[#allocation6 + $0x3c0] sm:$0xff]
    %v3544 = vld [vmem:[#allocation6 + $0x3c8] sm:$0xff]
    %v3545 = vld [vmem:[#allocation6 + $0x3d0] sm:$0xff]
    %v3546 = vld [vmem:[#allocation6 + $0x3d8] sm:$0xff]
    %v3547 = vld [vmem:[#allocation6 + $0x3e0] sm:$0xff]
    %v3548 = vld [vmem:[#allocation6 + $0x3e8] sm:$0xff]
    %v3549 = vld [vmem:[#allocation6 + $0x3f0] sm:$0xff]
    %v3550 = vld [vmem:[#allocation6 + $0x3f8] sm:$0xff]
    %v3551 = vld [vmem:[#allocation6 + $0x400] sm:$0xff]
    %v3552 = vld [vmem:[#allocation6 + $0x408] sm:$0xff]
    %v3553 = vld [vmem:[#allocation6 + $0x410] sm:$0xff]
    %v3554 = vld [vmem:[#allocation6 + $0x418] sm:$0xff]
    %v3555 = vld [vmem:[#allocation6 + $0x420] sm:$0xff]
    %v3556 = vld [vmem:[#allocation6 + $0x428] sm:$0xff]
    %v3557 = vld [vmem:[#allocation6 + $0x430] sm:$0xff]
    %v3558 = vld [vmem:[#allocation6 + $0x438] sm:$0xff]
    %v3559 = vld [vmem:[#allocation6 + $0x440] sm:$0xff]
    %v3560 = vld [vmem:[#allocation6 + $0x448] sm:$0xff]
    %v3561 = vld [vmem:[#allocation6 + $0x450] sm:$0xff]
    %v3562 = vld [vmem:[#allocation6 + $0x458] sm:$0xff]
    %v3563 = vld [vmem:[#allocation6 + $0x460] sm:$0xff]
    %v3564 = vld [vmem:[#allocation6 + $0x468] sm:$0xff]
    %v3565 = vld [vmem:[#allocation6 + $0x470] sm:$0xff]
    %v3566 = vld [vmem:[#allocation6 + $0x478] sm:$0xff]
    %v3567 = vld [vmem:[%s3 + $0x2] sm:$0x1]
    %vm3568 = vcmp.lt.s32.totalorder %v2278, 0
    %v3569 = vsub.s32 0, %v2278
    %v3570 = vsel %vm3568, %v3569, %v2278
    %v3571 = vshrl.u32 %v3570, 4
    %v3572 = vand.u32 %v3570, 15
    %v3573 = vsub.s32 0, %v3572
    %v3574 = vsel %vm3568, %v3573, %v3572
    %vm3575 = vcmp.lt.s32.totalorder %v2279, 0
    %v3576 = vsub.s32 0, %v2279
    %v3577 = vsel %vm3575, %v3576, %v2279
    %v3578 = vshrl.u32 %v3577, 4
    %v3579 = vand.u32 %v3577, 15
    %v3580 = vsub.s32 0, %v3579
    %v3581 = vsel %vm3575, %v3580, %v3579
    %vm3582 = vcmp.lt.s32.totalorder %v2280, 0
    %v3583 = vsub.s32 0, %v2280
    %v3584 = vsel %vm3582, %v3583, %v2280
    %v3585 = vshrl.u32 %v3584, 4
    %v3586 = vand.u32 %v3584, 15
    %v3587 = vsub.s32 0, %v3586
    %v3588 = vsel %vm3582, %v3587, %v3586
    %vm3589 = vcmp.lt.s32.totalorder %v2281, 0
    %v3590 = vsub.s32 0, %v2281
    %v3591 = vsel %vm3589, %v3590, %v2281
    %v3592 = vshrl.u32 %v3591, 4
    %v3593 = vand.u32 %v3591, 15
    %v3594 = vsub.s32 0, %v3593
    %v3595 = vsel %vm3589, %v3594, %v3593
    %vm3596 = vcmp.ne.s32.totalorder %v3574, 0
    %vm3597 = vcmp.ne.s32.totalorder %v3581, 0
    %vm3598 = vcmp.ne.s32.totalorder %v3588, 0
    %vm3599 = vcmp.ne.s32.totalorder %v3595, 0
    %vm3600 = vcmp.lt.s32.totalorder %v3574, 0
    %vm3601 = vcmp.lt.s32.totalorder %v3581, 0
    %vm3602 = vcmp.lt.s32.totalorder %v3588, 0
    %vm3603 = vcmp.lt.s32.totalorder %v3595, 0
    %vm3604 = vmand %vm3600, %vm3596
    %vm3605 = vmand %vm3601, %vm3597
    %vm3606 = vmand %vm3602, %vm3598
    %vm3607 = vmand %vm3603, %vm3599
    %v3608 = vadd.s32 %v3574, 16
    %v3609 = vadd.s32 %v3581, 16
    %v3610 = vadd.s32 %v3588, 16
    %v3611 = vadd.s32 %v3595, 16
    %v3612 = vsel %vm3604, %v3608, %v3574
    %v3613 = vsel %vm3605, %v3609, %v3581
    %v3614 = vsel %vm3606, %v3610, %v3588
    %v3615 = vsel %vm3607, %v3611, %v3595
    %vm3616 = vcmp.eq.s32.totalorder %v3612, 0
    %vm3617 = vcmp.eq.s32.totalorder %v3613, 0
    %vm3618 = vcmp.eq.s32.totalorder %v3614, 0
    %vm3619 = vcmp.eq.s32.totalorder %v3615, 0
    %v3620 = vrot.slane %v3515, 7
    %v3621 = vrot.slane %v3516, 7
    %v3622 = vrot.slane %v3517, 7
    %v3623 = vrot.slane %v3518, 7
    %v3624 = vsel %vm2518, %v3622, %v3623
    %v3625 = vsel %vm2518, %v3621, %v3622
    %v3626 = vsel %vm2518, %v3620, %v3621
    %v3627 = vsel %vm2518, %v3623, %v3620
    %v3628 = vsel %vm3616, 1, 0
    %v3629 = vsel %vm3617, 1, 0
    %v3630 = vsel %vm3618, 1, 0
    %v3631 = vsel %vm3619, 1, 0
    %vm3632 = vcmp.eq.s32.totalorder %v3628, 1
    %vm3633 = vcmp.eq.s32.totalorder %v3629, 1
    %vm3634 = vcmp.eq.s32.totalorder %v3630, 1
    %vm3635 = vcmp.eq.s32.totalorder %v3631, 1
    %v3636 = vsel %vm3632, 0.0, %v3627
    %v3637 = vsel %vm3633, 0.0, %v3626
    %v3638 = vsel %vm3634, 0.0, %v3625
    %v3639 = vsel %vm3635, 0.0, %v3624
    %vm3640 = vcmp.eq.s32.totalorder %v3612, 15
    %vm3641 = vcmp.eq.s32.totalorder %v3613, 15
    %vm3642 = vcmp.eq.s32.totalorder %v3614, 15
    %vm3643 = vcmp.eq.s32.totalorder %v3615, 15
    %v3644 = vrot.slane %v3515, 1
    %v3645 = vrot.slane %v3516, 1
    %v3646 = vrot.slane %v3517, 1
    %v3647 = vrot.slane %v3518, 1
    %v3648 = vsel %vm2615, %v3646, %v3647
    %v3649 = vsel %vm2615, %v3645, %v3646
    %v3650 = vsel %vm2615, %v3644, %v3645
    %v3651 = vsel %vm2615, %v3647, %v3644
    %v3652 = vsel %vm3640, 1, 0
    %v3653 = vsel %vm3641, 1, 0
    %v3654 = vsel %vm3642, 1, 0
    %v3655 = vsel %vm3643, 1, 0
    %vm3656 = vcmp.eq.s32.totalorder %v3652, 1
    %vm3657 = vcmp.eq.s32.totalorder %v3653, 1
    %vm3658 = vcmp.eq.s32.totalorder %v3654, 1
    %vm3659 = vcmp.eq.s32.totalorder %v3655, 1
    %v3660 = vsel %vm3656, 0.0, %v3650
    %v3661 = vsel %vm3657, 0.0, %v3649
    %v3662 = vsel %vm3658, 0.0, %v3648
    %v3663 = vsel %vm3659, 0.0, %v3651
    %v3664 = vlaneseq
    %v3665 = vshrl.u32 %v3664, 7
    %v3666 = vsub.s32 0, %v3665
    %v3667 = vrot.slane %v3567, %v3666
    %3668 = vmatprep.subr.mxu0 0.0
    %3669 = vmatpush1.msra.mxu0 %v3519
    %3670 = vmatprep.subr.mxu0 0.0
    %3671 = vmatpush1.msra.mxu0 %v3520
    %3672 = vmatprep.subr.mxu0 0.0
    %3673 = vmatpush1.msra.mxu0 %v3521
    %3674 = vmatprep.subr.mxu0 0.0
    %3675 = vmatpush1.msra.mxu0 %v3522
    %3676 = vmatprep.subr.mxu0 0.0
    %3677 = vmatpush1.msra.mxu0 %v3523
    %3678 = vmatprep.subr.mxu0 0.0
    %3679 = vmatpush1.msra.mxu0 %v3524
    %3680 = vmatprep.subr.mxu0 0.0
    %3681 = vmatpush1.msra.mxu0 %v3525
    %3682 = vmatprep.subr.mxu0 0.0
    %3683 = vmatpush1.msra.mxu0 %v3526
    %3684 = vmatprep.subr.mxu0 0.0
    %3685 = vmatpush1.msra.mxu0 %v3527
    %3686 = vmatprep.subr.mxu0 0.0
    %3687 = vmatpush1.msra.mxu0 %v3528
    %3688 = vmatprep.subr.mxu0 0.0
    %3689 = vmatpush1.msra.mxu0 %v3529
    %3690 = vmatprep.subr.mxu0 0.0
    %3691 = vmatpush1.msra.mxu0 %v3530
    %3692 = vmatprep.subr.mxu0 0.0
    %3693 = vmatpush1.msra.mxu0 %v3531
    %3694 = vmatprep.subr.mxu0 0.0
    %3695 = vmatpush1.msra.mxu0 %v3532
    %3696 = vmatprep.subr.mxu0 0.0
    %3697 = vmatpush1.msra.mxu0 %v3533
    %3698 = vmatprep.subr.mxu0 0.0
    %3699 = vmatpush1.msra.mxu0 %v3534
    %3700 = vmatprep.subr.mxu0 0.0
    %3701 = vmatpush1.msra.mxu0 %v3535
    %3702 = vmatprep.subr.mxu0 0.0
    %3703 = vmatpush1.msra.mxu0 %v3536
    %3704 = vmatprep.subr.mxu0 0.0
    %3705 = vmatpush1.msra.mxu0 %v3537
    %3706 = vmatprep.subr.mxu0 0.0
    %3707 = vmatpush1.msra.mxu0 %v3538
    %3708 = vmatprep.subr.mxu0 0.0
    %3709 = vmatpush1.msra.mxu0 %v3539
    %3710 = vmatprep.subr.mxu0 0.0
    %3711 = vmatpush1.msra.mxu0 %v3540
    %3712 = vmatprep.subr.mxu0 0.0
    %3713 = vmatpush1.msra.mxu0 %v3541
    %3714 = vmatprep.subr.mxu0 0.0
    %3715 = vmatpush1.msra.mxu0 %v3542
    %3716 = vmatprep.subr.mxu0 0.0
    %3717 = vmatpush1.msra.mxu0 %v3543
    %3718 = vmatprep.subr.mxu0 0.0
    %3719 = vmatpush1.msra.mxu0 %v3544
    %3720 = vmatprep.subr.mxu0 0.0
    %3721 = vmatpush1.msra.mxu0 %v3545
    %3722 = vmatprep.subr.mxu0 0.0
    %3723 = vmatpush1.msra.mxu0 %v3546
    %3724 = vmatprep.subr.mxu0 0.0
    %3725 = vmatpush1.msra.mxu0 %v3547
    %3726 = vmatprep.subr.mxu0 0.0
    %3727 = vmatpush1.msra.mxu0 %v3548
    %3728 = vmatprep.subr.mxu0 0.0
    %3729 = vmatpush1.msra.mxu0 %v3549
    %3730 = vmatprep.subr.mxu0 0.0
    %3731 = vmatpush1.msra.mxu0 %v3550
    %3732 = vmatprep.mubr.f32.mxu0 %v3515
    %3733 = vmatmul.mubr.f32.gmra.mrb[0].mxu0 %v3636
    %v3734 = vpop.f32.mrb[0].mxu0
    %v3735 = vadd.f32 %v3667, %v3734
    %v3736 = vpop.f32.mrb[0].mxu0
    %3737 = vmatprep.mubr.f32.mxu0 %v3516
    %3738 = vmatmul.mubr.f32.gmra.mrb[0].mxu0 %v3637
    %v3739 = vpop.f32.mrb[0].mxu0
    %v3740 = vadd.f32 %v3667, %v3739
    %v3741 = vpop.f32.mrb[0].mxu0
    %3742 = vmatprep.mubr.f32.mxu0 %v3517
    %3743 = vmatmul.mubr.f32.gmra.mrb[0].mxu0 %v3638
    %v3744 = vpop.f32.mrb[0].mxu0
    %v3745 = vadd.f32 %v3667, %v3744
    %v3746 = vpop.f32.mrb[0].mxu0
    %3747 = vmatprep.mubr.f32.mxu0 %v3518
    %3748 = vmatmul.mubr.f32.gmra.mrb[0].mxu0 %v3639
    %v3749 = vpop.f32.mrb[0].mxu0
    %v3750 = vadd.f32 %v3667, %v3749
    %v3751 = vpop.f32.mrb[0].mxu0
    %3752 = vdwg.mxu0
    %3753 = vmatprep.subr.mxu0 0.0
    %3754 = vmatpush1.msra.mxu0 %v3551
    %3755 = vmatprep.subr.mxu0 0.0
    %3756 = vmatpush1.msra.mxu0 %v3552
    %3757 = vmatprep.subr.mxu0 0.0
    %3758 = vmatpush1.msra.mxu0 %v3553
    %3759 = vmatprep.subr.mxu0 0.0
    %3760 = vmatpush1.msra.mxu0 %v3554
    %3761 = vmatprep.subr.mxu0 0.0
    %3762 = vmatpush1.msra.mxu0 %v3555
    %3763 = vmatprep.subr.mxu0 0.0
    %3764 = vmatpush1.msra.mxu0 %v3556
    %3765 = vmatprep.subr.mxu0 0.0
    %3766 = vmatpush1.msra.mxu0 %v3557
    %3767 = vmatprep.subr.mxu0 0.0
    %3768 = vmatpush1.msra.mxu0 %v3558
    %3769 = vmatprep.subr.mxu0 0.0
    %3770 = vmatpush1.msra.mxu0 %v3559
    %3771 = vmatprep.subr.mxu0 0.0
    %3772 = vmatpush1.msra.mxu0 %v3560
    %3773 = vmatprep.subr.mxu0 0.0
    %3774 = vmatpush1.msra.mxu0 %v3561
    %3775 = vmatprep.subr.mxu0 0.0
    %3776 = vmatpush1.msra.mxu0 %v3562
    %3777 = vmatprep.subr.mxu0 0.0
    %3778 = vmatpush1.msra.mxu0 %v3563
    %3779 = vmatprep.subr.mxu0 0.0
    %3780 = vmatpush1.msra.mxu0 %v3564
    %3781 = vmatprep.subr.mxu0 0.0
    %3782 = vmatpush1.msra.mxu0 %v3565
    %3783 = vmatprep.subr.mxu0 0.0
    %3784 = vmatpush1.msra.mxu0 %v3566
    %3785 = vmatprep.subr.mxu0 0.0
    %3786 = vmatpush1.msra.mxu0 0.0
    %3787 = vmatprep.subr.mxu0 0.0
    %3788 = vmatpush1.msra.mxu0 0.0
    %3789 = vmatprep.subr.mxu0 0.0
    %3790 = vmatpush1.msra.mxu0 0.0
    %3791 = vmatprep.subr.mxu0 0.0
    %3792 = vmatpush1.msra.mxu0 0.0
    %3793 = vmatprep.subr.mxu0 0.0
    %3794 = vmatpush1.msra.mxu0 0.0
    %3795 = vmatprep.subr.mxu0 0.0
    %3796 = vmatpush1.msra.mxu0 0.0
    %3797 = vmatprep.subr.mxu0 0.0
    %3798 = vmatpush1.msra.mxu0 0.0
    %3799 = vmatprep.subr.mxu0 0.0
    %3800 = vmatpush1.msra.mxu0 0.0
    %3801 = vmatprep.subr.mxu0 0.0
    %3802 = vmatpush1.msra.mxu0 0.0
    %3803 = vmatprep.subr.mxu0 0.0
    %3804 = vmatpush1.msra.mxu0 0.0
    %3805 = vmatprep.subr.mxu0 0.0
    %3806 = vmatpush1.msra.mxu0 0.0
    %3807 = vmatprep.subr.mxu0 0.0
    %3808 = vmatpush1.msra.mxu0 0.0
    %3809 = vmatprep.subr.mxu0 0.0
    %3810 = vmatpush1.msra.mxu0 0.0
    %3811 = vmatprep.subr.mxu0 0.0
    %3812 = vmatpush1.msra.mxu0 0.0
    %3813 = vmatprep.subr.mxu0 0.0
    %3814 = vmatpush1.msra.mxu0 0.0
    %3815 = vmatprep.subr.mxu0 0.0
    %3816 = vmatpush1.msra.mxu0 0.0
    %3817 = vmatprep.mubr.f32.mxu0 0.0
    %3818 = vmatmul.mubr.f32.gmra.mrb[0].mxu0 %v3660
    %v3819 = vpop.f32.mrb[0].mxu0
    %v3820 = vadd.f32 %v3735, %v3819
    %v3821 = vpop.f32.mrb[0].mxu0
    %3822 = vmatprep.mubr.f32.mxu0 0.0
    %3823 = vmatmul.mubr.f32.gmra.mrb[0].mxu0 %v3661
    %v3824 = vpop.f32.mrb[0].mxu0
    %v3825 = vadd.f32 %v3740, %v3824
    %v3826 = vpop.f32.mrb[0].mxu0
    %3827 = vmatprep.mubr.f32.mxu0 0.0
    %3828 = vmatmul.mubr.f32.gmra.mrb[0].mxu0 %v3662
    %v3829 = vpop.f32.mrb[0].mxu0
    %v3830 = vadd.f32 %v3745, %v3829
    %v3831 = vpop.f32.mrb[0].mxu0
    %3832 = vmatprep.mubr.f32.mxu0 0.0
    %3833 = vmatmul.mubr.f32.gmra.mrb[0].mxu0 %v3663
    %v3834 = vpop.f32.mrb[0].mxu0
    %v3835 = vadd.f32 %v3750, %v3834
    %v3836 = vpop.f32.mrb[0].mxu0
    %3837 = vdwg.mxu0
    %3838 = vst [vmem:[#allocation2] sm:$0xff] %v3820
    %3839 = vst [vmem:[#allocation2 + $0x8] sm:$0xff] %v3825
    %3840 = vst [vmem:[#allocation2 + $0x10] sm:$0xff] %v3830
    %3841 = vst [vmem:[#allocation2 + $0x18] sm:$0xff] %v3835
    %v3842 = vld [vmem:[#allocation2] ss:$2 sm:$0xff]
    %v3843 = vld [vmem:[%s3501] ss:$2 sm:$0xff]
    %v3844 = vld [vmem:[%s3005] ss:$2 sm:$0xff]
    %v3845 = vld [vmem:[%s3007] ss:$2 sm:$0xff]
    %v3846 = vmax.f32 %v3842, %v3844
    %v3847 = vmax.f32 %v3843, %v3845
    %v3848 = vmax.f32 %v3846, 0.0
    %v3849 = vmax.f32 %v3847, 0.0
    %v3850 = vld [vmem:[#allocation6 + $0x480] sm:$0xff]
    %v3851 = vld [vmem:[#allocation6 + $0x488] sm:$0xff]
    %v3852 = vld [vmem:[#allocation6 + $0x490] sm:$0xff]
    %v3853 = vld [vmem:[#allocation6 + $0x498] sm:$0xff]
    %v3854 = vld [vmem:[#allocation6 + $0x4a0] sm:$0xff]
    %v3855 = vld [vmem:[#allocation6 + $0x4a8] sm:$0xff]
    %v3856 = vld [vmem:[#allocation6 + $0x4b0] sm:$0xff]
    %v3857 = vld [vmem:[#allocation6 + $0x4b8] sm:$0xff]
    %v3858 = vld [vmem:[#allocation6 + $0x4c0] sm:$0xff]
    %v3859 = vld [vmem:[#allocation6 + $0x4c8] sm:$0xff]
    %v3860 = vld [vmem:[#allocation6 + $0x4d0] sm:$0xff]
    %v3861 = vld [vmem:[#allocation6 + $0x4d8] sm:$0xff]
    %v3862 = vld [vmem:[#allocation6 + $0x4e0] sm:$0xff]
    %v3863 = vld [vmem:[#allocation6 + $0x4e8] sm:$0xff]
    %v3864 = vld [vmem:[#allocation6 + $0x4f0] sm:$0xff]
    %v3865 = vld [vmem:[#allocation6 + $0x4f8] sm:$0xff]
    %v3866 = vld [vmem:[#allocation6 + $0x500] sm:$0xff]
    %v3867 = vld [vmem:[#allocation6 + $0x508] sm:$0xff]
    %v3868 = vld [vmem:[#allocation6 + $0x510] sm:$0xff]
    %v3869 = vld [vmem:[#allocation6 + $0x518] sm:$0xff]
    %v3870 = vld [vmem:[#allocation6 + $0x520] sm:$0xff]
    %v3871 = vld [vmem:[#allocation6 + $0x528] sm:$0xff]
    %v3872 = vld [vmem:[#allocation6 + $0x530] sm:$0xff]
    %v3873 = vld [vmem:[#allocation6 + $0x538] sm:$0xff]
    %v3874 = vld [vmem:[#allocation6 + $0x540] sm:$0xff]
    %v3875 = vld [vmem:[#allocation6 + $0x548] sm:$0xff]
    %v3876 = vld [vmem:[#allocation6 + $0x550] sm:$0xff]
    %v3877 = vld [vmem:[#allocation6 + $0x558] sm:$0xff]
    %v3878 = vld [vmem:[#allocation6 + $0x560] sm:$0xff]
    %v3879 = vld [vmem:[#allocation6 + $0x568] sm:$0xff]
    %v3880 = vld [vmem:[#allocation6 + $0x570] sm:$0xff]
    %v3881 = vld [vmem:[#allocation6 + $0x578] sm:$0xff]
    %v3882 = vld [vmem:[#allocation6 + $0x580] sm:$0xff]
    %v3883 = vld [vmem:[#allocation6 + $0x588] sm:$0xff]
    %v3884 = vld [vmem:[#allocation6 + $0x590] sm:$0xff]
    %v3885 = vld [vmem:[#allocation6 + $0x598] sm:$0xff]
    %v3886 = vld [vmem:[#allocation6 + $0x5a0] sm:$0xff]
    %v3887 = vld [vmem:[#allocation6 + $0x5a8] sm:$0xff]
    %v3888 = vld [vmem:[#allocation6 + $0x5b0] sm:$0xff]
    %v3889 = vld [vmem:[#allocation6 + $0x5b8] sm:$0xff]
    %v3890 = vld [vmem:[#allocation6 + $0x5c0] sm:$0xff]
    %v3891 = vld [vmem:[#allocation6 + $0x5c8] sm:$0xff]
    %v3892 = vld [vmem:[#allocation6 + $0x5d0] sm:$0xff]
    %v3893 = vld [vmem:[#allocation6 + $0x5d8] sm:$0xff]
    %v3894 = vld [vmem:[#allocation6 + $0x5e0] sm:$0xff]
    %v3895 = vld [vmem:[#allocation6 + $0x5e8] sm:$0xff]
    %v3896 = vld [vmem:[#allocation6 + $0x5f0] sm:$0xff]
    %v3897 = vld [vmem:[#allocation6 + $0x5f8] sm:$0xff]
    %v3898 = vld [vmem:[%s3 + $0x3] sm:$0x1]
    %vm3899 = vcmp.lt.s32.totalorder %v2278, 0
    %v3900 = vsub.s32 0, %v2278
    %v3901 = vsel %vm3899, %v3900, %v2278
    %v3902 = vshrl.u32 %v3901, 3
    %v3903 = vand.u32 %v3901, 7
    %v3904 = vsub.s32 0, %v3903
    %v3905 = vsel %vm3899, %v3904, %v3903
    %vm3906 = vcmp.lt.s32.totalorder %v2279, 0
    %v3907 = vsub.s32 0, %v2279
    %v3908 = vsel %vm3906, %v3907, %v2279
    %v3909 = vshrl.u32 %v3908, 3
    %v3910 = vand.u32 %v3908, 7
    %v3911 = vsub.s32 0, %v3910
    %v3912 = vsel %vm3906, %v3911, %v3910
    %vm3913 = vcmp.ne.s32.totalorder %v3905, 0
    %vm3914 = vcmp.ne.s32.totalorder %v3912, 0
    %vm3915 = vcmp.lt.s32.totalorder %v3905, 0
    %vm3916 = vcmp.lt.s32.totalorder %v3912, 0
    %vm3917 = vmand %vm3915, %vm3913
    %vm3918 = vmand %vm3916, %vm3914
    %v3919 = vadd.s32 %v3905, 8
    %v3920 = vadd.s32 %v3912, 8
    %v3921 = vsel %vm3917, %v3919, %v3905
    %v3922 = vsel %vm3918, %v3920, %v3912
    %vm3923 = vcmp.eq.s32.totalorder %v3921, 0
    %vm3924 = vcmp.eq.s32.totalorder %v3922, 0
    %v3925 = vrot.slane %v3848, 7
    %v3926 = vrot.slane %v3849, 7
    %v3927 = vsel %vm2518, %v3925, %v3926
    %v3928 = vsel %vm2518, %v3926, %v3925
    %v3929 = vsel %vm3923, 1, 0
    %v3930 = vsel %vm3924, 1, 0
    %vm3931 = vcmp.eq.s32.totalorder %v3929, 1
    %vm3932 = vcmp.eq.s32.totalorder %v3930, 1
    %v3933 = vsel %vm3931, 0.0, %v3928
    %v3934 = vsel %vm3932, 0.0, %v3927
    %vm3935 = vcmp.eq.s32.totalorder %v3921, 7
    %vm3936 = vcmp.eq.s32.totalorder %v3922, 7
    %v3937 = vrot.slane %v3848, 1
    %v3938 = vrot.slane %v3849, 1
    %v3939 = vsel %vm2615, %v3937, %v3938
    %v3940 = vsel %vm2615, %v3938, %v3937
    %v3941 = vsel %vm3935, 1, 0
    %v3942 = vsel %vm3936, 1, 0
    %vm3943 = vcmp.eq.s32.totalorder %v3941, 1
    %vm3944 = vcmp.eq.s32.totalorder %v3942, 1
    %v3945 = vsel %vm3943, 0.0, %v3939
    %v3946 = vsel %vm3944, 0.0, %v3940
    %v3947 = vlaneseq
    %v3948 = vshrl.u32 %v3947, 7
    %v3949 = vsub.s32 0, %v3948
    %v3950 = vrot.slane %v3898, %v3949
    %3951 = vmatprep.subr.mxu0 0.0
    %3952 = vmatpush1.msra.mxu0 %v3850
    %3953 = vmatprep.subr.mxu0 0.0
    %3954 = vmatpush1.msra.mxu0 %v3851
    %3955 = vmatprep.subr.mxu0 0.0
    %3956 = vmatpush1.msra.mxu0 %v3852
    %3957 = vmatprep.subr.mxu0 0.0
    %3958 = vmatpush1.msra.mxu0 %v3853
    %3959 = vmatprep.subr.mxu0 0.0
    %3960 = vmatpush1.msra.mxu0 %v3854
    %3961 = vmatprep.subr.mxu0 0.0
    %3962 = vmatpush1.msra.mxu0 %v3855
    %3963 = vmatprep.subr.mxu0 0.0
    %3964 = vmatpush1.msra.mxu0 %v3856
    %3965 = vmatprep.subr.mxu0 0.0
    %3966 = vmatpush1.msra.mxu0 %v3857
    %3967 = vmatprep.subr.mxu0 0.0
    %3968 = vmatpush1.msra.mxu0 %v3858
    %3969 = vmatprep.subr.mxu0 0.0
    %3970 = vmatpush1.msra.mxu0 %v3859
    %3971 = vmatprep.subr.mxu0 0.0
    %3972 = vmatpush1.msra.mxu0 %v3860
    %3973 = vmatprep.subr.mxu0 0.0
    %3974 = vmatpush1.msra.mxu0 %v3861
    %3975 = vmatprep.subr.mxu0 0.0
    %3976 = vmatpush1.msra.mxu0 %v3862
    %3977 = vmatprep.subr.mxu0 0.0
    %3978 = vmatpush1.msra.mxu0 %v3863
    %3979 = vmatprep.subr.mxu0 0.0
    %3980 = vmatpush1.msra.mxu0 %v3864
    %3981 = vmatprep.subr.mxu0 0.0
    %3982 = vmatpush1.msra.mxu0 %v3865
    %3983 = vmatprep.subr.mxu0 0.0
    %3984 = vmatpush1.msra.mxu0 %v3866
    %3985 = vmatprep.subr.mxu0 0.0
    %3986 = vmatpush1.msra.mxu0 %v3867
    %3987 = vmatprep.subr.mxu0 0.0
    %3988 = vmatpush1.msra.mxu0 %v3868
    %3989 = vmatprep.subr.mxu0 0.0
    %3990 = vmatpush1.msra.mxu0 %v3869
    %3991 = vmatprep.subr.mxu0 0.0
    %3992 = vmatpush1.msra.mxu0 %v3870
    %3993 = vmatprep.subr.mxu0 0.0
    %3994 = vmatpush1.msra.mxu0 %v3871
    %3995 = vmatprep.subr.mxu0 0.0
    %3996 = vmatpush1.msra.mxu0 %v3872
    %3997 = vmatprep.subr.mxu0 0.0
    %3998 = vmatpush1.msra.mxu0 %v3873
    %3999 = vmatprep.subr.mxu0 0.0
    %4000 = vmatpush1.msra.mxu0 %v3874
    %4001 = vmatprep.subr.mxu0 0.0
    %4002 = vmatpush1.msra.mxu0 %v3875
    %4003 = vmatprep.subr.mxu0 0.0
    %4004 = vmatpush1.msra.mxu0 %v3876
    %4005 = vmatprep.subr.mxu0 0.0
    %4006 = vmatpush1.msra.mxu0 %v3877
    %4007 = vmatprep.subr.mxu0 0.0
    %4008 = vmatpush1.msra.mxu0 %v3878
    %4009 = vmatprep.subr.mxu0 0.0
    %4010 = vmatpush1.msra.mxu0 %v3879
    %4011 = vmatprep.subr.mxu0 0.0
    %4012 = vmatpush1.msra.mxu0 %v3880
    %4013 = vmatprep.subr.mxu0 0.0
    %4014 = vmatpush1.msra.mxu0 %v3881
    %4015 = vmatprep.mubr.f32.mxu0 %v3848
    %4016 = vmatmul.mubr.f32.gmra.mrb[0].mxu0 %v3933
    %v4017 = vpop.f32.mrb[0].mxu0
    %v4018 = vadd.f32 %v3950, %v4017
    %v4019 = vpop.f32.mrb[0].mxu0
    %4020 = vmatprep.mubr.f32.mxu0 %v3849
    %4021 = vmatmul.mubr.f32.gmra.mrb[0].mxu0 %v3934
    %v4022 = vpop.f32.mrb[0].mxu0
    %v4023 = vadd.f32 %v3950, %v4022
    %v4024 = vpop.f32.mrb[0].mxu0
    %4025 = vdwg.mxu0
    %4026 = vmatprep.subr.mxu0 0.0
    %4027 = vmatpush1.msra.mxu0 %v3882
    %4028 = vmatprep.subr.mxu0 0.0
    %4029 = vmatpush1.msra.mxu0 %v3883
    %4030 = vmatprep.subr.mxu0 0.0
    %4031 = vmatpush1.msra.mxu0 %v3884
    %4032 = vmatprep.subr.mxu0 0.0
    %4033 = vmatpush1.msra.mxu0 %v3885
    %4034 = vmatprep.subr.mxu0 0.0
    %4035 = vmatpush1.msra.mxu0 %v3886
    %4036 = vmatprep.subr.mxu0 0.0
    %4037 = vmatpush1.msra.mxu0 %v3887
    %4038 = vmatprep.subr.mxu0 0.0
    %4039 = vmatpush1.msra.mxu0 %v3888
    %4040 = vmatprep.subr.mxu0 0.0
    %4041 = vmatpush1.msra.mxu0 %v3889
    %4042 = vmatprep.subr.mxu0 0.0
    %4043 = vmatpush1.msra.mxu0 %v3890
    %4044 = vmatprep.subr.mxu0 0.0
    %4045 = vmatpush1.msra.mxu0 %v3891
    %4046 = vmatprep.subr.mxu0 0.0
    %4047 = vmatpush1.msra.mxu0 %v3892
    %4048 = vmatprep.subr.mxu0 0.0
    %4049 = vmatpush1.msra.mxu0 %v3893
    %4050 = vmatprep.subr.mxu0 0.0
    %4051 = vmatpush1.msra.mxu0 %v3894
    %4052 = vmatprep.subr.mxu0 0.0
    %4053 = vmatpush1.msra.mxu0 %v3895
    %4054 = vmatprep.subr.mxu0 0.0
    %4055 = vmatpush1.msra.mxu0 %v3896
    %4056 = vmatprep.subr.mxu0 0.0
    %4057 = vmatpush1.msra.mxu0 %v3897
    %4058 = vmatprep.subr.mxu0 0.0
    %4059 = vmatpush1.msra.mxu0 0.0
    %4060 = vmatprep.subr.mxu0 0.0
    %4061 = vmatpush1.msra.mxu0 0.0
    %4062 = vmatprep.subr.mxu0 0.0
    %4063 = vmatpush1.msra.mxu0 0.0
    %4064 = vmatprep.subr.mxu0 0.0
    %4065 = vmatpush1.msra.mxu0 0.0
    %4066 = vmatprep.subr.mxu0 0.0
    %4067 = vmatpush1.msra.mxu0 0.0
    %4068 = vmatprep.subr.mxu0 0.0
    %4069 = vmatpush1.msra.mxu0 0.0
    %4070 = vmatprep.subr.mxu0 0.0
    %4071 = vmatpush1.msra.mxu0 0.0
    %4072 = vmatprep.subr.mxu0 0.0
    %4073 = vmatpush1.msra.mxu0 0.0
    %4074 = vmatprep.subr.mxu0 0.0
    %4075 = vmatpush1.msra.mxu0 0.0
    %4076 = vmatprep.subr.mxu0 0.0
    %4077 = vmatpush1.msra.mxu0 0.0
    %4078 = vmatprep.subr.mxu0 0.0
    %4079 = vmatpush1.msra.mxu0 0.0
    %4080 = vmatprep.subr.mxu0 0.0
    %4081 = vmatpush1.msra.mxu0 0.0
    %4082 = vmatprep.subr.mxu0 0.0
    %4083 = vmatpush1.msra.mxu0 0.0
    %4084 = vmatprep.subr.mxu0 0.0
    %4085 = vmatpush1.msra.mxu0 0.0
    %4086 = vmatprep.subr.mxu0 0.0
    %4087 = vmatpush1.msra.mxu0 0.0
    %4088 = vmatprep.subr.mxu0 0.0
    %4089 = vmatpush1.msra.mxu0 0.0
    %4090 = vmatprep.mubr.f32.mxu0 0.0
    %4091 = vmatmul.mubr.f32.gmra.mrb[0].mxu0 %v3945
    %v4092 = vpop.f32.mrb[0].mxu0
    %v4093 = vadd.f32 %v4018, %v4092
    %v4094 = vpop.f32.mrb[0].mxu0
    %4095 = vmatprep.mubr.f32.mxu0 0.0
    %4096 = vmatmul.mubr.f32.gmra.mrb[0].mxu0 %v3946
    %v4097 = vpop.f32.mrb[0].mxu0
    %v4098 = vadd.f32 %v4023, %v4097
    %v4099 = vpop.f32.mrb[0].mxu0
    %4100 = vdwg.mxu0
    %4101 = vst [vmem:[#allocation2] sm:$0xff] %v4093
    %4102 = vst [vmem:[#allocation2 + $0x8] sm:$0xff] %v4098
    %v4103 = vld [vmem:[#allocation2] ss:$2 sm:$0xff]
    %v4104 = vld [vmem:[%s3005] ss:$2 sm:$0xff]
    %v4105 = vmax.f32 %v4103, %v4104
    %v4106 = vmax.f32 %v4105, 0.0
    %v4107 = vld [vmem:[#allocation6 + $0x600] sm:$0xff]
    %v4108 = vld [vmem:[#allocation6 + $0x608] sm:$0xff]
    %v4109 = vld [vmem:[#allocation6 + $0x610] sm:$0xff]
    %v4110 = vld [vmem:[#allocation6 + $0x618] sm:$0xff]
    %v4111 = vld [vmem:[#allocation6 + $0x620] sm:$0xff]
    %v4112 = vld [vmem:[#allocation6 + $0x628] sm:$0xff]
    %v4113 = vld [vmem:[#allocation6 + $0x630] sm:$0xff]
    %v4114 = vld [vmem:[#allocation6 + $0x638] sm:$0xff]
    %v4115 = vld [vmem:[#allocation6 + $0x640] sm:$0xff]
    %v4116 = vld [vmem:[#allocation6 + $0x648] sm:$0xff]
    %v4117 = vld [vmem:[#allocation6 + $0x650] sm:$0xff]
    %v4118 = vld [vmem:[#allocation6 + $0x658] sm:$0xff]
    %v4119 = vld [vmem:[#allocation6 + $0x660] sm:$0xff]
    %v4120 = vld [vmem:[#allocation6 + $0x668] sm:$0xff]
    %v4121 = vld [vmem:[#allocation6 + $0x670] sm:$0xff]
    %v4122 = vld [vmem:[#allocation6 + $0x678] sm:$0xff]
    %v4123 = vld [vmem:[#allocation6 + $0x680] sm:$0xff]
    %v4124 = vld [vmem:[#allocation6 + $0x688] sm:$0xff]
    %v4125 = vld [vmem:[#allocation6 + $0x690] sm:$0xff]
    %v4126 = vld [vmem:[#allocation6 + $0x698] sm:$0xff]
    %v4127 = vld [vmem:[#allocation6 + $0x6a0] sm:$0xff]
    %v4128 = vld [vmem:[#allocation6 + $0x6a8] sm:$0xff]
    %v4129 = vld [vmem:[#allocation6 + $0x6b0] sm:$0xff]
    %v4130 = vld [vmem:[#allocation6 + $0x6b8] sm:$0xff]
    %v4131 = vld [vmem:[#allocation6 + $0x6c0] sm:$0xff]
    %v4132 = vld [vmem:[#allocation6 + $0x6c8] sm:$0xff]
    %v4133 = vld [vmem:[#allocation6 + $0x6d0] sm:$0xff]
    %v4134 = vld [vmem:[#allocation6 + $0x6d8] sm:$0xff]
    %v4135 = vld [vmem:[#allocation6 + $0x6e0] sm:$0xff]
    %v4136 = vld [vmem:[#allocation6 + $0x6e8] sm:$0xff]
    %v4137 = vld [vmem:[#allocation6 + $0x6f0] sm:$0xff]
    %v4138 = vld [vmem:[#allocation6 + $0x6f8] sm:$0xff]
    %v4139 = vld [vmem:[#allocation6 + $0x700] sm:$0xff]
    %v4140 = vld [vmem:[#allocation6 + $0x708] sm:$0xff]
    %v4141 = vld [vmem:[#allocation6 + $0x710] sm:$0xff]
    %v4142 = vld [vmem:[#allocation6 + $0x718] sm:$0xff]
    %v4143 = vld [vmem:[#allocation6 + $0x720] sm:$0xff]
    %v4144 = vld [vmem:[#allocation6 + $0x728] sm:$0xff]
    %v4145 = vld [vmem:[#allocation6 + $0x730] sm:$0xff]
    %v4146 = vld [vmem:[#allocation6 + $0x738] sm:$0xff]
    %v4147 = vld [vmem:[#allocation6 + $0x740] sm:$0xff]
    %v4148 = vld [vmem:[#allocation6 + $0x748] sm:$0xff]
    %v4149 = vld [vmem:[#allocation6 + $0x750] sm:$0xff]
    %v4150 = vld [vmem:[#allocation6 + $0x758] sm:$0xff]
    %v4151 = vld [vmem:[#allocation6 + $0x760] sm:$0xff]
    %v4152 = vld [vmem:[#allocation6 + $0x768] sm:$0xff]
    %v4153 = vld [vmem:[#allocation6 + $0x770] sm:$0xff]
    %v4154 = vld [vmem:[#allocation6 + $0x778] sm:$0xff]
    %v4155 = vld [vmem:[%s3 + $0x4] sm:$0x1]
    %vm4156 = vcmp.lt.s32.totalorder %v2278, 0
    %v4157 = vsub.s32 0, %v2278
    %v4158 = vsel %vm4156, %v4157, %v2278
    %v4159 = vshrl.u32 %v4158, 2
    %v4160 = vand.u32 %v4158, 3
    %v4161 = vsub.s32 0, %v4160
    %v4162 = vsel %vm4156, %v4161, %v4160
    %vm4163 = vcmp.ne.s32.totalorder %v4162, 0
    %vm4164 = vcmp.lt.s32.totalorder %v4162, 0
    %vm4165 = vmand %vm4164, %vm4163
    %v4166 = vadd.s32 %v4162, 4
    %v4167 = vsel %vm4165, %v4166, %v4162
    %vm4168 = vcmp.eq.s32.totalorder %v4167, 0
    %v4169 = vrot.slane %v4106, 7
    %v4170 = vsel %vm4168, 1, 0
    %vm4171 = vcmp.eq.s32.totalorder %v4170, 1
    %v4172 = vsel %vm4171, 0.0, %v4169
    %vm4173 = vcmp.eq.s32.totalorder %v4167, 3
    %v4174 = vrot.slane %v4106, 1
    %v4175 = vsel %vm4173, 1, 0
    %vm4176 = vcmp.eq.s32.totalorder %v4175, 1
    %v4177 = vsel %vm4176, 0.0, %v4174
    %v4178 = vlaneseq
    %v4179 = vshrl.u32 %v4178, 7
    %v4180 = vsub.s32 0, %v4179
    %v4181 = vrot.slane %v4155, %v4180
    %4182 = vmatprep.subr.mxu0 0.0
    %4183 = vmatpush1.msra.mxu0 %v4107
    %4184 = vmatprep.subr.mxu0 0.0
    %4185 = vmatpush1.msra.mxu0 %v4108
    %4186 = vmatprep.subr.mxu0 0.0
    %4187 = vmatpush1.msra.mxu0 %v4109
    %4188 = vmatprep.subr.mxu0 0.0
    %4189 = vmatpush1.msra.mxu0 %v4110
    %4190 = vmatprep.subr.mxu0 0.0
    %4191 = vmatpush1.msra.mxu0 %v4111
    %4192 = vmatprep.subr.mxu0 0.0
    %4193 = vmatpush1.msra.mxu0 %v4112
    %4194 = vmatprep.subr.mxu0 0.0
    %4195 = vmatpush1.msra.mxu0 %v4113
    %4196 = vmatprep.subr.mxu0 0.0
    %4197 = vmatpush1.msra.mxu0 %v4114
    %4198 = vmatprep.subr.mxu0 0.0
    %4199 = vmatpush1.msra.mxu0 %v4115
    %4200 = vmatprep.subr.mxu0 0.0
    %4201 = vmatpush1.msra.mxu0 %v4116
    %4202 = vmatprep.subr.mxu0 0.0
    %4203 = vmatpush1.msra.mxu0 %v4117
    %4204 = vmatprep.subr.mxu0 0.0
    %4205 = vmatpush1.msra.mxu0 %v4118
    %4206 = vmatprep.subr.mxu0 0.0
    %4207 = vmatpush1.msra.mxu0 %v4119
    %4208 = vmatprep.subr.mxu0 0.0
    %4209 = vmatpush1.msra.mxu0 %v4120
    %4210 = vmatprep.subr.mxu0 0.0
    %4211 = vmatpush1.msra.mxu0 %v4121
    %4212 = vmatprep.subr.mxu0 0.0
    %4213 = vmatpush1.msra.mxu0 %v4122
    %4214 = vmatprep.subr.mxu0 0.0
    %4215 = vmatpush1.msra.mxu0 %v4123
    %4216 = vmatprep.subr.mxu0 0.0
    %4217 = vmatpush1.msra.mxu0 %v4124
    %4218 = vmatprep.subr.mxu0 0.0
    %4219 = vmatpush1.msra.mxu0 %v4125
    %4220 = vmatprep.subr.mxu0 0.0
    %4221 = vmatpush1.msra.mxu0 %v4126
    %4222 = vmatprep.subr.mxu0 0.0
    %4223 = vmatpush1.msra.mxu0 %v4127
    %4224 = vmatprep.subr.mxu0 0.0
    %4225 = vmatpush1.msra.mxu0 %v4128
    %4226 = vmatprep.subr.mxu0 0.0
    %4227 = vmatpush1.msra.mxu0 %v4129
    %4228 = vmatprep.subr.mxu0 0.0
    %4229 = vmatpush1.msra.mxu0 %v4130
    %4230 = vmatprep.subr.mxu0 0.0
    %4231 = vmatpush1.msra.mxu0 %v4131
    %4232 = vmatprep.subr.mxu0 0.0
    %4233 = vmatpush1.msra.mxu0 %v4132
    %4234 = vmatprep.subr.mxu0 0.0
    %4235 = vmatpush1.msra.mxu0 %v4133
    %4236 = vmatprep.subr.mxu0 0.0
    %4237 = vmatpush1.msra.mxu0 %v4134
    %4238 = vmatprep.subr.mxu0 0.0
    %4239 = vmatpush1.msra.mxu0 %v4135
    %4240 = vmatprep.subr.mxu0 0.0
    %4241 = vmatpush1.msra.mxu0 %v4136
    %4242 = vmatprep.subr.mxu0 0.0
    %4243 = vmatpush1.msra.mxu0 %v4137
    %4244 = vmatprep.subr.mxu0 0.0
    %4245 = vmatpush1.msra.mxu0 %v4138
    %4246 = vmatprep.mubr.f32.mxu0 %v4106
    %4247 = vmatmul.mubr.f32.gmra.mrb[0].mxu0 %v4172
    %v4248 = vpop.f32.mrb[0].mxu0
    %v4249 = vadd.f32 %v4181, %v4248
    %v4250 = vpop.f32.mrb[0].mxu0
    %4251 = vdwg.mxu0
    %4252 = vmatprep.subr.mxu0 0.0
    %4253 = vmatpush1.msra.mxu0 %v4139
    %4254 = vmatprep.subr.mxu0 0.0
    %4255 = vmatpush1.msra.mxu0 %v4140
    %4256 = vmatprep.subr.mxu0 0.0
    %4257 = vmatpush1.msra.mxu0 %v4141
    %4258 = vmatprep.subr.mxu0 0.0
    %4259 = vmatpush1.msra.mxu0 %v4142
    %4260 = vmatprep.subr.mxu0 0.0
    %4261 = vmatpush1.msra.mxu0 %v4143
    %4262 = vmatprep.subr.mxu0 0.0
    %4263 = vmatpush1.msra.mxu0 %v4144
    %4264 = vmatprep.subr.mxu0 0.0
    %4265 = vmatpush1.msra.mxu0 %v4145
    %4266 = vmatprep.subr.mxu0 0.0
    %4267 = vmatpush1.msra.mxu0 %v4146
    %4268 = vmatprep.subr.mxu0 0.0
    %4269 = vmatpush1.msra.mxu0 %v4147
    %4270 = vmatprep.subr.mxu0 0.0
    %4271 = vmatpush1.msra.mxu0 %v4148
    %4272 = vmatprep.subr.mxu0 0.0
    %4273 = vmatpush1.msra.mxu0 %v4149
    %4274 = vmatprep.subr.mxu0 0.0
    %4275 = vmatpush1.msra.mxu0 %v4150
    %4276 = vmatprep.subr.mxu0 0.0
    %4277 = vmatpush1.msra.mxu0 %v4151
    %4278 = vmatprep.subr.mxu0 0.0
    %4279 = vmatpush1.msra.mxu0 %v4152
    %4280 = vmatprep.subr.mxu0 0.0
    %4281 = vmatpush1.msra.mxu0 %v4153
    %4282 = vmatprep.subr.mxu0 0.0
    %4283 = vmatpush1.msra.mxu0 %v4154
    %4284 = vmatprep.subr.mxu0 0.0
    %4285 = vmatpush1.msra.mxu0 0.0
    %4286 = vmatprep.subr.mxu0 0.0
    %4287 = vmatpush1.msra.mxu0 0.0
    %4288 = vmatprep.subr.mxu0 0.0
    %4289 = vmatpush1.msra.mxu0 0.0
    %4290 = vmatprep.subr.mxu0 0.0
    %4291 = vmatpush1.msra.mxu0 0.0
    %4292 = vmatprep.subr.mxu0 0.0
    %4293 = vmatpush1.msra.mxu0 0.0
    %4294 = vmatprep.subr.mxu0 0.0
    %4295 = vmatpush1.msra.mxu0 0.0
    %4296 = vmatprep.subr.mxu0 0.0
    %4297 = vmatpush1.msra.mxu0 0.0
    %4298 = vmatprep.subr.mxu0 0.0
    %4299 = vmatpush1.msra.mxu0 0.0
    %4300 = vmatprep.subr.mxu0 0.0
    %4301 = vmatpush1.msra.mxu0 0.0
    %4302 = vmatprep.subr.mxu0 0.0
    %4303 = vmatpush1.msra.mxu0 0.0
    %4304 = vmatprep.subr.mxu0 0.0
    %4305 = vmatpush1.msra.mxu0 0.0
    %4306 = vmatprep.subr.mxu0 0.0
    %4307 = vmatpush1.msra.mxu0 0.0
    %4308 = vmatprep.subr.mxu0 0.0
    %4309 = vmatpush1.msra.mxu0 0.0
    %4310 = vmatprep.subr.mxu0 0.0
    %4311 = vmatpush1.msra.mxu0 0.0
    %4312 = vmatprep.subr.mxu0 0.0
    %4313 = vmatpush1.msra.mxu0 0.0
    %4314 = vmatprep.subr.mxu0 0.0
    %4315 = vmatpush1.msra.mxu0 0.0
    %4316 = vmatprep.mubr.f32.mxu0 0.0
    %4317 = vmatmul.mubr.f32.gmra.mrb[0].mxu0 %v4177
    %v4318 = vpop.f32.mrb[0].mxu0
    %v4319 = vadd.f32 %v4249, %v4318
    %v4320 = vpop.f32.mrb[0].mxu0
    %4321 = vdwg.mxu0
    %4322 = vst [vmem:[#allocation2] sm:$0xff] %v4319
    %v4323 = vld [vmem:[#allocation2] ss:$2 sm:$0xf]
    %v4324 = vld [vmem:[%s3005] ss:$2 sm:$0xf]
    %v4325 = vmax.f32 %v4323, %v4324
    %v4326 = vmax.f32 %v4325, 0.0
    %v4328 = vunpack.c.l.s4 1966171168
    %v4329 = vunpack.c.0.s8 %v4328
    %v4330 = vlaneseq
    %v4331 = vshrl.u32 %v4330, 7
    %v4332 = vsub.s32 %v4329, %v4331
    %v4333 = vrot.slane %v4326, %v4332
    %v4334 = vld [vmem:[%s4] sm:$0xff]
    %v4335 = vld [vmem:[%s4 + $0x8] sm:$0xff]
    %v4336 = vld [vmem:[%s4 + $0x10] sm:$0xff]
    %v4337 = vld [vmem:[%s4 + $0x18] sm:$0xff]
    %v4338 = vld [vmem:[%s4 + $0x20] sm:$0xff]
    %v4339 = vld [vmem:[%s4 + $0x28] sm:$0xff]
    %v4340 = vld [vmem:[%s4 + $0x30] sm:$0xff]
    %v4341 = vld [vmem:[%s4 + $0x38] sm:$0xff]
    %v4342 = vld [vmem:[%s4 + $0x40] sm:$0xff]
    %v4343 = vld [vmem:[%s4 + $0x48] sm:$0xff]
    %v4344 = vld [vmem:[%s4 + $0x50] sm:$0xff]
    %v4345 = vld [vmem:[%s4 + $0x58] sm:$0xff]
    %v4346 = vld [vmem:[%s4 + $0x60] sm:$0xff]
    %v4347 = vld [vmem:[%s4 + $0x68] sm:$0xff]
    %v4348 = vld [vmem:[%s4 + $0x70] sm:$0xff]
    %v4349 = vld [vmem:[%s4 + $0x78] sm:$0xff]
    %v4350 = vld [vmem:[%s4 + $0x80] sm:$0xff]
    %v4351 = vld [vmem:[%s4 + $0x88] sm:$0xff]
    %v4352 = vld [vmem:[%s4 + $0x90] sm:$0xff]
    %v4353 = vld [vmem:[%s4 + $0x98] sm:$0xff]
    %v4354 = vld [vmem:[%s4 + $0xa0] sm:$0xff]
    %v4355 = vld [vmem:[%s4 + $0xa8] sm:$0xff]
    %v4356 = vld [vmem:[%s4 + $0xb0] sm:$0xff]
    %v4357 = vld [vmem:[%s4 + $0xb8] sm:$0xff]
    %v4358 = vld [vmem:[%s4 + $0xc0] sm:$0xff]
    %v4359 = vld [vmem:[%s4 + $0xc8] sm:$0xff]
    %v4360 = vld [vmem:[%s4 + $0xd0] sm:$0xff]
    %v4361 = vld [vmem:[%s4 + $0xd8] sm:$0xff]
    %v4362 = vld [vmem:[%s4 + $0xe0] sm:$0xff]
    %v4363 = vld [vmem:[%s4 + $0xe8] sm:$0xff]
    %v4364 = vld [vmem:[%s4 + $0xf0] sm:$0xff]
    %v4365 = vld [vmem:[%s4 + $0xf8] sm:$0xff]
    %v4366 = vld [vmem:[%s5] sm:$0x1]
    %v4368 = vlaneseq
    %v4369 = vshrl.u32 %v4368, 7
    %v4370 = vsub.s32 0, %v4369
    %v4371 = vrot.slane %v4366, %v4370
    %v4374 = vcombine.high %v4333, %v4333
    %4376 = vmatprep.subr.mxu0 0.0
    %4377 = vmatpush1.msra.mxu0 %v4334
    %4378 = vmatprep.subr.mxu0 0.0
    %4379 = vmatpush1.msra.mxu0 %v4335
    %4380 = vmatprep.subr.mxu0 0.0
    %4381 = vmatpush1.msra.mxu0 %v4336
    %4382 = vmatprep.subr.mxu0 0.0
    %4383 = vmatpush1.msra.mxu0 %v4337
    %4384 = vmatprep.subr.mxu0 0.0
    %4385 = vmatpush1.msra.mxu0 %v4338
    %4386 = vmatprep.subr.mxu0 0.0
    %4387 = vmatpush1.msra.mxu0 %v4339
    %4388 = vmatprep.subr.mxu0 0.0
    %4389 = vmatpush1.msra.mxu0 %v4340
    %4390 = vmatprep.subr.mxu0 0.0
    %4391 = vmatpush1.msra.mxu0 %v4341
    %4392 = vmatprep.subr.mxu0 0.0
    %4393 = vmatpush1.msra.mxu0 %v4342
    %4394 = vmatprep.subr.mxu0 0.0
    %4395 = vmatpush1.msra.mxu0 %v4343
    %4396 = vmatprep.subr.mxu0 0.0
    %4397 = vmatpush1.msra.mxu0 %v4344
    %4398 = vmatprep.subr.mxu0 0.0
    %4399 = vmatpush1.msra.mxu0 %v4345
    %4400 = vmatprep.subr.mxu0 0.0
    %4401 = vmatpush1.msra.mxu0 %v4346
    %4402 = vmatprep.subr.mxu0 0.0
    %4403 = vmatpush1.msra.mxu0 %v4347
    %4404 = vmatprep.subr.mxu0 0.0
    %4405 = vmatpush1.msra.mxu0 %v4348
    %4406 = vmatprep.subr.mxu0 0.0
    %4407 = vmatpush1.msra.mxu0 %v4349
    %4408 = vmatprep.subr.mxu0 0.0
    %4409 = vmatpush1.msra.mxu0 %v4350
    %4410 = vmatprep.subr.mxu0 0.0
    %4411 = vmatpush1.msra.mxu0 %v4351
    %4412 = vmatprep.subr.mxu0 0.0
    %4413 = vmatpush1.msra.mxu0 %v4352
    %4414 = vmatprep.subr.mxu0 0.0
    %4415 = vmatpush1.msra.mxu0 %v4353
    %4416 = vmatprep.subr.mxu0 0.0
    %4417 = vmatpush1.msra.mxu0 %v4354
    %4418 = vmatprep.subr.mxu0 0.0
    %4419 = vmatpush1.msra.mxu0 %v4355
    %4420 = vmatprep.subr.mxu0 0.0
    %4421 = vmatpush1.msra.mxu0 %v4356
    %4422 = vmatprep.subr.mxu0 0.0
    %4423 = vmatpush1.msra.mxu0 %v4357
    %4424 = vmatprep.subr.mxu0 0.0
    %4425 = vmatpush1.msra.mxu0 %v4358
    %4426 = vmatprep.subr.mxu0 0.0
    %4427 = vmatpush1.msra.mxu0 %v4359
    %4428 = vmatprep.subr.mxu0 0.0
    %4429 = vmatpush1.msra.mxu0 %v4360
    %4430 = vmatprep.subr.mxu0 0.0
    %4431 = vmatpush1.msra.mxu0 %v4361
    %4432 = vmatprep.subr.mxu0 0.0
    %4433 = vmatpush1.msra.mxu0 %v4362
    %4434 = vmatprep.subr.mxu0 0.0
    %4435 = vmatpush1.msra.mxu0 %v4363
    %4436 = vmatprep.subr.mxu0 0.0
    %4437 = vmatpush1.msra.mxu0 %v4364
    %4438 = vmatprep.subr.mxu0 0.0
    %4439 = vmatpush1.msra.mxu0 %v4365
    %4440 = vmatprep.mubr.f32.mxu0 %v4374
    %4441 = vmatmul.mubr.f32.gmra.mrb[0].mxu0 %v4333
    %v4442 = vpop.f32.mrb[0].mxu0
    %v4443 = vadd.f32 %v4371, %v4442
    %v4444 = vpop.f32.mrb[0].mxu0
    %4445 = vdwg.mxu0
    %v4446 = vmax.f32 %v4443, 0.0
    %v4447 = vld [vmem:[%s6] sm:$0xff]
    %v4448 = vld [vmem:[%s6 + $0x8] sm:$0xff]
    %v4449 = vld [vmem:[%s6 + $0x10] sm:$0xff]
    %v4450 = vld [vmem:[%s6 + $0x18] sm:$0xff]
    %v4451 = vld [vmem:[%s6 + $0x20] sm:$0xff]
    %v4452 = vld [vmem:[%s6 + $0x28] sm:$0xff]
    %v4453 = vld [vmem:[%s6 + $0x30] sm:$0xff]
    %v4454 = vld [vmem:[%s6 + $0x38] sm:$0xff]
    %v4455 = vld [vmem:[%s7] sm:$0x1]
    %v4457 = vlaneseq
    %v4458 = vshrl.u32 %v4457, 7
    %v4459 = vsub.s32 0, %v4458
    %v4460 = vrot.slane %v4455, %v4459
    %vm4462 = vcmask 523264
    %v4464 = vsel %vm4462, %v4446, 0
    %4466 = vmatprep.subr.mxu0 0.0
    %4467 = vmatpush1.msra.mxu0 %v4447
    %4468 = vmatprep.subr.mxu0 0.0
    %4469 = vmatpush1.msra.mxu0 %v4448
    %4470 = vmatprep.subr.mxu0 0.0
    %4471 = vmatpush1.msra.mxu0 %v4449
    %4472 = vmatprep.subr.mxu0 0.0
    %4473 = vmatpush1.msra.mxu0 %v4450
    %4474 = vmatprep.subr.mxu0 0.0
    %4475 = vmatpush1.msra.mxu0 %v4451
    %4476 = vmatprep.subr.mxu0 0.0
    %4477 = vmatpush1.msra.mxu0 %v4452
    %4478 = vmatprep.subr.mxu0 0.0
    %4479 = vmatpush1.msra.mxu0 %v4453
    %4480 = vmatprep.subr.mxu0 0.0
    %4481 = vmatpush1.msra.mxu0 %v4454
    %4482 = vmatprep.subr.mxu0 0.0
    %4483 = vmatpush1.msra.mxu0 0.0
    %4484 = vmatprep.subr.mxu0 0.0
    %4485 = vmatpush1.msra.mxu0 0.0
    %4486 = vmatprep.subr.mxu0 0.0
    %4487 = vmatpush1.msra.mxu0 0.0
    %4488 = vmatprep.subr.mxu0 0.0
    %4489 = vmatpush1.msra.mxu0 0.0
    %4490 = vmatprep.subr.mxu0 0.0
    %4491 = vmatpush1.msra.mxu0 0.0
    %4492 = vmatprep.subr.mxu0 0.0
    %4493 = vmatpush1.msra.mxu0 0.0
    %4494 = vmatprep.subr.mxu0 0.0
    %4495 = vmatpush1.msra.mxu0 0.0
    %4496 = vmatprep.subr.mxu0 0.0
    %4497 = vmatpush1.msra.mxu0 0.0
    %4498 = vmatprep.subr.mxu0 0.0
    %4499 = vmatpush1.msra.mxu0 0.0
    %4500 = vmatprep.subr.mxu0 0.0
    %4501 = vmatpush1.msra.mxu0 0.0
    %4502 = vmatprep.subr.mxu0 0.0
    %4503 = vmatpush1.msra.mxu0 0.0
    %4504 = vmatprep.subr.mxu0 0.0
    %4505 = vmatpush1.msra.mxu0 0.0
    %4506 = vmatprep.subr.mxu0 0.0
    %4507 = vmatpush1.msra.mxu0 0.0
    %4508 = vmatprep.subr.mxu0 0.0
    %4509 = vmatpush1.msra.mxu0 0.0
    %4510 = vmatprep.subr.mxu0 0.0
    %4511 = vmatpush1.msra.mxu0 0.0
    %4512 = vmatprep.subr.mxu0 0.0
    %4513 = vmatpush1.msra.mxu0 0.0
    %4514 = vmatprep.subr.mxu0 0.0
    %4515 = vmatpush1.msra.mxu0 0.0
    %4516 = vmatprep.subr.mxu0 0.0
    %4517 = vmatpush1.msra.mxu0 0.0
    %4518 = vmatprep.subr.mxu0 0.0
    %4519 = vmatpush1.msra.mxu0 0.0
    %4520 = vmatprep.subr.mxu0 0.0
    %4521 = vmatpush1.msra.mxu0 0.0
    %4522 = vmatprep.subr.mxu0 0.0
    %4523 = vmatpush1.msra.mxu0 0.0
    %4524 = vmatprep.subr.mxu0 0.0
    %4525 = vmatpush1.msra.mxu0 0.0
    %4526 = vmatprep.subr.mxu0 0.0
    %4527 = vmatpush1.msra.mxu0 0.0
    %4528 = vmatprep.subr.mxu0 0.0
    %4529 = vmatpush1.msra.mxu0 0.0
    %4530 = vmatprep.mubr.f32.mxu0 0.0
    %4531 = vmatmul.mubr.f32.gmra.mrb[0].mxu0 %v4464
    %v4532 = vpop.f32.mrb[0].mxu0
    %v4533 = vadd.f32 %v4460, %v4532
    %v4534 = vpop.f32.mrb[0].mxu0
    %4535 = vdwg.mxu0
    %vm4536 = vcmask 123904
    %4537 = vst.msk [vmem:[#allocation8] sm:$0x3] %vm4536, %v4533
    // Predicated region
    $region42: #{tpu_custom_call.1} parent=1 // pred_check
      _
    $region43: #{tpu_custom_call.1} parent=1 // pred_check_branch
      %4539 = sbr.rel (0) target = $region45
    $region44: #{tpu_custom_call.1} parent=1 // pred_region
      %s4541 = ssub.s32 32, 32
      %4542 = vsyncadd [#allocation5], %s4541
      %s4544 = sshll.u32 [#allocation8], 4
      %s4545 = int_to_ptr.vmem [resolvable:$true] %s4544
      %4547 = dma.vmem_to_hbm [thread:$0]  %s4545, 32, %s8, [#allocation5]
    $region45: #{tpu_custom_call.1} parent=1 // pred_fallthru
      _
    // Predicated region
    $region46: #{tpu_custom_call.1} parent=1 // pred_check
      _
    $region47: #{tpu_custom_call.1} parent=1 // pred_check_branch
      %4549 = sbr.rel (0) target = $region49
    $region48: #{tpu_custom_call.1} parent=1 // pred_region
      %4550 = dma.done [#allocation5], 32
    $region49: #{tpu_custom_call.1} parent=1 // pred_fallthru
      _
    %4551 = vsyncpa [#allocation4], 1
    %4552 = vsyncpa [#allocation7], 1
    %4553 = vsyncpa [#allocation5], 1

</llo_original>
